<compile_context>
chip_gen: v7x
topology: tpu7x:2x2x1
jax: 0.10.0
libtpu: 0.0.40
codegen_flags: <defaults>
</compile_context>

<pallas_src>
import functools

import numpy as np
import jax
import jax.numpy as jnp
from jax.experimental import pallas as pl
from jax.experimental.pallas import tpu as pltpu


# ----------------------------------------------------------------------------
# Helpers
# ----------------------------------------------------------------------------
def _round_up(x, m):
    return ((x + m - 1) // m) * m


# ----------------------------------------------------------------------------
# Tiled matmul (+bias, +ReLU) kernel: the workhorse for conv / avgpool / linear
# ----------------------------------------------------------------------------
def _matmul_kernel(a_ref, w_ref, b_ref, o_ref, acc_ref, *, apply_relu):
    """out = [relu]( a @ w + b ), K-tiled with f32 accumulator in VMEM scratch."""
    k = pl.program_id(2)

    @pl.when(k == 0)
    def _():
        acc_ref[...] = jnp.zeros_like(acc_ref)

    acc_ref[...] += jnp.dot(a_ref[...], w_ref[...],
                            preferred_element_type=jnp.float32)

    @pl.when(k == pl.num_programs(2) - 1)
    def _():
        out = acc_ref[...] + b_ref[...]          # (tm, tn) + (1, tn)
        if apply_relu:
            out = jnp.maximum(out, 0.0)
        o_ref[...] = out.astype(o_ref.dtype)


def pl_matmul(a, w, b=None, relu=False, compute_dtype=jnp.bfloat16):
    """a: (M, K), w: (K, N), b: (N,) optional -> (M, N) float32.

    Pads every dim to lane/sublane-friendly tiles, feeds the MXU bf16 operands and
    accumulates in f32.  Grid: (M/tm, N/tn, K/tk) with K as the (arbitrary) reduction
    axis; M, N are parallel (megacore-shardable).
    """
    M, K = a.shape
    K2, N = w.shape
    assert K == K2

    # Tile sizes: lane dim multiples of 128 (up to 256 for the v6e/v7x 2x256 MXU),
    # sublane multiple of 8, K tiles up to 512.
    tm = min(128, _round_up(M, 8))
    tn = min(256, _round_up(N, 128))
    tk = min(512, _round_up(K, 128))
    Mp, Kp, Np = _round_up(M, tm), _round_up(K, tk), _round_up(N, tn)

    a_p = jnp.pad(a.astype(compute_dtype), ((0, Mp - M), (0, Kp - K)))
    w_p = jnp.pad(w.astype(compute_dtype), ((0, Kp - K), (0, Np - N)))
    b_vec = jnp.zeros((N,), jnp.float32) if b is None else b.astype(jnp.float32)
    b_p = jnp.pad(b_vec, (0, Np - N)).reshape(1, Np)

    grid = (Mp // tm, Np // tn, Kp // tk)
    out = pl.pallas_call(
        functools.partial(_matmul_kernel, apply_relu=relu),
        out_shape=jax.ShapeDtypeStruct((Mp, Np), jnp.float32),
        grid=grid,
        in_specs=[
            pl.BlockSpec((tm, tk), lambda i, j, k: (i, k)),
            pl.BlockSpec((tk, tn), lambda i, j, k: (k, j)),
            pl.BlockSpec((1, tn), lambda i, j, k: (0, j)),
        ],
        out_specs=pl.BlockSpec((tm, tn), lambda i, j, k: (i, j)),
        scratch_shapes=[pltpu.VMEM((tm, tn), jnp.float32)],
        compiler_params=pltpu.CompilerParams(
            dimension_semantics=("parallel", "parallel", "arbitrary")),
    )(a_p, w_p, b_p)
    return out[:M, :N]


# ----------------------------------------------------------------------------
# MaxPool2d(kernel=3, stride=2), NHWC, floor mode
# ----------------------------------------------------------------------------
def _maxpool_k3s2_kernel(x0_ref, x1_ref, x2_ref, o_ref):
    """Column-parity views x0/x1/x2 hold cols 2wo / 2wo+1 / 2wo+2; reduce 3x3 window."""
    wmax = jnp.maximum(jnp.maximum(x0_ref[0], x1_ref[0]), x2_ref[0])   # (H, Wo, C)
    Ho = o_ref.shape[1]
    trail = wmax.shape[1:]
    ha = wmax[0:2 * Ho].reshape(Ho, 2, *trail)        # rows 2ho, 2ho+1
    hb = wmax[1:2 * Ho + 1].reshape(Ho, 2, *trail)    # rows 2ho+1, 2ho+2
    o_ref[0] = jnp.maximum(jnp.maximum(ha[:, 0], ha[:, 1]), hb[:, 1])


def max_pool2d_nhwc(x):
    """nn.MaxPool2d(3, 2), NHWC, no padding, floor mode."""
    N, H, W, C = x.shape
    Ho = (H - 3) // 2 + 1
    Wo = (W - 3) // 2 + 1
    # Column-parity de-interleave is done in XLA (native strided slices); the kernel only
    # does elementwise maxes and leading-dim reshapes (no 9x stacked HBM blowup).
    x0 = x[:, :, 0:2 * Wo:2, :]          # cols 2*wo
    x1 = x[:, :, 1:2 * Wo:2, :]          # cols 2*wo + 1
    x2 = x[:, :, 2:2 * Wo + 1:2, :]      # cols 2*wo + 2
    return pl.pallas_call(
        _maxpool_k3s2_kernel,
        out_shape=jax.ShapeDtypeStruct((N, Ho, Wo, C), x.dtype),
        grid=(N,),
        in_specs=[pl.BlockSpec((1, H, Wo, C), lambda n: (n, 0, 0, 0)),
                  pl.BlockSpec((1, H, Wo, C), lambda n: (n, 0, 0, 0)),
                  pl.BlockSpec((1, H, Wo, C), lambda n: (n, 0, 0, 0))],
        out_specs=pl.BlockSpec((1, Ho, Wo, C), lambda n: (n, 0, 0, 0)),
        compiler_params=pltpu.CompilerParams(dimension_semantics=("parallel",)),
    )(x0, x1, x2)


# ----------------------------------------------------------------------------
# Conv2d + ReLU (NHWC activations, PyTorch (Cout, Cin, kh, kw) weights)
# ----------------------------------------------------------------------------
def conv2d_relu_nhwc(x, w, b, stride, padding):
    """nn.Conv2d(stride, padding) + ReLU via im2col (bf16) + tiled Pallas matmul."""
    N, H, W, Cin = x.shape
    Cout, _, kh, kw = w.shape
    xp = jnp.pad(x.astype(jnp.bfloat16),
                 ((0, 0), (padding, padding), (padding, padding), (0, 0)))
    Hp, Wp = H + 2 * padding, W + 2 * padding
    Ho = (Hp - kh) // stride + 1
    Wo = (Wp - kw) // stride + 1
    slabs = [xp[:, di:di + stride * (Ho - 1) + 1:stride,
                   dj:dj + stride * (Wo - 1) + 1:stride, :]
             for di in range(kh) for dj in range(kw)]              # each (N, Ho, Wo, Cin)
    patches = jnp.stack(slabs, axis=3)                             # (N, Ho, Wo, kh*kw, Cin)
    patches = patches.reshape(N * Ho * Wo, kh * kw * Cin)
    # Weight K-ordering matches patch ordering: (dh, dw, cin).
    wmat = jnp.transpose(w, (2, 3, 1, 0)).reshape(kh * kw * Cin, Cout)
    y = pl_matmul(patches, wmat, b, relu=True)                     # (N*Ho*Wo, Cout) f32
    return y.reshape(N, Ho, Wo, Cout)                              # NHWC, no transpose


# ----------------------------------------------------------------------------
# AdaptiveAvgPool2d((6,6)) + flatten as a single Pallas matmul against kron(Ph, Pw)
# ----------------------------------------------------------------------------
def _adaptive_pool_matrix(in_size, out_size):
    """Exact PyTorch AdaptiveAvgPool bin boundaries as an averaging matrix (out, in)."""
    m = np.zeros((out_size, in_size), np.float32)
    for i in range(out_size):
        start = (i * in_size) // out_size
        end = -((-(i + 1) * in_size) // out_size)   # ceil((i+1)*in/out)
        m[i, start:end] = 1.0 / (end - start)
    return m


def adaptive_avg_pool_flatten(x_nhwc, out_hw):
    """AdaptiveAvgPool2d(out_hw) + torch.flatten(x, 1) in PyTorch (NCHW) order."""
    N, H, W, C = x_nhwc.shape
    Ho, Wo = out_hw
    Pk = jnp.asarray(np.kron(_adaptive_pool_matrix(H, Ho),
                             _adaptive_pool_matrix(W, Wo)))        # (Ho*Wo, H*W)
    # Tiny boundary transpose so the flatten ordering matches torch.flatten of NCHW.
    x_nchw = jnp.transpose(x_nhwc, (0, 3, 1, 2)).reshape(N * C, H * W)
    pooled = pl_matmul(x_nchw, Pk.T)                               # (N*C, Ho*Wo) f32
    return pooled.reshape(N, C * Ho * Wo)


# ----------------------------------------------------------------------------
# AlexNet configuration / parameters / forward
# ----------------------------------------------------------------------------
#   features:   list of (in_channels, out_channels, kernel_size, stride, padding)
#   classifier: list of layer widths; first Linear is [0]->[0], last has no ReLU
FEATURES_CFG = [(4, 8, 3, 1, 1), (8, 8, 3, 1, 1)]
CLASSIFIER_CFG = [8 * 6 * 6, 64, 10]          # flatten dim after AdaptiveAvgPool((6,6))
DROPOUT_P = 0.5                               # identity at inference


def init_params(key, features_cfg, classifier_cfg):
    params = {}
    n_keys = 2 * (len(features_cfg) + len(classifier_cfg))
    keys = jax.random.split(key, n_keys)
    ki = 0
    in_c = features_cfg[0][0]
    for idx, v in enumerate(features_cfg):
        cout, k, _, _ = v[1:]
        params[f"conv{idx}_w"] = 0.05 * jax.random.normal(keys[ki], (cout, in_c, k, k), jnp.float32); ki += 1
        params[f"conv{idx}_b"] = 0.05 * jax.random.normal(keys[ki], (cout,), jnp.float32); ki += 1
        in_c = cout
    fin = classifier_cfg[0]
    for idx, v in enumerate(classifier_cfg):
        params[f"fc{idx}_w"] = 0.05 * jax.random.normal(keys[ki], (v, fin), jnp.float32); ki += 1
        params[f"fc{idx}_b"] = 0.05 * jax.random.normal(keys[ki], (v,), jnp.float32); ki += 1
        fin = v
    return params


def alexnet_forward(params, x):
    # Convert NCHW -> NHWC once at the model boundary; all feature layers stay NHWC.
    x = jnp.transpose(x, (0, 2, 3, 1))
    # --- features: [Conv -> ReLU (-> MaxPool(3,2) except after last conv)] ---
    n_conv = len(FEATURES_CFG)
    for idx, v in enumerate(FEATURES_CFG):
        _, _, _, stride, padding = v
        x = conv2d_relu_nhwc(x, params[f"conv{idx}_w"], params[f"conv{idx}_b"],
                             stride, padding)
        if idx != n_conv - 1:
            x = max_pool2d_nhwc(x)
    # --- avgpool + flatten (single fused matmul, PyTorch flatten order) ---
    x = adaptive_avg_pool_flatten(x, (6, 6))
    # --- classifier: [Dropout -> Linear -> ReLU]* , final Linear without ReLU ---
    n_lin = len(CLASSIFIER_CFG)
    for idx in range(n_lin):
        # Dropout(p) precedes every Linear except the last; identity in eval mode.
        w = params[f"fc{idx}_w"]        # (out, in) — PyTorch convention
        b = params[f"fc{idx}_b"]
        x = pl_matmul(x, w.T, b, relu=(idx != n_lin - 1))
    return x


if __name__ == "__main__":
    key = jax.random.PRNGKey(0)
    pkey, xkey = jax.random.split(key)
    params = init_params(pkey, FEATURES_CFG, CLASSIFIER_CFG)
    x = jax.random.normal(xkey, (2, 4, 16, 16), dtype=jnp.float32)   # NCHW input

    fwd = jax.jit(alexnet_forward)
    out = fwd(params, x)
    out = jax.block_until_ready(out)
    assert out.shape == (2, CLASSIFIER_CFG[-1]), out.shape
    assert bool(jnp.all(jnp.isfinite(out)))
    print("KERNEL_OK")
</pallas_src>

<mosaic_0001>
module attributes {stable_mosaic.version = 11 : i64} {
  func.func @_matmul_kernel(%arg0: i32, %arg1: i32, %arg2: i32, %arg3: memref<128x128xbf16, #tpu.memory_space<vmem>>, %arg4: memref<128x128xbf16, #tpu.memory_space<vmem>>, %arg5: memref<1x128xf32, #tpu.memory_space<vmem>>, %arg6: memref<128x128xf32, #tpu.memory_space<vmem>>, %arg7: memref<128x128xf32, #tpu.memory_space<vmem>>) attributes {dimension_semantics = [#tpu.dimension_semantics<parallel>, #tpu.dimension_semantics<parallel>, #tpu.dimension_semantics<arbitrary>], iteration_bounds = array<i64: 4, 1, 1>, scalar_prefetch = 0 : i64, scratch_operands = 1 : i64, tpu.core_type = #tpu.core_type<tc>, window_params = [{transform_indices = @transform_0, window_bounds = array<i64: 128, 128>}, {transform_indices = @transform_1, window_bounds = array<i64: 128, 128>}, {transform_indices = @transform_2, window_bounds = array<i64: 1, 128>}, {transform_indices = @transform_3, window_bounds = array<i64: 128, 128>}]} {
    %c0_i32 = arith.constant 0 : i32
    %0 = arith.cmpi eq, %arg2, %c0_i32 : i32
    %1 = arith.extui %0 : i1 to i32
    %c0_i32_0 = arith.constant 0 : i32
    %2 = arith.cmpi ne, %1, %c0_i32_0 : i32
    scf.if %2 {
      %cst_10 = arith.constant 0.000000e+00 : f32
      %12 = vector.broadcast %cst_10 : f32 to vector<128x128xf32>
      %c0_11 = arith.constant 0 : index
      %c0_12 = arith.constant 0 : index
      %13 = vector.load %arg7[%c0_11, %c0_12] : memref<128x128xf32, #tpu.memory_space<vmem>>, vector<128x128xf32>
      tpu.vector_store %arg7[%c0_11, %c0_12], %12 {strides = array<i32>} : memref<128x128xf32, #tpu.memory_space<vmem>>, vector<128x128xf32>,
    } else {
    }
    %c0 = arith.constant 0 : index
    %c0_1 = arith.constant 0 : index
    %3 = vector.load %arg7[%c0, %c0_1] : memref<128x128xf32, #tpu.memory_space<vmem>>, vector<128x128xf32>
    %c0_2 = arith.constant 0 : index
    %c0_3 = arith.constant 0 : index
    %4 = vector.load %arg3[%c0_2, %c0_3] : memref<128x128xbf16, #tpu.memory_space<vmem>>, vector<128x128xbf16>
    %c0_4 = arith.constant 0 : index
    %c0_5 = arith.constant 0 : index
    %5 = vector.load %arg4[%c0_4, %c0_5] : memref<128x128xbf16, #tpu.memory_space<vmem>>, vector<128x128xbf16>
    %cst = arith.constant dense<0.000000e+00> : vector<128x128xf32>
    %6 = tpu.matmul %4, %5, %cst {dimension_numbers = #tpu.dot_dimension_numbers<[1], [0], [0], [1], [0, 0, 1, 1], [], []>} : vector<128x128xbf16>, vector<128x128xbf16>, vector<128x128xf32> -> vector<128x128xf32>
    %7 = arith.addf %3, %6 : vector<128x128xf32>
    %c0_6 = arith.constant 0 : index
    %c0_7 = arith.constant 0 : index
    %8 = vector.load %arg7[%c0_6, %c0_7] : memref<128x128xf32, #tpu.memory_space<vmem>>, vector<128x128xf32>
    tpu.vector_store %arg7[%c0_6, %c0_7], %7 {strides = array<i32>} : memref<128x128xf32, #tpu.memory_space<vmem>>, vector<128x128xf32>,
    %c0_i32_8 = arith.constant 0 : i32
    %9 = arith.cmpi eq, %arg2, %c0_i32_8 : i32
    %10 = arith.extui %9 : i1 to i32
    %c0_i32_9 = arith.constant 0 : i32
    %11 = arith.cmpi ne, %10, %c0_i32_9 : i32
    scf.if %11 {
      %c0_10 = arith.constant 0 : index
      %c0_11 = arith.constant 0 : index
      %12 = vector.load %arg7[%c0_10, %c0_11] : memref<128x128xf32, #tpu.memory_space<vmem>>, vector<128x128xf32>
      %c0_12 = arith.constant 0 : index
      %c0_13 = arith.constant 0 : index
      %13 = vector.load %arg5[%c0_12, %c0_13] : memref<1x128xf32, #tpu.memory_space<vmem>>, vector<1x128xf32>
      %14 = vector.broadcast %13 : vector<1x128xf32> to vector<128x128xf32>
      %15 = arith.addf %12, %14 : vector<128x128xf32>
      %cst_14 = arith.constant 0.000000e+00 : f32
      %16 = vector.broadcast %cst_14 : f32 to vector<128x128xf32>
      %17 = arith.maximumf %15, %16 : vector<128x128xf32>
      %c0_15 = arith.constant 0 : index
      %c0_16 = arith.constant 0 : index
      %18 = vector.load %arg6[%c0_15, %c0_16] : memref<128x128xf32, #tpu.memory_space<vmem>>, vector<128x128xf32>
      tpu.vector_store %arg6[%c0_15, %c0_16], %17 {strides = array<i32>} : memref<128x128xf32, #tpu.memory_space<vmem>>, vector<128x128xf32>,
    } else {
    }
    return
  }
  func.func @transform_0(%arg0: i32, %arg1: i32, %arg2: i32) -> (i32, i32) {
    %c0_i32 = arith.constant 0 : i32
    return %arg0, %arg2 : i32, i32
  }
  func.func @transform_1(%arg0: i32, %arg1: i32, %arg2: i32) -> (i32, i32) {
    %c0_i32 = arith.constant 0 : i32
    return %arg2, %arg1 : i32, i32
  }
  func.func @transform_2(%arg0: i32, %arg1: i32, %arg2: i32) -> (i32, i32) {
    %c0_i32 = arith.constant 0 : i32
    %c0_i32_0 = arith.constant 0 : i32
    return %c0_i32, %arg1 : i32, i32
  }
  func.func @transform_3(%arg0: i32, %arg1: i32, %arg2: i32) -> (i32, i32) {
    %c0_i32 = arith.constant 0 : i32
    return %arg0, %arg1 : i32, i32
  }
}

module attributes {stable_mosaic.version = 11 : i64} {
  func.func @_maxpool_k3s2_kernel(%arg0: i32, %arg1: memref<1x16x7x8xf32, #tpu.memory_space<vmem>>, %arg2: memref<1x16x7x8xf32, #tpu.memory_space<vmem>>, %arg3: memref<1x16x7x8xf32, #tpu.memory_space<vmem>>, %arg4: memref<1x7x7x8xf32, #tpu.memory_space<vmem>>) attributes {dimension_semantics = [#tpu.dimension_semantics<parallel>], iteration_bounds = array<i64: 2>, scalar_prefetch = 0 : i64, scratch_operands = 0 : i64, tpu.core_type = #tpu.core_type<tc>, window_params = [{transform_indices = @transform_0, window_bounds = array<i64: 1, 16, 7, 8>}, {transform_indices = @transform_1, window_bounds = array<i64: 1, 16, 7, 8>}, {transform_indices = @transform_2, window_bounds = array<i64: 1, 16, 7, 8>}, {transform_indices = @transform_3, window_bounds = array<i64: 1, 7, 7, 8>}]} {
    %c0 = arith.constant 0 : index
    %c0_0 = arith.constant 0 : index
    %c0_1 = arith.constant 0 : index
    %c0_2 = arith.constant 0 : index
    %0 = vector.load %arg1[%c0, %c0_0, %c0_1, %c0_2] : memref<1x16x7x8xf32, #tpu.memory_space<vmem>>, vector<1x16x7x8xf32>
    %1 = vector.shape_cast %0 : vector<1x16x7x8xf32> to vector<16x7x8xf32>
    %c0_3 = arith.constant 0 : index
    %c0_4 = arith.constant 0 : index
    %c0_5 = arith.constant 0 : index
    %c0_6 = arith.constant 0 : index
    %2 = vector.load %arg2[%c0_3, %c0_4, %c0_5, %c0_6] : memref<1x16x7x8xf32, #tpu.memory_space<vmem>>, vector<1x16x7x8xf32>
    %3 = vector.shape_cast %2 : vector<1x16x7x8xf32> to vector<16x7x8xf32>
    %4 = arith.maximumf %1, %3 : vector<16x7x8xf32>
    %c0_7 = arith.constant 0 : index
    %c0_8 = arith.constant 0 : index
    %c0_9 = arith.constant 0 : index
    %c0_10 = arith.constant 0 : index
    %5 = vector.load %arg3[%c0_7, %c0_8, %c0_9, %c0_10] : memref<1x16x7x8xf32, #tpu.memory_space<vmem>>, vector<1x16x7x8xf32>
    %6 = vector.shape_cast %5 : vector<1x16x7x8xf32> to vector<16x7x8xf32>
    %7 = arith.maximumf %4, %6 : vector<16x7x8xf32>
    %8 = vector.extract_strided_slice %7 {offsets = [0, 0, 0], sizes = [14, 7, 8], strides = [1, 1, 1]} : vector<16x7x8xf32> to vector<14x7x8xf32>
    %9 = vector.shape_cast %8 : vector<14x7x8xf32> to vector<7x2x7x8xf32>
    %10 = vector.extract_strided_slice %7 {offsets = [1, 0, 0], sizes = [14, 7, 8], strides = [1, 1, 1]} : vector<16x7x8xf32> to vector<14x7x8xf32>
    %11 = vector.shape_cast %10 : vector<14x7x8xf32> to vector<7x2x7x8xf32>
    %12 = vector.extract_strided_slice %9 {offsets = [0, 0, 0, 0], sizes = [7, 1, 7, 8], strides = [1, 1, 1, 1]} : vector<7x2x7x8xf32> to vector<7x1x7x8xf32>
    %13 = vector.shape_cast %12 : vector<7x1x7x8xf32> to vector<7x7x8xf32>
    %14 = vector.extract_strided_slice %9 {offsets = [0, 1, 0, 0], sizes = [7, 1, 7, 8], strides = [1, 1, 1, 1]} : vector<7x2x7x8xf32> to vector<7x1x7x8xf32>
    %15 = vector.shape_cast %14 : vector<7x1x7x8xf32> to vector<7x7x8xf32>
    %16 = arith.maximumf %13, %15 : vector<7x7x8xf32>
    %17 = vector.extract_strided_slice %11 {offsets = [0, 1, 0, 0], sizes = [7, 1, 7, 8], strides = [1, 1, 1, 1]} : vector<7x2x7x8xf32> to vector<7x1x7x8xf32>
    %18 = vector.shape_cast %17 : vector<7x1x7x8xf32> to vector<7x7x8xf32>
    %19 = arith.maximumf %16, %18 : vector<7x7x8xf32>
    %c0_11 = arith.constant 0 : index
    %c0_12 = arith.constant 0 : index
    %c0_13 = arith.constant 0 : index
    %c0_14 = arith.constant 0 : index
    %20 = vector.load %arg4[%c0_11, %c0_12, %c0_13, %c0_14] : memref<1x7x7x8xf32, #tpu.memory_space<vmem>>, vector<1x7x7x8xf32>
    %21 = vector.shape_cast %20 : vector<1x7x7x8xf32> to vector<7x7x8xf32>
    %22 = vector.shape_cast %19 : vector<7x7x8xf32> to vector<1x7x7x8xf32>
    tpu.vector_store %arg4[%c0_11, %c0_12, %c0_13, %c0_14], %22 {strides = array<i32>} : memref<1x7x7x8xf32, #tpu.memory_space<vmem>>, vector<1x7x7x8xf32>,
    return
  }
  func.func @transform_0(%arg0: i32) -> (i32, i32, i32, i32) {
    %c0_i32 = arith.constant 0 : i32
    %c0_i32_0 = arith.constant 0 : i32
    %c0_i32_1 = arith.constant 0 : i32
    %c0_i32_2 = arith.constant 0 : i32
    return %arg0, %c0_i32, %c0_i32_0, %c0_i32_1 : i32, i32, i32, i32
  }
  func.func @transform_1(%arg0: i32) -> (i32, i32, i32, i32) {
    %c0_i32 = arith.constant 0 : i32
    %c0_i32_0 = arith.constant 0 : i32
    %c0_i32_1 = arith.constant 0 : i32
    %c0_i32_2 = arith.constant 0 : i32
    return %arg0, %c0_i32, %c0_i32_0, %c0_i32_1 : i32, i32, i32, i32
  }
  func.func @transform_2(%arg0: i32) -> (i32, i32, i32, i32) {
    %c0_i32 = arith.constant 0 : i32
    %c0_i32_0 = arith.constant 0 : i32
    %c0_i32_1 = arith.constant 0 : i32
    %c0_i32_2 = arith.constant 0 : i32
    return %arg0, %c0_i32, %c0_i32_0, %c0_i32_1 : i32, i32, i32, i32
  }
  func.func @transform_3(%arg0: i32) -> (i32, i32, i32, i32) {
    %c0_i32 = arith.constant 0 : i32
    %c0_i32_0 = arith.constant 0 : i32
    %c0_i32_1 = arith.constant 0 : i32
    %c0_i32_2 = arith.constant 0 : i32
    return %arg0, %c0_i32, %c0_i32_0, %c0_i32_1 : i32, i32, i32, i32
  }
}

module attributes {stable_mosaic.version = 11 : i64} {
  func.func @_matmul_kernel(%arg0: i32, %arg1: i32, %arg2: i32, %arg3: memref<104x128xbf16, #tpu.memory_space<vmem>>, %arg4: memref<128x128xbf16, #tpu.memory_space<vmem>>, %arg5: memref<1x128xf32, #tpu.memory_space<vmem>>, %arg6: memref<104x128xf32, #tpu.memory_space<vmem>>, %arg7: memref<104x128xf32, #tpu.memory_space<vmem>>) attributes {dimension_semantics = [#tpu.dimension_semantics<parallel>, #tpu.dimension_semantics<parallel>, #tpu.dimension_semantics<arbitrary>], iteration_bounds = array<i64: 1, 1, 1>, scalar_prefetch = 0 : i64, scratch_operands = 1 : i64, tpu.core_type = #tpu.core_type<tc>, window_params = [{transform_indices = @transform_0, window_bounds = array<i64: 104, 128>}, {transform_indices = @transform_1, window_bounds = array<i64: 128, 128>}, {transform_indices = @transform_2, window_bounds = array<i64: 1, 128>}, {transform_indices = @transform_3, window_bounds = array<i64: 104, 128>}]} {
    %c0_i32 = arith.constant 0 : i32
    %0 = arith.cmpi eq, %arg2, %c0_i32 : i32
    %1 = arith.extui %0 : i1 to i32
    %c0_i32_0 = arith.constant 0 : i32
    %2 = arith.cmpi ne, %1, %c0_i32_0 : i32
    scf.if %2 {
      %cst_10 = arith.constant 0.000000e+00 : f32
      %12 = vector.broadcast %cst_10 : f32 to vector<104x128xf32>
      %c0_11 = arith.constant 0 : index
      %c0_12 = arith.constant 0 : index
      %13 = vector.load %arg7[%c0_11, %c0_12] : memref<104x128xf32, #tpu.memory_space<vmem>>, vector<104x128xf32>
      tpu.vector_store %arg7[%c0_11, %c0_12], %12 {strides = array<i32>} : memref<104x128xf32, #tpu.memory_space<vmem>>, vector<104x128xf32>,
    } else {
    }
    %c0 = arith.constant 0 : index
    %c0_1 = arith.constant 0 : index
    %3 = vector.load %arg7[%c0, %c0_1] : memref<104x128xf32, #tpu.memory_space<vmem>>, vector<104x128xf32>
    %c0_2 = arith.constant 0 : index
    %c0_3 = arith.constant 0 : index
    %4 = vector.load %arg3[%c0_2, %c0_3] : memref<104x128xbf16, #tpu.memory_space<vmem>>, vector<104x128xbf16>
    %c0_4 = arith.constant 0 : index
    %c0_5 = arith.constant 0 : index
    %5 = vector.load %arg4[%c0_4, %c0_5] : memref<128x128xbf16, #tpu.memory_space<vmem>>, vector<128x128xbf16>
    %cst = arith.constant dense<0.000000e+00> : vector<104x128xf32>
    %6 = tpu.matmul %4, %5, %cst {dimension_numbers = #tpu.dot_dimension_numbers<[1], [0], [0], [1], [0, 0, 1, 1], [], []>} : vector<104x128xbf16>, vector<128x128xbf16>, vector<104x128xf32> -> vector<104x128xf32>
    %7 = arith.addf %3, %6 : vector<104x128xf32>
    %c0_6 = arith.constant 0 : index
    %c0_7 = arith.constant 0 : index
    %8 = vector.load %arg7[%c0_6, %c0_7] : memref<104x128xf32, #tpu.memory_space<vmem>>, vector<104x128xf32>
    tpu.vector_store %arg7[%c0_6, %c0_7], %7 {strides = array<i32>} : memref<104x128xf32, #tpu.memory_space<vmem>>, vector<104x128xf32>,
    %c0_i32_8 = arith.constant 0 : i32
    %9 = arith.cmpi eq, %arg2, %c0_i32_8 : i32
    %10 = arith.extui %9 : i1 to i32
    %c0_i32_9 = arith.constant 0 : i32
    %11 = arith.cmpi ne, %10, %c0_i32_9 : i32
    scf.if %11 {
      %c0_10 = arith.constant 0 : index
      %c0_11 = arith.constant 0 : index
      %12 = vector.load %arg7[%c0_10, %c0_11] : memref<104x128xf32, #tpu.memory_space<vmem>>, vector<104x128xf32>
      %c0_12 = arith.constant 0 : index
      %c0_13 = arith.constant 0 : index
      %13 = vector.load %arg5[%c0_12, %c0_13] : memref<1x128xf32, #tpu.memory_space<vmem>>, vector<1x128xf32>
      %14 = vector.broadcast %13 : vector<1x128xf32> to vector<104x128xf32>
      %15 = arith.addf %12, %14 : vector<104x128xf32>
      %cst_14 = arith.constant 0.000000e+00 : f32
      %16 = vector.broadcast %cst_14 : f32 to vector<104x128xf32>
      %17 = arith.maximumf %15, %16 : vector<104x128xf32>
      %c0_15 = arith.constant 0 : index
      %c0_16 = arith.constant 0 : index
      %18 = vector.load %arg6[%c0_15, %c0_16] : memref<104x128xf32, #tpu.memory_space<vmem>>, vector<104x128xf32>
      tpu.vector_store %arg6[%c0_15, %c0_16], %17 {strides = array<i32>} : memref<104x128xf32, #tpu.memory_space<vmem>>, vector<104x128xf32>,
    } else {
    }
    return
  }
  func.func @transform_0(%arg0: i32, %arg1: i32, %arg2: i32) -> (i32, i32) {
    %c0_i32 = arith.constant 0 : i32
    return %arg0, %arg2 : i32, i32
  }
  func.func @transform_1(%arg0: i32, %arg1: i32, %arg2: i32) -> (i32, i32) {
    %c0_i32 = arith.constant 0 : i32
    return %arg2, %arg1 : i32, i32
  }
  func.func @transform_2(%arg0: i32, %arg1: i32, %arg2: i32) -> (i32, i32) {
    %c0_i32 = arith.constant 0 : i32
    %c0_i32_0 = arith.constant 0 : i32
    return %c0_i32, %arg1 : i32, i32
  }
  func.func @transform_3(%arg0: i32, %arg1: i32, %arg2: i32) -> (i32, i32) {
    %c0_i32 = arith.constant 0 : i32
    return %arg0, %arg1 : i32, i32
  }
}

module attributes {stable_mosaic.version = 11 : i64} {
  func.func @_matmul_kernel(%arg0: i32, %arg1: i32, %arg2: i32, %arg3: memref<16x128xbf16, #tpu.memory_space<vmem>>, %arg4: memref<128x128xbf16, #tpu.memory_space<vmem>>, %arg5: memref<1x128xf32, #tpu.memory_space<vmem>>, %arg6: memref<16x128xf32, #tpu.memory_space<vmem>>, %arg7: memref<16x128xf32, #tpu.memory_space<vmem>>) attributes {dimension_semantics = [#tpu.dimension_semantics<parallel>, #tpu.dimension_semantics<parallel>, #tpu.dimension_semantics<arbitrary>], iteration_bounds = array<i64: 1, 1, 1>, scalar_prefetch = 0 : i64, scratch_operands = 1 : i64, tpu.core_type = #tpu.core_type<tc>, window_params = [{transform_indices = @transform_0, window_bounds = array<i64: 16, 128>}, {transform_indices = @transform_1, window_bounds = array<i64: 128, 128>}, {transform_indices = @transform_2, window_bounds = array<i64: 1, 128>}, {transform_indices = @transform_3, window_bounds = array<i64: 16, 128>}]} {
    %c0_i32 = arith.constant 0 : i32
    %0 = arith.cmpi eq, %arg2, %c0_i32 : i32
    %1 = arith.extui %0 : i1 to i32
    %c0_i32_0 = arith.constant 0 : i32
    %2 = arith.cmpi ne, %1, %c0_i32_0 : i32
    scf.if %2 {
      %cst_10 = arith.constant 0.000000e+00 : f32
      %12 = vector.broadcast %cst_10 : f32 to vector<16x128xf32>
      %c0_11 = arith.constant 0 : index
      %c0_12 = arith.constant 0 : index
      %13 = vector.load %arg7[%c0_11, %c0_12] : memref<16x128xf32, #tpu.memory_space<vmem>>, vector<16x128xf32>
      tpu.vector_store %arg7[%c0_11, %c0_12], %12 {strides = array<i32>} : memref<16x128xf32, #tpu.memory_space<vmem>>, vector<16x128xf32>,
    } else {
    }
    %c0 = arith.constant 0 : index
    %c0_1 = arith.constant 0 : index
    %3 = vector.load %arg7[%c0, %c0_1] : memref<16x128xf32, #tpu.memory_space<vmem>>, vector<16x128xf32>
    %c0_2 = arith.constant 0 : index
    %c0_3 = arith.constant 0 : index
    %4 = vector.load %arg3[%c0_2, %c0_3] : memref<16x128xbf16, #tpu.memory_space<vmem>>, vector<16x128xbf16>
    %c0_4 = arith.constant 0 : index
    %c0_5 = arith.constant 0 : index
    %5 = vector.load %arg4[%c0_4, %c0_5] : memref<128x128xbf16, #tpu.memory_space<vmem>>, vector<128x128xbf16>
    %cst = arith.constant dense<0.000000e+00> : vector<16x128xf32>
    %6 = tpu.matmul %4, %5, %cst {dimension_numbers = #tpu.dot_dimension_numbers<[1], [0], [0], [1], [0, 0, 1, 1], [], []>} : vector<16x128xbf16>, vector<128x128xbf16>, vector<16x128xf32> -> vector<16x128xf32>
    %7 = arith.addf %3, %6 : vector<16x128xf32>
    %c0_6 = arith.constant 0 : index
    %c0_7 = arith.constant 0 : index
    %8 = vector.load %arg7[%c0_6, %c0_7] : memref<16x128xf32, #tpu.memory_space<vmem>>, vector<16x128xf32>
    tpu.vector_store %arg7[%c0_6, %c0_7], %7 {strides = array<i32>} : memref<16x128xf32, #tpu.memory_space<vmem>>, vector<16x128xf32>,
    %c0_i32_8 = arith.constant 0 : i32
    %9 = arith.cmpi eq, %arg2, %c0_i32_8 : i32
    %10 = arith.extui %9 : i1 to i32
    %c0_i32_9 = arith.constant 0 : i32
    %11 = arith.cmpi ne, %10, %c0_i32_9 : i32
    scf.if %11 {
      %c0_10 = arith.constant 0 : index
      %c0_11 = arith.constant 0 : index
      %12 = vector.load %arg7[%c0_10, %c0_11] : memref<16x128xf32, #tpu.memory_space<vmem>>, vector<16x128xf32>
      %c0_12 = arith.constant 0 : index
      %c0_13 = arith.constant 0 : index
      %13 = vector.load %arg5[%c0_12, %c0_13] : memref<1x128xf32, #tpu.memory_space<vmem>>, vector<1x128xf32>
      %14 = vector.broadcast %13 : vector<1x128xf32> to vector<16x128xf32>
      %15 = arith.addf %12, %14 : vector<16x128xf32>
      %c0_14 = arith.constant 0 : index
      %c0_15 = arith.constant 0 : index
      %16 = vector.load %arg6[%c0_14, %c0_15] : memref<16x128xf32, #tpu.memory_space<vmem>>, vector<16x128xf32>
      tpu.vector_store %arg6[%c0_14, %c0_15], %15 {strides = array<i32>} : memref<16x128xf32, #tpu.memory_space<vmem>>, vector<16x128xf32>,
    } else {
    }
    return
  }
  func.func @transform_0(%arg0: i32, %arg1: i32, %arg2: i32) -> (i32, i32) {
    %c0_i32 = arith.constant 0 : i32
    return %arg0, %arg2 : i32, i32
  }
  func.func @transform_1(%arg0: i32, %arg1: i32, %arg2: i32) -> (i32, i32) {
    %c0_i32 = arith.constant 0 : i32
    return %arg2, %arg1 : i32, i32
  }
  func.func @transform_2(%arg0: i32, %arg1: i32, %arg2: i32) -> (i32, i32) {
    %c0_i32 = arith.constant 0 : i32
    %c0_i32_0 = arith.constant 0 : i32
    return %c0_i32, %arg1 : i32, i32
  }
  func.func @transform_3(%arg0: i32, %arg1: i32, %arg2: i32) -> (i32, i32) {
    %c0_i32 = arith.constant 0 : i32
    return %arg0, %arg1 : i32, i32
  }
}

module attributes {stable_mosaic.version = 11 : i64} {
  func.func @_matmul_kernel(%arg0: i32, %arg1: i32, %arg2: i32, %arg3: memref<8x384xbf16, #tpu.memory_space<vmem>>, %arg4: memref<384x256xbf16, #tpu.memory_space<vmem>>, %arg5: memref<1x256xf32, #tpu.memory_space<vmem>>, %arg6: memref<8x256xf32, #tpu.memory_space<vmem>>, %arg7: memref<8x256xf32, #tpu.memory_space<vmem>>) attributes {dimension_semantics = [#tpu.dimension_semantics<parallel>, #tpu.dimension_semantics<parallel>, #tpu.dimension_semantics<arbitrary>], iteration_bounds = array<i64: 1, 2, 1>, scalar_prefetch = 0 : i64, scratch_operands = 1 : i64, tpu.core_type = #tpu.core_type<tc>, window_params = [{transform_indices = @transform_0, window_bounds = array<i64: 8, 384>}, {transform_indices = @transform_1, window_bounds = array<i64: 384, 256>}, {transform_indices = @transform_2, window_bounds = array<i64: 1, 256>}, {transform_indices = @transform_3, window_bounds = array<i64: 8, 256>}]} {
    %c0_i32 = arith.constant 0 : i32
    %0 = arith.cmpi eq, %arg2, %c0_i32 : i32
    %1 = arith.extui %0 : i1 to i32
    %c0_i32_0 = arith.constant 0 : i32
    %2 = arith.cmpi ne, %1, %c0_i32_0 : i32
    scf.if %2 {
      %cst_10 = arith.constant 0.000000e+00 : f32
      %12 = vector.broadcast %cst_10 : f32 to vector<8x256xf32>
      %c0_11 = arith.constant 0 : index
      %c0_12 = arith.constant 0 : index
      %13 = vector.load %arg7[%c0_11, %c0_12] : memref<8x256xf32, #tpu.memory_space<vmem>>, vector<8x256xf32>
      tpu.vector_store %arg7[%c0_11, %c0_12], %12 {strides = array<i32>} : memref<8x256xf32, #tpu.memory_space<vmem>>, vector<8x256xf32>,
    } else {
    }
    %c0 = arith.constant 0 : index
    %c0_1 = arith.constant 0 : index
    %3 = vector.load %arg7[%c0, %c0_1] : memref<8x256xf32, #tpu.memory_space<vmem>>, vector<8x256xf32>
    %c0_2 = arith.constant 0 : index
    %c0_3 = arith.constant 0 : index
    %4 = vector.load %arg3[%c0_2, %c0_3] : memref<8x384xbf16, #tpu.memory_space<vmem>>, vector<8x384xbf16>
    %c0_4 = arith.constant 0 : index
    %c0_5 = arith.constant 0 : index
    %5 = vector.load %arg4[%c0_4, %c0_5] : memref<384x256xbf16, #tpu.memory_space<vmem>>, vector<384x256xbf16>
    %cst = arith.constant dense<0.000000e+00> : vector<8x256xf32>
    %6 = tpu.matmul %4, %5, %cst {dimension_numbers = #tpu.dot_dimension_numbers<[1], [0], [0], [1], [0, 0, 1, 1], [], []>} : vector<8x384xbf16>, vector<384x256xbf16>, vector<8x256xf32> -> vector<8x256xf32>
    %7 = arith.addf %3, %6 : vector<8x256xf32>
    %c0_6 = arith.constant 0 : index
    %c0_7 = arith.constant 0 : index
    %8 = vector.load %arg7[%c0_6, %c0_7] : memref<8x256xf32, #tpu.memory_space<vmem>>, vector<8x256xf32>
    tpu.vector_store %arg7[%c0_6, %c0_7], %7 {strides = array<i32>} : memref<8x256xf32, #tpu.memory_space<vmem>>, vector<8x256xf32>,
    %c0_i32_8 = arith.constant 0 : i32
    %9 = arith.cmpi eq, %arg2, %c0_i32_8 : i32
    %10 = arith.extui %9 : i1 to i32
    %c0_i32_9 = arith.constant 0 : i32
    %11 = arith.cmpi ne, %10, %c0_i32_9 : i32
    scf.if %11 {
      %c0_10 = arith.constant 0 : index
      %c0_11 = arith.constant 0 : index
      %12 = vector.load %arg7[%c0_10, %c0_11] : memref<8x256xf32, #tpu.memory_space<vmem>>, vector<8x256xf32>
      %c0_12 = arith.constant 0 : index
      %c0_13 = arith.constant 0 : index
      %13 = vector.load %arg5[%c0_12, %c0_13] : memref<1x256xf32, #tpu.memory_space<vmem>>, vector<1x256xf32>
      %14 = vector.broadcast %13 : vector<1x256xf32> to vector<8x256xf32>
      %15 = arith.addf %12, %14 : vector<8x256xf32>
      %cst_14 = arith.constant 0.000000e+00 : f32
      %16 = vector.broadcast %cst_14 : f32 to vector<8x256xf32>
      %17 = arith.maximumf %15, %16 : vector<8x256xf32>
      %c0_15 = arith.constant 0 : index
      %c0_16 = arith.constant 0 : index
      %18 = vector.load %arg6[%c0_15, %c0_16] : memref<8x256xf32, #tpu.memory_space<vmem>>, vector<8x256xf32>
      tpu.vector_store %arg6[%c0_15, %c0_16], %17 {strides = array<i32>} : memref<8x256xf32, #tpu.memory_space<vmem>>, vector<8x256xf32>,
    } else {
    }
    return
  }
  func.func @transform_0(%arg0: i32, %arg1: i32, %arg2: i32) -> (i32, i32) {
    %c0_i32 = arith.constant 0 : i32
    return %arg0, %arg2 : i32, i32
  }
  func.func @transform_1(%arg0: i32, %arg1: i32, %arg2: i32) -> (i32, i32) {
    %c0_i32 = arith.constant 0 : i32
    return %arg2, %arg1 : i32, i32
  }
  func.func @transform_2(%arg0: i32, %arg1: i32, %arg2: i32) -> (i32, i32) {
    %c0_i32 = arith.constant 0 : i32
    %c0_i32_0 = arith.constant 0 : i32
    return %c0_i32, %arg1 : i32, i32
  }
  func.func @transform_3(%arg0: i32, %arg1: i32, %arg2: i32) -> (i32, i32) {
    %c0_i32 = arith.constant 0 : i32
    return %arg0, %arg1 : i32, i32
  }
}

module attributes {stable_mosaic.version = 11 : i64} {
  func.func @_matmul_kernel(%arg0: i32, %arg1: i32, %arg2: i32, %arg3: memref<8x384xbf16, #tpu.memory_space<vmem>>, %arg4: memref<384x128xbf16, #tpu.memory_space<vmem>>, %arg5: memref<1x128xf32, #tpu.memory_space<vmem>>, %arg6: memref<8x128xf32, #tpu.memory_space<vmem>>, %arg7: memref<8x128xf32, #tpu.memory_space<vmem>>) attributes {dimension_semantics = [#tpu.dimension_semantics<parallel>, #tpu.dimension_semantics<parallel>, #tpu.dimension_semantics<arbitrary>], iteration_bounds = array<i64: 1, 1, 1>, scalar_prefetch = 0 : i64, scratch_operands = 1 : i64, tpu.core_type = #tpu.core_type<tc>, window_params = [{transform_indices = @transform_0, window_bounds = array<i64: 8, 384>}, {transform_indices = @transform_1, window_bounds = array<i64: 384, 128>}, {transform_indices = @transform_2, window_bounds = array<i64: 1, 128>}, {transform_indices = @transform_3, window_bounds = array<i64: 8, 128>}]} {
    %c0_i32 = arith.constant 0 : i32
    %0 = arith.cmpi eq, %arg2, %c0_i32 : i32
    %1 = arith.extui %0 : i1 to i32
    %c0_i32_0 = arith.constant 0 : i32
    %2 = arith.cmpi ne, %1, %c0_i32_0 : i32
    scf.if %2 {
      %cst_10 = arith.constant 0.000000e+00 : f32
      %12 = vector.broadcast %cst_10 : f32 to vector<8x128xf32>
      %c0_11 = arith.constant 0 : index
      %c0_12 = arith.constant 0 : index
      %13 = vector.load %arg7[%c0_11, %c0_12] : memref<8x128xf32, #tpu.memory_space<vmem>>, vector<8x128xf32>
      tpu.vector_store %arg7[%c0_11, %c0_12], %12 {strides = array<i32>} : memref<8x128xf32, #tpu.memory_space<vmem>>, vector<8x128xf32>,
    } else {
    }
    %c0 = arith.constant 0 : index
    %c0_1 = arith.constant 0 : index
    %3 = vector.load %arg7[%c0, %c0_1] : memref<8x128xf32, #tpu.memory_space<vmem>>, vector<8x128xf32>
    %c0_2 = arith.constant 0 : index
    %c0_3 = arith.constant 0 : index
    %4 = vector.load %arg3[%c0_2, %c0_3] : memref<8x384xbf16, #tpu.memory_space<vmem>>, vector<8x384xbf16>
    %c0_4 = arith.constant 0 : index
    %c0_5 = arith.constant 0 : index
    %5 = vector.load %arg4[%c0_4, %c0_5] : memref<384x128xbf16, #tpu.memory_space<vmem>>, vector<384x128xbf16>
    %cst = arith.constant dense<0.000000e+00> : vector<8x128xf32>
    %6 = tpu.matmul %4, %5, %cst {dimension_numbers = #tpu.dot_dimension_numbers<[1], [0], [0], [1], [0, 0, 1, 1], [], []>} : vector<8x384xbf16>, vector<384x128xbf16>, vector<8x128xf32> -> vector<8x128xf32>
    %7 = arith.addf %3, %6 : vector<8x128xf32>
    %c0_6 = arith.constant 0 : index
    %c0_7 = arith.constant 0 : index
    %8 = vector.load %arg7[%c0_6, %c0_7] : memref<8x128xf32, #tpu.memory_space<vmem>>, vector<8x128xf32>
    tpu.vector_store %arg7[%c0_6, %c0_7], %7 {strides = array<i32>} : memref<8x128xf32, #tpu.memory_space<vmem>>, vector<8x128xf32>,
    %c0_i32_8 = arith.constant 0 : i32
    %9 = arith.cmpi eq, %arg2, %c0_i32_8 : i32
    %10 = arith.extui %9 : i1 to i32
    %c0_i32_9 = arith.constant 0 : i32
    %11 = arith.cmpi ne, %10, %c0_i32_9 : i32
    scf.if %11 {
      %c0_10 = arith.constant 0 : index
      %c0_11 = arith.constant 0 : index
      %12 = vector.load %arg7[%c0_10, %c0_11] : memref<8x128xf32, #tpu.memory_space<vmem>>, vector<8x128xf32>
      %c0_12 = arith.constant 0 : index
      %c0_13 = arith.constant 0 : index
      %13 = vector.load %arg5[%c0_12, %c0_13] : memref<1x128xf32, #tpu.memory_space<vmem>>, vector<1x128xf32>
      %14 = vector.broadcast %13 : vector<1x128xf32> to vector<8x128xf32>
      %15 = arith.addf %12, %14 : vector<8x128xf32>
      %cst_14 = arith.constant 0.000000e+00 : f32
      %16 = vector.broadcast %cst_14 : f32 to vector<8x128xf32>
      %17 = arith.maximumf %15, %16 : vector<8x128xf32>
      %c0_15 = arith.constant 0 : index
      %c0_16 = arith.constant 0 : index
      %18 = vector.load %arg6[%c0_15, %c0_16] : memref<8x128xf32, #tpu.memory_space<vmem>>, vector<8x128xf32>
      tpu.vector_store %arg6[%c0_15, %c0_16], %17 {strides = array<i32>} : memref<8x128xf32, #tpu.memory_space<vmem>>, vector<8x128xf32>,
    } else {
    }
    return
  }
  func.func @transform_0(%arg0: i32, %arg1: i32, %arg2: i32) -> (i32, i32) {
    %c0_i32 = arith.constant 0 : i32
    return %arg0, %arg2 : i32, i32
  }
  func.func @transform_1(%arg0: i32, %arg1: i32, %arg2: i32) -> (i32, i32) {
    %c0_i32 = arith.constant 0 : i32
    return %arg2, %arg1 : i32, i32
  }
  func.func @transform_2(%arg0: i32, %arg1: i32, %arg2: i32) -> (i32, i32) {
    %c0_i32 = arith.constant 0 : i32
    %c0_i32_0 = arith.constant 0 : i32
    return %c0_i32, %arg1 : i32, i32
  }
  func.func @transform_3(%arg0: i32, %arg1: i32, %arg2: i32) -> (i32, i32) {
    %c0_i32 = arith.constant 0 : i32
    return %arg0, %arg1 : i32, i32
  }
}

module attributes {stable_mosaic.version = 11 : i64} {
  func.func @_matmul_kernel(%arg0: i32, %arg1: i32, %arg2: i32, %arg3: memref<8x128xbf16, #tpu.memory_space<vmem>>, %arg4: memref<128x128xbf16, #tpu.memory_space<vmem>>, %arg5: memref<1x128xf32, #tpu.memory_space<vmem>>, %arg6: memref<8x128xf32, #tpu.memory_space<vmem>>, %arg7: memref<8x128xf32, #tpu.memory_space<vmem>>) attributes {dimension_semantics = [#tpu.dimension_semantics<parallel>, #tpu.dimension_semantics<parallel>, #tpu.dimension_semantics<arbitrary>], iteration_bounds = array<i64: 1, 1, 1>, scalar_prefetch = 0 : i64, scratch_operands = 1 : i64, tpu.core_type = #tpu.core_type<tc>, window_params = [{transform_indices = @transform_0, window_bounds = array<i64: 8, 128>}, {transform_indices = @transform_1, window_bounds = array<i64: 128, 128>}, {transform_indices = @transform_2, window_bounds = array<i64: 1, 128>}, {transform_indices = @transform_3, window_bounds = array<i64: 8, 128>}]} {
    %c0_i32 = arith.constant 0 : i32
    %0 = arith.cmpi eq, %arg2, %c0_i32 : i32
    %1 = arith.extui %0 : i1 to i32
    %c0_i32_0 = arith.constant 0 : i32
    %2 = arith.cmpi ne, %1, %c0_i32_0 : i32
    scf.if %2 {
      %cst_10 = arith.constant 0.000000e+00 : f32
      %12 = vector.broadcast %cst_10 : f32 to vector<8x128xf32>
      %c0_11 = arith.constant 0 : index
      %c0_12 = arith.constant 0 : index
      %13 = vector.load %arg7[%c0_11, %c0_12] : memref<8x128xf32, #tpu.memory_space<vmem>>, vector<8x128xf32>
      tpu.vector_store %arg7[%c0_11, %c0_12], %12 {strides = array<i32>} : memref<8x128xf32, #tpu.memory_space<vmem>>, vector<8x128xf32>,
    } else {
    }
    %c0 = arith.constant 0 : index
    %c0_1 = arith.constant 0 : index
    %3 = vector.load %arg7[%c0, %c0_1] : memref<8x128xf32, #tpu.memory_space<vmem>>, vector<8x128xf32>
    %c0_2 = arith.constant 0 : index
    %c0_3 = arith.constant 0 : index
    %4 = vector.load %arg3[%c0_2, %c0_3] : memref<8x128xbf16, #tpu.memory_space<vmem>>, vector<8x128xbf16>
    %c0_4 = arith.constant 0 : index
    %c0_5 = arith.constant 0 : index
    %5 = vector.load %arg4[%c0_4, %c0_5] : memref<128x128xbf16, #tpu.memory_space<vmem>>, vector<128x128xbf16>
    %cst = arith.constant dense<0.000000e+00> : vector<8x128xf32>
    %6 = tpu.matmul %4, %5, %cst {dimension_numbers = #tpu.dot_dimension_numbers<[1], [0], [0], [1], [0, 0, 1, 1], [], []>} : vector<8x128xbf16>, vector<128x128xbf16>, vector<8x128xf32> -> vector<8x128xf32>
    %7 = arith.addf %3, %6 : vector<8x128xf32>
    %c0_6 = arith.constant 0 : index
    %c0_7 = arith.constant 0 : index
    %8 = vector.load %arg7[%c0_6, %c0_7] : memref<8x128xf32, #tpu.memory_space<vmem>>, vector<8x128xf32>
    tpu.vector_store %arg7[%c0_6, %c0_7], %7 {strides = array<i32>} : memref<8x128xf32, #tpu.memory_space<vmem>>, vector<8x128xf32>,
    %c0_i32_8 = arith.constant 0 : i32
    %9 = arith.cmpi eq, %arg2, %c0_i32_8 : i32
    %10 = arith.extui %9 : i1 to i32
    %c0_i32_9 = arith.constant 0 : i32
    %11 = arith.cmpi ne, %10, %c0_i32_9 : i32
    scf.if %11 {
      %c0_10 = arith.constant 0 : index
      %c0_11 = arith.constant 0 : index
      %12 = vector.load %arg7[%c0_10, %c0_11] : memref<8x128xf32, #tpu.memory_space<vmem>>, vector<8x128xf32>
      %c0_12 = arith.constant 0 : index
      %c0_13 = arith.constant 0 : index
      %13 = vector.load %arg5[%c0_12, %c0_13] : memref<1x128xf32, #tpu.memory_space<vmem>>, vector<1x128xf32>
      %14 = vector.broadcast %13 : vector<1x128xf32> to vector<8x128xf32>
      %15 = arith.addf %12, %14 : vector<8x128xf32>
      %c0_14 = arith.constant 0 : index
      %c0_15 = arith.constant 0 : index
      %16 = vector.load %arg6[%c0_14, %c0_15] : memref<8x128xf32, #tpu.memory_space<vmem>>, vector<8x128xf32>
      tpu.vector_store %arg6[%c0_14, %c0_15], %15 {strides = array<i32>} : memref<8x128xf32, #tpu.memory_space<vmem>>, vector<8x128xf32>,
    } else {
    }
    return
  }
  func.func @transform_0(%arg0: i32, %arg1: i32, %arg2: i32) -> (i32, i32) {
    %c0_i32 = arith.constant 0 : i32
    return %arg0, %arg2 : i32, i32
  }
  func.func @transform_1(%arg0: i32, %arg1: i32, %arg2: i32) -> (i32, i32) {
    %c0_i32 = arith.constant 0 : i32
    return %arg2, %arg1 : i32, i32
  }
  func.func @transform_2(%arg0: i32, %arg1: i32, %arg2: i32) -> (i32, i32) {
    %c0_i32 = arith.constant 0 : i32
    %c0_i32_0 = arith.constant 0 : i32
    return %c0_i32, %arg1 : i32, i32
  }
  func.func @transform_3(%arg0: i32, %arg1: i32, %arg2: i32) -> (i32, i32) {
    %c0_i32 = arith.constant 0 : i32
    return %arg0, %arg1 : i32, i32
  }
}

</mosaic_0001>

<llo_original>
// kernel: alexnet_forward.7
$region0: #{alexnet_forward.7}
  #allocation0 [shape = 'u32[]', space=smem, size = 0x4, offset = 0x4, fixed_abs, tag = 'smem constant byte address 0x4 - core index']
  #allocation1 [shape = 'u32[144,128]{1,0:T(1,128)}', space=vmem, size = 0x12000, scoped, tag = 'internal scratch']
  #allocation2 [shape = 'f32[128,128]{1,0:T(8,128)}', space=vmem, size = 0x10000, scoped, tag = 'scratch operand']
  %s0 = inlined_call_operand.vmem [shape: bf16[512,128], index: 0, kind: input, shape index: {}]
  %s1 = inlined_call_operand.vmem [shape: bf16[128,128], index: 1, kind: input, shape index: {}]
  %s2 = inlined_call_operand.vmem [shape: f32[1,128], index: 2, kind: input, shape index: {}]
  %s3 = inlined_call_operand.vmem [shape: f32[512,128], index: 3, kind: output, shape index: {}]
  %s4 = sld [smem:[#allocation0]]
  $region53: #{alexnet_forward.7} parent=0
    _
  %s6 = ssub.s32 1, %s4
  %s7 = scalar_select 0, %s6, %s4
  loop: start=0, step=1, limit=6
  $region2: #{alexnet_forward.7} parent=0 // loop_pre_header
    _
  $region3: #{alexnet_forward.7} parent=0 // loop_header
    %s9 = sphi 0, %s13
    %p10 = scmp.ge.s32.totalorder %s9, 6
    %s16 = sphi 0, %s35
    %s17 = sphi 0, %s31
    %s18 = sphi 0, %s27
    %s19 = sphi 0, %s16
    %s20 = sphi 0, %s17
    %s21 = sphi 0, %s18
    %s22 = sphi 0, %s19
    %s23 = sphi 0, %s20
    %s24 = sphi 0, %s21
    %s40 = sphi 0, %s42
    %s43 = sphi 0, %s40
    %s44 = sphi 0, %s43
    %s60 = sphi 0, %s44
    %s68 = sphi 0, %s70
    %s71 = sphi 0, %s68
    %s72 = sphi 0, %s71
    %s88 = sphi 0, %s72
    %s94 = sphi 0, %s96
    %s97 = sphi 0, %s94
    %s98 = sphi 0, %s97
    %s114 = sphi 0, %s98
    %s122 = sphi 0, %s124
    %s125 = sphi 0, %s122
    %s126 = sphi 0, %s125
    %s142 = sphi 0, %s126
  $region4: #{alexnet_forward.7} parent=0 // loop_header_branch
    %12 = sbr.rel (%p10) target = $region8
  $region5: #{alexnet_forward.7} parent=0 // loop_body
    %s14 = ssub.s32 %s9, 1
    %s15 = ssub.s32 %s9, 2
    %s25 = sadd.s32 1, %s18
    %p26 = scmp.ge.s32.totalorder %s25, 1
    %s27 = scalar_select %p26, 0, %s25
    %s28 = sadd.s32 1, %s17
    %s29 = scalar_select %p26, %s28, %s17
    %p30 = scmp.ge.s32.totalorder %s29, 1
    %s31 = scalar_select %p30, 0, %s29
    %s32 = sadd.s32 1, %s16
    %s33 = scalar_select %p30, %s32, %s16
    %p34 = scmp.ge.s32.totalorder %s33, 4
    %s35 = scalar_select %p34, 0, %s33
    %s36 = ssub.s32 %s16, %s35
    %s37 = ssub.s32 %s18, %s27
    %s38 = sor.u32 %s36, %s37
    %p39 = scmp.eq.s32.totalorder %s38, 0
    %s41 = sadd.s32 %s40, 1
    %s42 = scalar_select %p39, %s40, %s41
    %p45 = pneg %p39
    %p46 = scmp.eq.s32.totalorder %s9, 3
    %p47 = por %p45, %p46
    %p48 = scmp.ne.s32.totalorder %s40, %s43
    %p49 = scmp.eq.s32.totalorder %s9, 0
    %p50 = por %p48, %p49
    %p51 = scmp.ne.s32.totalorder %s40, %s43
    %p52 = scmp.eq.s32.totalorder %s14, 3
    %p53 = por %p51, %p52
    %p54 = scmp.ne.s32.totalorder %s43, %s44
    %p55 = scmp.eq.s32.totalorder %s14, 0
    %p56 = por %p54, %p55
    %p57 = scmp.ne.s32.totalorder %s43, %s44
    %p58 = scmp.eq.s32.totalorder %s15, 3
    %p59 = por %p57, %p58
    %p61 = scmp.ne.s32.totalorder %s44, %s60
    %p62 = scmp.eq.s32.totalorder %s15, 0
    %p63 = por %p61, %p62
    %s64 = ssub.s32 %s18, %s27
    %s65 = ssub.s32 %s17, %s31
    %s66 = sor.u32 %s64, %s65
    %p67 = scmp.eq.s32.totalorder %s66, 0
    %s69 = sadd.s32 %s68, 1
    %s70 = scalar_select %p67, %s68, %s69
    %p73 = pneg %p67
    %p74 = scmp.eq.s32.totalorder %s9, 3
    %p75 = por %p73, %p74
    %p76 = scmp.ne.s32.totalorder %s68, %s71
    %p77 = scmp.eq.s32.totalorder %s9, 0
    %p78 = por %p76, %p77
    %p79 = scmp.ne.s32.totalorder %s68, %s71
    %p80 = scmp.eq.s32.totalorder %s14, 3
    %p81 = por %p79, %p80
    %p82 = scmp.ne.s32.totalorder %s71, %s72
    %p83 = scmp.eq.s32.totalorder %s14, 0
    %p84 = por %p82, %p83
    %p85 = scmp.ne.s32.totalorder %s71, %s72
    %p86 = scmp.eq.s32.totalorder %s15, 3
    %p87 = por %p85, %p86
    %p89 = scmp.ne.s32.totalorder %s72, %s88
    %p90 = scmp.eq.s32.totalorder %s15, 0
    %p91 = por %p89, %p90
    %s92 = ssub.s32 %s17, %s31
    %p93 = scmp.eq.s32.totalorder %s92, 0
    %s95 = sadd.s32 %s94, 1
    %s96 = scalar_select %p93, %s94, %s95
    %p99 = pneg %p93
    %p100 = scmp.eq.s32.totalorder %s9, 3
    %p101 = por %p99, %p100
    %p102 = scmp.ne.s32.totalorder %s94, %s97
    %p103 = scmp.eq.s32.totalorder %s9, 0
    %p104 = por %p102, %p103
    %p105 = scmp.ne.s32.totalorder %s94, %s97
    %p106 = scmp.eq.s32.totalorder %s14, 3
    %p107 = por %p105, %p106
    %p108 = scmp.ne.s32.totalorder %s97, %s98
    %p109 = scmp.eq.s32.totalorder %s14, 0
    %p110 = por %p108, %p109
    %p111 = scmp.ne.s32.totalorder %s97, %s98
    %p112 = scmp.eq.s32.totalorder %s15, 3
    %p113 = por %p111, %p112
    %p115 = scmp.ne.s32.totalorder %s98, %s114
    %p116 = scmp.eq.s32.totalorder %s15, 0
    %p117 = por %p115, %p116
    %s118 = ssub.s32 %s16, %s35
    %s119 = ssub.s32 %s17, %s31
    %s120 = sor.u32 %s118, %s119
    %p121 = scmp.eq.s32.totalorder %s120, 0
    %s123 = sadd.s32 %s122, 1
    %s124 = scalar_select %p121, %s122, %s123
    %p127 = pneg %p121
    %p128 = scmp.eq.s32.totalorder %s9, 3
    %p129 = por %p127, %p128
    %p130 = scmp.ne.s32.totalorder %s122, %s125
    %p131 = scmp.eq.s32.totalorder %s9, 0
    %p132 = por %p130, %p131
    %p133 = scmp.ne.s32.totalorder %s122, %s125
    %p134 = scmp.eq.s32.totalorder %s14, 3
    %p135 = por %p133, %p134
    %p136 = scmp.ne.s32.totalorder %s125, %s126
    %p137 = scmp.eq.s32.totalorder %s14, 0
    %p138 = por %p136, %p137
    %p139 = scmp.ne.s32.totalorder %s125, %s126
    %p140 = scmp.eq.s32.totalorder %s15, 3
    %p141 = por %p139, %p140
    %p143 = scmp.ne.s32.totalorder %s126, %s142
    %p144 = scmp.eq.s32.totalorder %s15, 0
    %p145 = por %p143, %p144
    %p146 = scmp.le.s32.totalorder 1, %s9
    %p147 = scmp.lt.s32.totalorder %s9, 5
    %p148 = pnand %p146, %p147
    %p149 = pneg %p148
    // Predicated region
    $region9: #{alexnet_forward.7} parent=5 // pred_check
      _
    $region10: #{alexnet_forward.7} parent=5 // pred_check_branch
      %151 = sbr.rel (%p148) target = $region12
    $region11: #{alexnet_forward.7} parent=5 // pred_region
      %s152 = ssub.s32 %s9, 1
      // Predicated region
      $region13: #{alexnet_forward.7} parent=11 // pred_check
        %p153 = pneg %p84
      $region14: #{alexnet_forward.7} parent=11 // pred_check_branch
        %155 = sbr.rel (%p153) target = $region16
      $region15: #{alexnet_forward.7} parent=11 // pred_region
        %s156 = smul.u32 16, %s21
        %p157 = scmp.lt.s32.totalorder %s156, 15
        %s158 = scalar_select %p157, %s156, 15
        %p159 = scmp.lt.s32.totalorder %s20, 0
        %s160 = scalar_select %p159, %s20, 0
        %s161 = sadd.s32 %s160, %s158
        %s162 = smul.addr %s161, 4
        %s163 = scalar_lea.vmem %s1, %s162
        %s164 = smul.u32 16, %s21
      $region16: #{alexnet_forward.7} parent=11 // pred_fallthru
        _
      // Predicated region
      $region17: #{alexnet_forward.7} parent=11 // pred_check
        %p165 = pneg %p110
      $region18: #{alexnet_forward.7} parent=11 // pred_check_branch
        %167 = sbr.rel (%p165) target = $region20
      $region19: #{alexnet_forward.7} parent=11 // pred_region
        %p168 = scmp.lt.s32.totalorder %s20, 0
        %s169 = scalar_select %p168, %s20, 0
        %s170 = scalar_lea.vmem %s2, %s169
      $region20: #{alexnet_forward.7} parent=11 // pred_fallthru
        _
    $region12: #{alexnet_forward.7} parent=5 // pred_fallthru
      _
    %p171 = scmp.lt.s32.totalorder %s9, 4
    // Predicated region
    $region21: #{alexnet_forward.7} parent=5 // pred_check
      %p172 = pneg %p171
    $region22: #{alexnet_forward.7} parent=5 // pred_check_branch
      %174 = sbr.rel (%p172) target = $region24
    $region23: #{alexnet_forward.7} parent=5 // pred_region
      // Predicated region
      $region25: #{alexnet_forward.7} parent=23 // pred_check
        %p175 = pneg %p50
      $region26: #{alexnet_forward.7} parent=23 // pred_check_branch
        %177 = sbr.rel (%p175) target = $region28
      $region27: #{alexnet_forward.7} parent=23 // pred_region
        %s178 = smul.u32 16, %s16
        %p179 = scmp.lt.s32.totalorder %s178, 63
        %s180 = scalar_select %p179, %s178, 63
        %p181 = scmp.lt.s32.totalorder %s18, 0
        %s182 = scalar_select %p181, %s18, 0
        %s183 = sadd.s32 %s182, %s180
        %s184 = smul.addr %s183, 4
        %s185 = scalar_lea.vmem %s0, %s184
        %s186 = smul.u32 16, %s16
      $region28: #{alexnet_forward.7} parent=23 // pred_fallthru
        _
    $region24: #{alexnet_forward.7} parent=5 // pred_fallthru
      _
    %p187 = scmp.le.s32.totalorder 1, %s9
    %p188 = scmp.lt.s32.totalorder %s9, 5
    %p189 = pnand %p187, %p188
    %p190 = pneg %p189
    // Predicated region
    $region29: #{alexnet_forward.7} parent=5 // pred_check
      _
    $region30: #{alexnet_forward.7} parent=5 // pred_check_branch
      %192 = sbr.rel (%p189) target = $region32
    $region31: #{alexnet_forward.7} parent=5 // pred_region
      %s193 = ssub.s32 %s9, 1
      %s194 = smul.u32 16, %s19
      %p195 = scmp.lt.s32.totalorder %s194, 63
      %s196 = scalar_select %p195, %s194, 63
      %p197 = scmp.lt.s32.totalorder %s21, 0
      %s198 = scalar_select %p197, %s21, 0
      %s199 = sadd.s32 %s198, %s196
      %s200 = smul.addr %s199, 4
      %s201 = scalar_lea.vmem %s0, %s200
      %p202 = pneg %p56
      %p203 = pneg %p53
      %s204 = smul.u32 16, %s21
      %p205 = scmp.lt.s32.totalorder %s204, 15
      %s206 = scalar_select %p205, %s204, 15
      %p207 = scmp.lt.s32.totalorder %s20, 0
      %s208 = scalar_select %p207, %s20, 0
      %s209 = sadd.s32 %s208, %s206
      %s210 = smul.addr %s209, 4
      %s211 = scalar_lea.vmem %s1, %s210
      %p212 = pneg %p84
      %p213 = pneg %p81
      %p214 = scmp.lt.s32.totalorder %s20, 0
      %s215 = scalar_select %p214, %s20, 0
      %s216 = scalar_lea.vmem %s2, %s215
      %p217 = pneg %p110
      %p218 = pneg %p107
      %p219 = pneg %p138
      %p220 = pneg %p135
      %s221 = smul.u32 16, %s19
      %p222 = scmp.lt.s32.totalorder %s221, 63
      %s223 = scalar_select %p222, %s221, 63
      %p224 = scmp.lt.s32.totalorder %s20, 0
      %s225 = scalar_select %p224, %s20, 0
      %s226 = sadd.s32 %s225, %s223
      %s227 = smul.addr %s226, 8
      %s228 = scalar_lea.vmem %s3, %s227
      %s229 = smul.u32 16, %s19
      %p230 = scmp.lt.s32.totalorder %s229, 63
      %s231 = scalar_select %p230, %s229, 63
      %p232 = scmp.lt.s32.totalorder %s21, 0
      %s233 = scalar_select %p232, %s21, 0
      %s234 = sadd.s32 %s233, %s231
      %s235 = smul.addr %s234, 4
      %s236 = scalar_lea.vmem %s0, %s235
      %s237 = smul.u32 16, %s19
      %s238 = smul.u32 16, %s21
      %p239 = scmp.lt.s32.totalorder %s238, 15
      %s240 = scalar_select %p239, %s238, 15
      %p241 = scmp.lt.s32.totalorder %s20, 0
      %s242 = scalar_select %p241, %s20, 0
      %s243 = sadd.s32 %s242, %s240
      %s244 = smul.addr %s243, 4
      %s245 = scalar_lea.vmem %s1, %s244
      %s246 = smul.u32 16, %s21
      %p247 = scmp.lt.s32.totalorder %s20, 0
      %s248 = scalar_select %p247, %s20, 0
      %s249 = scalar_lea.vmem %s2, %s248
      %s250 = smul.u32 16, %s19
      %p251 = scmp.lt.s32.totalorder %s250, 63
      %s252 = scalar_select %p251, %s250, 63
      %p253 = scmp.lt.s32.totalorder %s20, 0
      %s254 = scalar_select %p253, %s20, 0
      %s255 = sadd.s32 %s254, %s252
      %s256 = smul.addr %s255, 8
      %s257 = scalar_lea.vmem %s3, %s256
      %s258 = smul.u32 16, %s19
      %p260 = scmp.eq.s32.totalorder %s21, 0
      // Predicated region
      $region33: #{alexnet_forward.7} parent=31 // pred_check
        %p261 = pneg %p260
      $region34: #{alexnet_forward.7} parent=31 // pred_check_branch
        %263 = sbr.rel (%p261) target = $region36
      $region35: #{alexnet_forward.7} parent=31 // pred_region
        %264 = vst [vmem:[#allocation2] sm:$0xff] 0.0
        %265 = vst [vmem:[#allocation2 + $0x8] sm:$0xff] 0.0
        %266 = vst [vmem:[#allocation2 + $0x10] sm:$0xff] 0.0
        %267 = vst [vmem:[#allocation2 + $0x18] sm:$0xff] 0.0
        %268 = vst [vmem:[#allocation2 + $0x20] sm:$0xff] 0.0
        %269 = vst [vmem:[#allocation2 + $0x28] sm:$0xff] 0.0
        %270 = vst [vmem:[#allocation2 + $0x30] sm:$0xff] 0.0
        %271 = vst [vmem:[#allocation2 + $0x38] sm:$0xff] 0.0
        %272 = vst [vmem:[#allocation2 + $0x40] sm:$0xff] 0.0
        %273 = vst [vmem:[#allocation2 + $0x48] sm:$0xff] 0.0
        %274 = vst [vmem:[#allocation2 + $0x50] sm:$0xff] 0.0
        %275 = vst [vmem:[#allocation2 + $0x58] sm:$0xff] 0.0
        %276 = vst [vmem:[#allocation2 + $0x60] sm:$0xff] 0.0
        %277 = vst [vmem:[#allocation2 + $0x68] sm:$0xff] 0.0
        %278 = vst [vmem:[#allocation2 + $0x70] sm:$0xff] 0.0
        %279 = vst [vmem:[#allocation2 + $0x78] sm:$0xff] 0.0
      $region36: #{alexnet_forward.7} parent=31 // pred_fallthru
        _
      %v280 = vld [vmem:[#allocation2] sm:$0xff]
      %v281 = vld [vmem:[#allocation2 + $0x8] sm:$0xff]
      %v282 = vld [vmem:[#allocation2 + $0x10] sm:$0xff]
      %v283 = vld [vmem:[#allocation2 + $0x18] sm:$0xff]
      %v284 = vld [vmem:[#allocation2 + $0x20] sm:$0xff]
      %v285 = vld [vmem:[#allocation2 + $0x28] sm:$0xff]
      %v286 = vld [vmem:[#allocation2 + $0x30] sm:$0xff]
      %v287 = vld [vmem:[#allocation2 + $0x38] sm:$0xff]
      %v288 = vld [vmem:[#allocation2 + $0x40] sm:$0xff]
      %v289 = vld [vmem:[#allocation2 + $0x48] sm:$0xff]
      %v290 = vld [vmem:[#allocation2 + $0x50] sm:$0xff]
      %v291 = vld [vmem:[#allocation2 + $0x58] sm:$0xff]
      %v292 = vld [vmem:[#allocation2 + $0x60] sm:$0xff]
      %v293 = vld [vmem:[#allocation2 + $0x68] sm:$0xff]
      %v294 = vld [vmem:[#allocation2 + $0x70] sm:$0xff]
      %v295 = vld [vmem:[#allocation2 + $0x78] sm:$0xff]
      %v296 = vld [vmem:[%s236] sm:$0xf]
      %v297 = vld [vmem:[%s236 + $0x4] sm:$0xf]
      %v298 = vld [vmem:[%s236 + $0x8] sm:$0xf]
      %v299 = vld [vmem:[%s236 + $0xc] sm:$0xf]
      %v300 = vld [vmem:[%s236 + $0x10] sm:$0xf]
      %v301 = vld [vmem:[%s236 + $0x14] sm:$0xf]
      %v302 = vld [vmem:[%s236 + $0x18] sm:$0xf]
      %v303 = vld [vmem:[%s236 + $0x1c] sm:$0xf]
      %v304 = vld [vmem:[%s236 + $0x20] sm:$0xf]
      %v305 = vld [vmem:[%s236 + $0x24] sm:$0xf]
      %v306 = vld [vmem:[%s236 + $0x28] sm:$0xf]
      %v307 = vld [vmem:[%s236 + $0x2c] sm:$0xf]
      %v308 = vld [vmem:[%s236 + $0x30] sm:$0xf]
      %v309 = vld [vmem:[%s236 + $0x34] sm:$0xf]
      %v310 = vld [vmem:[%s236 + $0x38] sm:$0xf]
      %v311 = vld [vmem:[%s236 + $0x3c] sm:$0xf]
      %v312 = vld [vmem:[%s245] sm:$0xf]
      %v313 = vld [vmem:[%s245 + $0x4] sm:$0xf]
      %v314 = vld [vmem:[%s245 + $0x8] sm:$0xf]
      %v315 = vld [vmem:[%s245 + $0xc] sm:$0xf]
      %v316 = vld [vmem:[%s245 + $0x10] sm:$0xf]
      %v317 = vld [vmem:[%s245 + $0x14] sm:$0xf]
      %v318 = vld [vmem:[%s245 + $0x18] sm:$0xf]
      %v319 = vld [vmem:[%s245 + $0x1c] sm:$0xf]
      %v320 = vld [vmem:[%s245 + $0x20] sm:$0xf]
      %v321 = vld [vmem:[%s245 + $0x24] sm:$0xf]
      %v322 = vld [vmem:[%s245 + $0x28] sm:$0xf]
      %v323 = vld [vmem:[%s245 + $0x2c] sm:$0xf]
      %v324 = vld [vmem:[%s245 + $0x30] sm:$0xf]
      %v325 = vld [vmem:[%s245 + $0x34] sm:$0xf]
      %v326 = vld [vmem:[%s245 + $0x38] sm:$0xf]
      %v327 = vld [vmem:[%s245 + $0x3c] sm:$0xf]
      %v344 = vunpack.c.l.b16 %v296
      %v345 = vunpack.c.l.b16 %v297
      %v346 = vunpack.c.l.b16 %v298
      %v347 = vunpack.c.l.b16 %v299
      %v348 = vunpack.c.l.b16 %v300
      %v349 = vunpack.c.l.b16 %v301
      %v350 = vunpack.c.l.b16 %v302
      %v351 = vunpack.c.l.b16 %v303
      %v352 = vunpack.c.l.b16 %v304
      %v353 = vunpack.c.l.b16 %v305
      %v354 = vunpack.c.l.b16 %v306
      %v355 = vunpack.c.l.b16 %v307
      %v356 = vunpack.c.l.b16 %v308
      %v357 = vunpack.c.l.b16 %v309
      %v358 = vunpack.c.l.b16 %v310
      %v359 = vunpack.c.l.b16 %v311
      %v360 = vpack.c.b16 %v345, %v344
      %v361 = vpack.c.b16 %v347, %v346
      %v362 = vpack.c.b16 %v349, %v348
      %v363 = vpack.c.b16 %v351, %v350
      %v364 = vpack.c.b16 %v353, %v352
      %v365 = vpack.c.b16 %v355, %v354
      %v366 = vpack.c.b16 %v357, %v356
      %v367 = vpack.c.b16 %v359, %v358
      %v392 = vunpack.c.l.b16 %v312
      %v393 = vunpack.c.l.b16 %v313
      %v394 = vunpack.c.l.b16 %v314
      %v395 = vunpack.c.l.b16 %v315
      %v396 = vunpack.c.l.b16 %v316
      %v397 = vunpack.c.l.b16 %v317
      %v398 = vunpack.c.l.b16 %v318
      %v399 = vunpack.c.l.b16 %v319
      %v400 = vunpack.c.l.b16 %v320
      %v401 = vunpack.c.l.b16 %v321
      %v402 = vunpack.c.l.b16 %v322
      %v403 = vunpack.c.l.b16 %v323
      %v404 = vunpack.c.l.b16 %v324
      %v405 = vunpack.c.l.b16 %v325
      %v406 = vunpack.c.l.b16 %v326
      %v407 = vunpack.c.l.b16 %v327
      %v408 = vpack.c.b16 %v393, %v392
      %v409 = vpack.c.b16 %v395, %v394
      %v410 = vpack.c.b16 %v397, %v396
      %v411 = vpack.c.b16 %v399, %v398
      %v412 = vpack.c.b16 %v401, %v400
      %v413 = vpack.c.b16 %v403, %v402
      %v414 = vpack.c.b16 %v405, %v404
      %v415 = vpack.c.b16 %v407, %v406
      %424 = vmatprep.subr.bf16.mxu0 0
      %425 = vmatpush1.bf16.msra.mxu0 %v408
      %426 = vmatprep.subr.bf16.mxu0 0
      %427 = vmatpush1.bf16.msra.mxu0 %v409
      %428 = vmatprep.subr.bf16.mxu0 0
      %429 = vmatpush1.bf16.msra.mxu0 %v410
      %430 = vmatprep.subr.bf16.mxu0 0
      %431 = vmatpush1.bf16.msra.mxu0 %v411
      %432 = vmatprep.subr.bf16.mxu0 0
      %433 = vmatpush1.bf16.msra.mxu0 %v412
      %434 = vmatprep.subr.bf16.mxu0 0
      %435 = vmatpush1.bf16.msra.mxu0 %v413
      %436 = vmatprep.subr.bf16.mxu0 0
      %437 = vmatpush1.bf16.msra.mxu0 %v414
      %438 = vmatprep.subr.bf16.mxu0 0
      %439 = vmatpush1.bf16.msra.mxu0 %v415
      %440 = vmatprep.subr.bf16.mxu0 0
      %441 = vmatpush1.bf16.msra.mxu0 0
      %442 = vmatprep.subr.bf16.mxu0 0
      %443 = vmatpush1.bf16.msra.mxu0 0
      %444 = vmatprep.subr.bf16.mxu0 0
      %445 = vmatpush1.bf16.msra.mxu0 0
      %446 = vmatprep.subr.bf16.mxu0 0
      %447 = vmatpush1.bf16.msra.mxu0 0
      %448 = vmatprep.subr.bf16.mxu0 0
      %449 = vmatpush1.bf16.msra.mxu0 0
      %450 = vmatprep.subr.bf16.mxu0 0
      %451 = vmatpush1.bf16.msra.mxu0 0
      %452 = vmatprep.subr.bf16.mxu0 0
      %453 = vmatpush1.bf16.msra.mxu0 0
      %454 = vmatprep.subr.bf16.mxu0 0
      %455 = vmatpush1.bf16.msra.mxu0 0
      %456 = vmatprep.mubr.bf16.mxu0 0
      %457 = vmatmul.mubr.bf16.gmra.mrb[0].mxu0 %v360
      %v458 = vpop.f32.mrb[0].mxu0
      %v459 = vadd.f32 0.0, %v458
      %v460 = vpop.f32.mrb[0].mxu0
      %v461 = vpop.f32.mrb[0].mxu0
      %v462 = vadd.f32 0.0, %v461
      %v463 = vpop.f32.mrb[0].mxu0
      %464 = vmatprep.mubr.bf16.mxu0 0
      %465 = vmatmul.mubr.bf16.gmra.mrb[0].mxu0 %v361
      %v466 = vpop.f32.mrb[0].mxu0
      %v467 = vadd.f32 0.0, %v466
      %v468 = vpop.f32.mrb[0].mxu0
      %v469 = vpop.f32.mrb[0].mxu0
      %v470 = vadd.f32 0.0, %v469
      %v471 = vpop.f32.mrb[0].mxu0
      %472 = vmatprep.mubr.bf16.mxu0 0
      %473 = vmatmul.mubr.bf16.gmra.mrb[0].mxu0 %v362
      %v474 = vpop.f32.mrb[0].mxu0
      %v475 = vadd.f32 0.0, %v474
      %v476 = vpop.f32.mrb[0].mxu0
      %v477 = vpop.f32.mrb[0].mxu0
      %v478 = vadd.f32 0.0, %v477
      %v479 = vpop.f32.mrb[0].mxu0
      %480 = vmatprep.mubr.bf16.mxu0 0
      %481 = vmatmul.mubr.bf16.gmra.mrb[0].mxu0 %v363
      %v482 = vpop.f32.mrb[0].mxu0
      %v483 = vadd.f32 0.0, %v482
      %v484 = vpop.f32.mrb[0].mxu0
      %v485 = vpop.f32.mrb[0].mxu0
      %v486 = vadd.f32 0.0, %v485
      %v487 = vpop.f32.mrb[0].mxu0
      %488 = vmatprep.mubr.bf16.mxu0 0
      %489 = vmatmul.mubr.bf16.gmra.mrb[0].mxu0 %v364
      %v490 = vpop.f32.mrb[0].mxu0
      %v491 = vadd.f32 0.0, %v490
      %v492 = vpop.f32.mrb[0].mxu0
      %v493 = vpop.f32.mrb[0].mxu0
      %v494 = vadd.f32 0.0, %v493
      %v495 = vpop.f32.mrb[0].mxu0
      %496 = vmatprep.mubr.bf16.mxu0 0
      %497 = vmatmul.mubr.bf16.gmra.mrb[0].mxu0 %v365
      %v498 = vpop.f32.mrb[0].mxu0
      %v499 = vadd.f32 0.0, %v498
      %v500 = vpop.f32.mrb[0].mxu0
      %v501 = vpop.f32.mrb[0].mxu0
      %v502 = vadd.f32 0.0, %v501
      %v503 = vpop.f32.mrb[0].mxu0
      %504 = vmatprep.mubr.bf16.mxu0 0
      %505 = vmatmul.mubr.bf16.gmra.mrb[0].mxu0 %v366
      %v506 = vpop.f32.mrb[0].mxu0
      %v507 = vadd.f32 0.0, %v506
      %v508 = vpop.f32.mrb[0].mxu0
      %v509 = vpop.f32.mrb[0].mxu0
      %v510 = vadd.f32 0.0, %v509
      %v511 = vpop.f32.mrb[0].mxu0
      %512 = vmatprep.mubr.bf16.mxu0 0
      %513 = vmatmul.mubr.bf16.gmra.mrb[0].mxu0 %v367
      %v514 = vpop.f32.mrb[0].mxu0
      %v515 = vadd.f32 0.0, %v514
      %v516 = vpop.f32.mrb[0].mxu0
      %v517 = vpop.f32.mrb[0].mxu0
      %v518 = vadd.f32 0.0, %v517
      %v519 = vpop.f32.mrb[0].mxu0
      %520 = vdwg.mxu0
      %v521 = vadd.f32 %v280, %v459
      %v522 = vadd.f32 %v281, %v462
      %v523 = vadd.f32 %v282, %v467
      %v524 = vadd.f32 %v283, %v470
      %v525 = vadd.f32 %v284, %v475
      %v526 = vadd.f32 %v285, %v478
      %v527 = vadd.f32 %v286, %v483
      %v528 = vadd.f32 %v287, %v486
      %v529 = vadd.f32 %v288, %v491
      %v530 = vadd.f32 %v289, %v494
      %v531 = vadd.f32 %v290, %v499
      %v532 = vadd.f32 %v291, %v502
      %v533 = vadd.f32 %v292, %v507
      %v534 = vadd.f32 %v293, %v510
      %v535 = vadd.f32 %v294, %v515
      %v536 = vadd.f32 %v295, %v518
      %537 = vst [vmem:[#allocation2] sm:$0xff] %v521
      %538 = vst [vmem:[#allocation2 + $0x8] sm:$0xff] %v522
      %539 = vst [vmem:[#allocation2 + $0x10] sm:$0xff] %v523
      %540 = vst [vmem:[#allocation2 + $0x18] sm:$0xff] %v524
      %541 = vst [vmem:[#allocation2 + $0x20] sm:$0xff] %v525
      %542 = vst [vmem:[#allocation2 + $0x28] sm:$0xff] %v526
      %543 = vst [vmem:[#allocation2 + $0x30] sm:$0xff] %v527
      %544 = vst [vmem:[#allocation2 + $0x38] sm:$0xff] %v528
      %545 = vst [vmem:[#allocation2 + $0x40] sm:$0xff] %v529
      %546 = vst [vmem:[#allocation2 + $0x48] sm:$0xff] %v530
      %547 = vst [vmem:[#allocation2 + $0x50] sm:$0xff] %v531
      %548 = vst [vmem:[#allocation2 + $0x58] sm:$0xff] %v532
      %549 = vst [vmem:[#allocation2 + $0x60] sm:$0xff] %v533
      %550 = vst [vmem:[#allocation2 + $0x68] sm:$0xff] %v534
      %551 = vst [vmem:[#allocation2 + $0x70] sm:$0xff] %v535
      %552 = vst [vmem:[#allocation2 + $0x78] sm:$0xff] %v536
      // Predicated region
      $region37: #{alexnet_forward.7} parent=31 // pred_check
        %p553 = pneg %p260
      $region38: #{alexnet_forward.7} parent=31 // pred_check_branch
        %555 = sbr.rel (%p553) target = $region40
      $region39: #{alexnet_forward.7} parent=31 // pred_region
        %v556 = vld [vmem:[#allocation2] sm:$0xff]
        %v557 = vld [vmem:[#allocation2 + $0x8] sm:$0xff]
        %v558 = vld [vmem:[#allocation2 + $0x10] sm:$0xff]
        %v559 = vld [vmem:[#allocation2 + $0x18] sm:$0xff]
        %v560 = vld [vmem:[#allocation2 + $0x20] sm:$0xff]
        %v561 = vld [vmem:[#allocation2 + $0x28] sm:$0xff]
        %v562 = vld [vmem:[#allocation2 + $0x30] sm:$0xff]
        %v563 = vld [vmem:[#allocation2 + $0x38] sm:$0xff]
        %v564 = vld [vmem:[#allocation2 + $0x40] sm:$0xff]
        %v565 = vld [vmem:[#allocation2 + $0x48] sm:$0xff]
        %v566 = vld [vmem:[#allocation2 + $0x50] sm:$0xff]
        %v567 = vld [vmem:[#allocation2 + $0x58] sm:$0xff]
        %v568 = vld [vmem:[#allocation2 + $0x60] sm:$0xff]
        %v569 = vld [vmem:[#allocation2 + $0x68] sm:$0xff]
        %v570 = vld [vmem:[#allocation2 + $0x70] sm:$0xff]
        %v571 = vld [vmem:[#allocation2 + $0x78] sm:$0xff]
        %v572 = vld [vmem:[%s249] sm:$0x1]
        %v574 = vlaneseq
        %v575 = vshrl.u32 %v574, 7
        %v576 = vsub.s32 0, %v575
        %v577 = vrot.slane %v572, %v576
        %v579 = vadd.f32 %v556, %v577
        %v580 = vadd.f32 %v557, %v577
        %v581 = vadd.f32 %v558, %v577
        %v582 = vadd.f32 %v559, %v577
        %v583 = vadd.f32 %v560, %v577
        %v584 = vadd.f32 %v561, %v577
        %v585 = vadd.f32 %v562, %v577
        %v586 = vadd.f32 %v563, %v577
        %v587 = vadd.f32 %v564, %v577
        %v588 = vadd.f32 %v565, %v577
        %v589 = vadd.f32 %v566, %v577
        %v590 = vadd.f32 %v567, %v577
        %v591 = vadd.f32 %v568, %v577
        %v592 = vadd.f32 %v569, %v577
        %v593 = vadd.f32 %v570, %v577
        %v594 = vadd.f32 %v571, %v577
        %v595 = vmax.f32 %v579, 0.0
        %v596 = vmax.f32 %v580, 0.0
        %v597 = vmax.f32 %v581, 0.0
        %v598 = vmax.f32 %v582, 0.0
        %v599 = vmax.f32 %v583, 0.0
        %v600 = vmax.f32 %v584, 0.0
        %v601 = vmax.f32 %v585, 0.0
        %v602 = vmax.f32 %v586, 0.0
        %v603 = vmax.f32 %v587, 0.0
        %v604 = vmax.f32 %v588, 0.0
        %v605 = vmax.f32 %v589, 0.0
        %v606 = vmax.f32 %v590, 0.0
        %v607 = vmax.f32 %v591, 0.0
        %v608 = vmax.f32 %v592, 0.0
        %v609 = vmax.f32 %v593, 0.0
        %v610 = vmax.f32 %v594, 0.0
        %611 = vst [vmem:[%s257] sm:$0xff] %v595
        %612 = vst [vmem:[%s257 + $0x8] sm:$0xff] %v596
        %613 = vst [vmem:[%s257 + $0x10] sm:$0xff] %v597
        %614 = vst [vmem:[%s257 + $0x18] sm:$0xff] %v598
        %615 = vst [vmem:[%s257 + $0x20] sm:$0xff] %v599
        %616 = vst [vmem:[%s257 + $0x28] sm:$0xff] %v600
        %617 = vst [vmem:[%s257 + $0x30] sm:$0xff] %v601
        %618 = vst [vmem:[%s257 + $0x38] sm:$0xff] %v602
        %619 = vst [vmem:[%s257 + $0x40] sm:$0xff] %v603
        %620 = vst [vmem:[%s257 + $0x48] sm:$0xff] %v604
        %621 = vst [vmem:[%s257 + $0x50] sm:$0xff] %v605
        %622 = vst [vmem:[%s257 + $0x58] sm:$0xff] %v606
        %623 = vst [vmem:[%s257 + $0x60] sm:$0xff] %v607
        %624 = vst [vmem:[%s257 + $0x68] sm:$0xff] %v608
        %625 = vst [vmem:[%s257 + $0x70] sm:$0xff] %v609
        %626 = vst [vmem:[%s257 + $0x78] sm:$0xff] %v610
      $region40: #{alexnet_forward.7} parent=31 // pred_fallthru
        _
      %s627 = smul.u32 16, %s19
      %p628 = scmp.lt.s32.totalorder %s627, 63
      %s629 = scalar_select %p628, %s627, 63
      %p630 = scmp.lt.s32.totalorder %s20, 0
      %s631 = scalar_select %p630, %s20, 0
      %s632 = sadd.s32 %s631, %s629
      %s633 = smul.addr %s632, 8
      %s634 = scalar_lea.vmem %s3, %s633
      // Predicated region
      $region41: #{alexnet_forward.7} parent=31 // pred_check
        %p635 = pneg %p135
      $region42: #{alexnet_forward.7} parent=31 // pred_check_branch
        %637 = sbr.rel (%p635) target = $region44
      $region43: #{alexnet_forward.7} parent=31 // pred_region
        %s638 = smul.u32 16, %s19
      $region44: #{alexnet_forward.7} parent=31 // pred_fallthru
        _
    $region32: #{alexnet_forward.7} parent=5 // pred_fallthru
      _
    %p639 = scmp.le.s32.totalorder 2, %s9
    // Predicated region
    $region45: #{alexnet_forward.7} parent=5 // pred_check
      %p640 = pneg %p639
    $region46: #{alexnet_forward.7} parent=5 // pred_check_branch
      %642 = sbr.rel (%p640) target = $region48
    $region47: #{alexnet_forward.7} parent=5 // pred_region
      %s643 = ssub.s32 %s9, 2
      // Predicated region
      $region49: #{alexnet_forward.7} parent=47 // pred_check
        %p644 = pneg %p141
      $region50: #{alexnet_forward.7} parent=47 // pred_check_branch
        %646 = sbr.rel (%p644) target = $region52
      $region51: #{alexnet_forward.7} parent=47 // pred_region
        %s647 = smul.u32 16, %s22
        %p648 = scmp.lt.s32.totalorder %s647, 63
        %s649 = scalar_select %p648, %s647, 63
        %p650 = scmp.lt.s32.totalorder %s23, 0
        %s651 = scalar_select %p650, %s23, 0
        %s652 = sadd.s32 %s651, %s649
        %s653 = smul.addr %s652, 8
        %s654 = scalar_lea.vmem %s3, %s653
      $region52: #{alexnet_forward.7} parent=47 // pred_fallthru
        _
    $region48: #{alexnet_forward.7} parent=5 // pred_fallthru
      _
  $region6: #{alexnet_forward.7} parent=0 // loop_footer
    %s13 = sadd.s32 1, %s9
  $region7: #{alexnet_forward.7} parent=0 // loop_footer_branch
    %8 = sbr.rel target = $region3
  $region8: #{alexnet_forward.7} parent=0 // loop_exit
    _

// kernel: alexnet_forward.8
$region0: #{alexnet_forward.8}
  #allocation0 [shape = 'u32[]', space=smem, size = 0x4, offset = 0x4, fixed_abs, tag = 'smem constant byte address 0x4 - core index']
  #allocation1 [shape = 'u32[144,128]{1,0:T(1,128)}', space=vmem, size = 0x12000, scoped, tag = 'internal scratch']
  %s0 = inlined_call_operand.vmem [shape: f32[2,16,7,8], index: 0, kind: input, shape index: {}]
  %s1 = inlined_call_operand.vmem [shape: f32[2,16,7,8], index: 1, kind: input, shape index: {}]
  %s2 = inlined_call_operand.vmem [shape: f32[2,16,7,8], index: 2, kind: input, shape index: {}]
  %s3 = inlined_call_operand.vmem [shape: f32[2,7,7,8], index: 3, kind: output, shape index: {}]
  %s4 = sld [smem:[#allocation0]]
  $region45: #{alexnet_forward.8} parent=0
    _
  %s6 = ssub.s32 1, %s4
  %s7 = scalar_select 0, %s6, %s4
  loop: start=0, step=1, limit=4
  $region2: #{alexnet_forward.8} parent=0 // loop_pre_header
    _
  $region3: #{alexnet_forward.8} parent=0 // loop_header
    %s9 = sphi 0, %s13
    %p10 = scmp.ge.s32.totalorder %s9, 4
    %s19 = sphi 0, %s21
    %s22 = sphi 0, %s19
    %s23 = sphi 0, %s22
    %s39 = sphi 0, %s23
    %s45 = sphi 0, %s47
    %s48 = sphi 0, %s45
    %s49 = sphi 0, %s48
    %s65 = sphi 0, %s49
    %s71 = sphi 0, %s73
    %s74 = sphi 0, %s71
    %s75 = sphi 0, %s74
    %s91 = sphi 0, %s75
    %s97 = sphi 0, %s99
    %s100 = sphi 0, %s97
    %s101 = sphi 0, %s100
    %s117 = sphi 0, %s101
  $region4: #{alexnet_forward.8} parent=0 // loop_header_branch
    %12 = sbr.rel (%p10) target = $region8
  $region5: #{alexnet_forward.8} parent=0 // loop_body
    %s14 = ssub.s32 %s9, 1
    %s15 = ssub.s32 %s9, 2
    %s16 = sadd.s32 %s9, 1
    %s17 = ssub.s32 %s9, %s16
    %p18 = scmp.eq.s32.totalorder %s17, 0
    %s20 = sadd.s32 %s19, 1
    %s21 = scalar_select %p18, %s19, %s20
    %p24 = pneg %p18
    %p25 = scmp.eq.s32.totalorder %s9, 1
    %p26 = por %p24, %p25
    %p27 = scmp.ne.s32.totalorder %s19, %s22
    %p28 = scmp.eq.s32.totalorder %s9, 0
    %p29 = por %p27, %p28
    %p30 = scmp.ne.s32.totalorder %s19, %s22
    %p31 = scmp.eq.s32.totalorder %s14, 1
    %p32 = por %p30, %p31
    %p33 = scmp.ne.s32.totalorder %s22, %s23
    %p34 = scmp.eq.s32.totalorder %s14, 0
    %p35 = por %p33, %p34
    %p36 = scmp.ne.s32.totalorder %s22, %s23
    %p37 = scmp.eq.s32.totalorder %s15, 1
    %p38 = por %p36, %p37
    %p40 = scmp.ne.s32.totalorder %s23, %s39
    %p41 = scmp.eq.s32.totalorder %s15, 0
    %p42 = por %p40, %p41
    %s43 = ssub.s32 %s9, %s16
    %p44 = scmp.eq.s32.totalorder %s43, 0
    %s46 = sadd.s32 %s45, 1
    %s47 = scalar_select %p44, %s45, %s46
    %p50 = pneg %p44
    %p51 = scmp.eq.s32.totalorder %s9, 1
    %p52 = por %p50, %p51
    %p53 = scmp.ne.s32.totalorder %s45, %s48
    %p54 = scmp.eq.s32.totalorder %s9, 0
    %p55 = por %p53, %p54
    %p56 = scmp.ne.s32.totalorder %s45, %s48
    %p57 = scmp.eq.s32.totalorder %s14, 1
    %p58 = por %p56, %p57
    %p59 = scmp.ne.s32.totalorder %s48, %s49
    %p60 = scmp.eq.s32.totalorder %s14, 0
    %p61 = por %p59, %p60
    %p62 = scmp.ne.s32.totalorder %s48, %s49
    %p63 = scmp.eq.s32.totalorder %s15, 1
    %p64 = por %p62, %p63
    %p66 = scmp.ne.s32.totalorder %s49, %s65
    %p67 = scmp.eq.s32.totalorder %s15, 0
    %p68 = por %p66, %p67
    %s69 = ssub.s32 %s9, %s16
    %p70 = scmp.eq.s32.totalorder %s69, 0
    %s72 = sadd.s32 %s71, 1
    %s73 = scalar_select %p70, %s71, %s72
    %p76 = pneg %p70
    %p77 = scmp.eq.s32.totalorder %s9, 1
    %p78 = por %p76, %p77
    %p79 = scmp.ne.s32.totalorder %s71, %s74
    %p80 = scmp.eq.s32.totalorder %s9, 0
    %p81 = por %p79, %p80
    %p82 = scmp.ne.s32.totalorder %s71, %s74
    %p83 = scmp.eq.s32.totalorder %s14, 1
    %p84 = por %p82, %p83
    %p85 = scmp.ne.s32.totalorder %s74, %s75
    %p86 = scmp.eq.s32.totalorder %s14, 0
    %p87 = por %p85, %p86
    %p88 = scmp.ne.s32.totalorder %s74, %s75
    %p89 = scmp.eq.s32.totalorder %s15, 1
    %p90 = por %p88, %p89
    %p92 = scmp.ne.s32.totalorder %s75, %s91
    %p93 = scmp.eq.s32.totalorder %s15, 0
    %p94 = por %p92, %p93
    %s95 = ssub.s32 %s9, %s16
    %p96 = scmp.eq.s32.totalorder %s95, 0
    %s98 = sadd.s32 %s97, 1
    %s99 = scalar_select %p96, %s97, %s98
    %p102 = pneg %p96
    %p103 = scmp.eq.s32.totalorder %s9, 1
    %p104 = por %p102, %p103
    %p105 = scmp.ne.s32.totalorder %s97, %s100
    %p106 = scmp.eq.s32.totalorder %s9, 0
    %p107 = por %p105, %p106
    %p108 = scmp.ne.s32.totalorder %s97, %s100
    %p109 = scmp.eq.s32.totalorder %s14, 1
    %p110 = por %p108, %p109
    %p111 = scmp.ne.s32.totalorder %s100, %s101
    %p112 = scmp.eq.s32.totalorder %s14, 0
    %p113 = por %p111, %p112
    %p114 = scmp.ne.s32.totalorder %s100, %s101
    %p115 = scmp.eq.s32.totalorder %s15, 1
    %p116 = por %p114, %p115
    %p118 = scmp.ne.s32.totalorder %s101, %s117
    %p119 = scmp.eq.s32.totalorder %s15, 0
    %p120 = por %p118, %p119
    %p121 = scmp.le.s32.totalorder 1, %s9
    %p122 = scmp.lt.s32.totalorder %s9, 3
    %p123 = pnand %p121, %p122
    %p124 = pneg %p123
    // Predicated region
    $region9: #{alexnet_forward.8} parent=5 // pred_check
      _
    $region10: #{alexnet_forward.8} parent=5 // pred_check_branch
      %126 = sbr.rel (%p123) target = $region12
    $region11: #{alexnet_forward.8} parent=5 // pred_region
      %s127 = ssub.s32 %s9, 1
    $region12: #{alexnet_forward.8} parent=5 // pred_fallthru
      _
    %p128 = scmp.lt.s32.totalorder %s9, 2
    // Predicated region
    $region13: #{alexnet_forward.8} parent=5 // pred_check
      %p129 = pneg %p128
    $region14: #{alexnet_forward.8} parent=5 // pred_check_branch
      %131 = sbr.rel (%p129) target = $region16
    $region15: #{alexnet_forward.8} parent=5 // pred_region
      // Predicated region
      $region17: #{alexnet_forward.8} parent=15 // pred_check
        %p132 = pneg %p29
      $region18: #{alexnet_forward.8} parent=15 // pred_check_branch
        %134 = sbr.rel (%p132) target = $region20
      $region19: #{alexnet_forward.8} parent=15 // pred_region
        %p135 = scmp.lt.s32.totalorder %s9, 1
        %s136 = scalar_select %p135, %s9, 1
        %s137 = smul.addr %s136, 16
        %s138 = smul.addr %s137, 8
        %s139 = scalar_lea.vmem %s0, %s138
      $region20: #{alexnet_forward.8} parent=15 // pred_fallthru
        _
      // Predicated region
      $region21: #{alexnet_forward.8} parent=15 // pred_check
        %p140 = pneg %p55
      $region22: #{alexnet_forward.8} parent=15 // pred_check_branch
        %142 = sbr.rel (%p140) target = $region24
      $region23: #{alexnet_forward.8} parent=15 // pred_region
        %p143 = scmp.lt.s32.totalorder %s9, 1
        %s144 = scalar_select %p143, %s9, 1
        %s145 = smul.addr %s144, 16
        %s146 = smul.addr %s145, 8
        %s147 = scalar_lea.vmem %s1, %s146
      $region24: #{alexnet_forward.8} parent=15 // pred_fallthru
        _
      // Predicated region
      $region25: #{alexnet_forward.8} parent=15 // pred_check
        %p148 = pneg %p81
      $region26: #{alexnet_forward.8} parent=15 // pred_check_branch
        %150 = sbr.rel (%p148) target = $region28
      $region27: #{alexnet_forward.8} parent=15 // pred_region
        %p151 = scmp.lt.s32.totalorder %s9, 1
        %s152 = scalar_select %p151, %s9, 1
        %s153 = smul.addr %s152, 16
        %s154 = smul.addr %s153, 8
        %s155 = scalar_lea.vmem %s2, %s154
      $region28: #{alexnet_forward.8} parent=15 // pred_fallthru
        _
    $region16: #{alexnet_forward.8} parent=5 // pred_fallthru
      _
    %p156 = scmp.le.s32.totalorder 1, %s9
    %p157 = scmp.lt.s32.totalorder %s9, 3
    %p158 = pnand %p156, %p157
    %p159 = pneg %p158
    // Predicated region
    $region29: #{alexnet_forward.8} parent=5 // pred_check
      _
    $region30: #{alexnet_forward.8} parent=5 // pred_check_branch
      %161 = sbr.rel (%p158) target = $region32
    $region31: #{alexnet_forward.8} parent=5 // pred_region
      %s162 = ssub.s32 %s9, 1
      %p163 = scmp.lt.s32.totalorder %s14, 1
      %s164 = scalar_select %p163, %s14, 1
      %s165 = smul.addr %s164, 16
      %s166 = smul.addr %s165, 8
      %s167 = scalar_lea.vmem %s0, %s166
      %p168 = pneg %p35
      %p169 = pneg %p32
      %p170 = scmp.lt.s32.totalorder %s14, 1
      %s171 = scalar_select %p170, %s14, 1
      %s172 = smul.addr %s171, 16
      %s173 = smul.addr %s172, 8
      %s174 = scalar_lea.vmem %s1, %s173
      %p175 = pneg %p61
      %p176 = pneg %p58
      %p177 = scmp.lt.s32.totalorder %s14, 1
      %s178 = scalar_select %p177, %s14, 1
      %s179 = smul.addr %s178, 16
      %s180 = smul.addr %s179, 8
      %s181 = scalar_lea.vmem %s2, %s180
      %p182 = pneg %p87
      %p183 = pneg %p84
      %p184 = pneg %p113
      %p185 = pneg %p110
      %p186 = scmp.lt.s32.totalorder %s14, 1
      %s187 = scalar_select %p186, %s14, 1
      %s188 = smul.addr %s187, 7
      %s189 = smul.addr %s188, 8
      %s190 = scalar_lea.vmem %s3, %s189
      %p191 = scmp.lt.s32.totalorder %s14, 1
      %s192 = scalar_select %p191, %s14, 1
      %s193 = smul.addr %s192, 16
      %s194 = smul.addr %s193, 8
      %s195 = scalar_lea.vmem %s0, %s194
      %p196 = scmp.lt.s32.totalorder %s14, 1
      %s197 = scalar_select %p196, %s14, 1
      %s198 = smul.addr %s197, 16
      %s199 = smul.addr %s198, 8
      %s200 = scalar_lea.vmem %s1, %s199
      %p201 = scmp.lt.s32.totalorder %s14, 1
      %s202 = scalar_select %p201, %s14, 1
      %s203 = smul.addr %s202, 16
      %s204 = smul.addr %s203, 8
      %s205 = scalar_lea.vmem %s2, %s204
      %p206 = scmp.lt.s32.totalorder %s14, 1
      %s207 = scalar_select %p206, %s14, 1
      %s208 = smul.addr %s207, 7
      %s209 = smul.addr %s208, 8
      %s210 = scalar_lea.vmem %s3, %s209
      %v211 = vld [vmem:[%s195] sm:$0x7f]
      %v212 = vld [vmem:[%s195 + $0x8] sm:$0x7f]
      %v213 = vld [vmem:[%s195 + $0x10] sm:$0x7f]
      %v214 = vld [vmem:[%s195 + $0x18] sm:$0x7f]
      %v215 = vld [vmem:[%s195 + $0x20] sm:$0x7f]
      %v216 = vld [vmem:[%s195 + $0x28] sm:$0x7f]
      %v217 = vld [vmem:[%s195 + $0x30] sm:$0x7f]
      %v218 = vld [vmem:[%s195 + $0x38] sm:$0x7f]
      %v219 = vld [vmem:[%s195 + $0x40] sm:$0x7f]
      %v220 = vld [vmem:[%s195 + $0x48] sm:$0x7f]
      %v221 = vld [vmem:[%s195 + $0x50] sm:$0x7f]
      %v222 = vld [vmem:[%s195 + $0x58] sm:$0x7f]
      %v223 = vld [vmem:[%s195 + $0x60] sm:$0x7f]
      %v224 = vld [vmem:[%s195 + $0x68] sm:$0x7f]
      %v225 = vld [vmem:[%s195 + $0x70] sm:$0x7f]
      %v226 = vld [vmem:[%s200] sm:$0x7f]
      %v227 = vld [vmem:[%s200 + $0x8] sm:$0x7f]
      %v228 = vld [vmem:[%s200 + $0x10] sm:$0x7f]
      %v229 = vld [vmem:[%s200 + $0x18] sm:$0x7f]
      %v230 = vld [vmem:[%s200 + $0x20] sm:$0x7f]
      %v231 = vld [vmem:[%s200 + $0x28] sm:$0x7f]
      %v232 = vld [vmem:[%s200 + $0x30] sm:$0x7f]
      %v233 = vld [vmem:[%s200 + $0x38] sm:$0x7f]
      %v234 = vld [vmem:[%s200 + $0x40] sm:$0x7f]
      %v235 = vld [vmem:[%s200 + $0x48] sm:$0x7f]
      %v236 = vld [vmem:[%s200 + $0x50] sm:$0x7f]
      %v237 = vld [vmem:[%s200 + $0x58] sm:$0x7f]
      %v238 = vld [vmem:[%s200 + $0x60] sm:$0x7f]
      %v239 = vld [vmem:[%s200 + $0x68] sm:$0x7f]
      %v240 = vld [vmem:[%s200 + $0x70] sm:$0x7f]
      %v241 = vmax.f32 %v211, %v226
      %v242 = vmax.f32 %v212, %v227
      %v243 = vmax.f32 %v213, %v228
      %v244 = vmax.f32 %v214, %v229
      %v245 = vmax.f32 %v215, %v230
      %v246 = vmax.f32 %v216, %v231
      %v247 = vmax.f32 %v217, %v232
      %v248 = vmax.f32 %v218, %v233
      %v249 = vmax.f32 %v219, %v234
      %v250 = vmax.f32 %v220, %v235
      %v251 = vmax.f32 %v221, %v236
      %v252 = vmax.f32 %v222, %v237
      %v253 = vmax.f32 %v223, %v238
      %v254 = vmax.f32 %v224, %v239
      %v255 = vmax.f32 %v225, %v240
      %v256 = vld [vmem:[%s205] sm:$0x7f]
      %v257 = vld [vmem:[%s205 + $0x8] sm:$0x7f]
      %v258 = vld [vmem:[%s205 + $0x10] sm:$0x7f]
      %v259 = vld [vmem:[%s205 + $0x18] sm:$0x7f]
      %v260 = vld [vmem:[%s205 + $0x20] sm:$0x7f]
      %v261 = vld [vmem:[%s205 + $0x28] sm:$0x7f]
      %v262 = vld [vmem:[%s205 + $0x30] sm:$0x7f]
      %v263 = vld [vmem:[%s205 + $0x38] sm:$0x7f]
      %v264 = vld [vmem:[%s205 + $0x40] sm:$0x7f]
      %v265 = vld [vmem:[%s205 + $0x48] sm:$0x7f]
      %v266 = vld [vmem:[%s205 + $0x50] sm:$0x7f]
      %v267 = vld [vmem:[%s205 + $0x58] sm:$0x7f]
      %v268 = vld [vmem:[%s205 + $0x60] sm:$0x7f]
      %v269 = vld [vmem:[%s205 + $0x68] sm:$0x7f]
      %v270 = vld [vmem:[%s205 + $0x70] sm:$0x7f]
      %v271 = vmax.f32 %v241, %v256
      %v272 = vmax.f32 %v242, %v257
      %v273 = vmax.f32 %v243, %v258
      %v274 = vmax.f32 %v244, %v259
      %v275 = vmax.f32 %v245, %v260
      %v276 = vmax.f32 %v246, %v261
      %v277 = vmax.f32 %v247, %v262
      %v278 = vmax.f32 %v248, %v263
      %v279 = vmax.f32 %v249, %v264
      %v280 = vmax.f32 %v250, %v265
      %v281 = vmax.f32 %v251, %v266
      %v282 = vmax.f32 %v252, %v267
      %v283 = vmax.f32 %v253, %v268
      %v284 = vmax.f32 %v254, %v269
      %v285 = vmax.f32 %v255, %v270
      %v286 = vmax.f32 %v271, %v272
      %v287 = vmax.f32 %v273, %v274
      %v288 = vmax.f32 %v275, %v276
      %v289 = vmax.f32 %v277, %v278
      %v290 = vmax.f32 %v279, %v280
      %v291 = vmax.f32 %v281, %v282
      %v292 = vmax.f32 %v283, %v284
      %v293 = vmax.f32 %v286, %v273
      %v294 = vmax.f32 %v287, %v275
      %v295 = vmax.f32 %v288, %v277
      %v296 = vmax.f32 %v289, %v279
      %v297 = vmax.f32 %v290, %v281
      %v298 = vmax.f32 %v291, %v283
      %v299 = vmax.f32 %v292, %v285
      %vm300 = vcmask 63488
      %301 = vst.msk [vmem:[%s210] sm:$0x7f] %vm300, %v293
      %302 = vst.msk [vmem:[%s210 + $0x8] sm:$0x7f] %vm300, %v294
      %303 = vst.msk [vmem:[%s210 + $0x10] sm:$0x7f] %vm300, %v295
      %304 = vst.msk [vmem:[%s210 + $0x18] sm:$0x7f] %vm300, %v296
      %305 = vst.msk [vmem:[%s210 + $0x20] sm:$0x7f] %vm300, %v297
      %306 = vst.msk [vmem:[%s210 + $0x28] sm:$0x7f] %vm300, %v298
      %307 = vst.msk [vmem:[%s210 + $0x30] sm:$0x7f] %vm300, %v299
      %p308 = scmp.lt.s32.totalorder %s14, 1
      %s309 = scalar_select %p308, %s14, 1
      %s310 = smul.addr %s309, 7
      %s311 = smul.addr %s310, 8
      %s312 = scalar_lea.vmem %s3, %s311
      // Predicated region
      $region33: #{alexnet_forward.8} parent=31 // pred_check
        %p313 = pneg %p110
      $region34: #{alexnet_forward.8} parent=31 // pred_check_branch
        %315 = sbr.rel (%p313) target = $region36
      $region35: #{alexnet_forward.8} parent=31 // pred_region
        _
      $region36: #{alexnet_forward.8} parent=31 // pred_fallthru
        _
    $region32: #{alexnet_forward.8} parent=5 // pred_fallthru
      _
    %p316 = scmp.le.s32.totalorder 2, %s9
    // Predicated region
    $region37: #{alexnet_forward.8} parent=5 // pred_check
      %p317 = pneg %p316
    $region38: #{alexnet_forward.8} parent=5 // pred_check_branch
      %319 = sbr.rel (%p317) target = $region40
    $region39: #{alexnet_forward.8} parent=5 // pred_region
      %s320 = ssub.s32 %s9, 2
      // Predicated region
      $region41: #{alexnet_forward.8} parent=39 // pred_check
        %p321 = pneg %p116
      $region42: #{alexnet_forward.8} parent=39 // pred_check_branch
        %323 = sbr.rel (%p321) target = $region44
      $region43: #{alexnet_forward.8} parent=39 // pred_region
        %p324 = scmp.lt.s32.totalorder %s15, 1
        %s325 = scalar_select %p324, %s15, 1
        %s326 = smul.addr %s325, 7
        %s327 = smul.addr %s326, 8
        %s328 = scalar_lea.vmem %s3, %s327
      $region44: #{alexnet_forward.8} parent=39 // pred_fallthru
        _
    $region40: #{alexnet_forward.8} parent=5 // pred_fallthru
      _
  $region6: #{alexnet_forward.8} parent=0 // loop_footer
    %s13 = sadd.s32 1, %s9
  $region7: #{alexnet_forward.8} parent=0 // loop_footer_branch
    %8 = sbr.rel target = $region3
  $region8: #{alexnet_forward.8} parent=0 // loop_exit
    _

// kernel: alexnet_forward.9
$region0: #{alexnet_forward.9}
  #allocation0 [shape = 'u32[]', space=smem, size = 0x4, offset = 0x4, fixed_abs, tag = 'smem constant byte address 0x4 - core index']
  #allocation1 [shape = 'u32[144,128]{1,0:T(1,128)}', space=vmem, size = 0x12000, scoped, tag = 'internal scratch']
  #allocation2 [shape = 'f32[104,128]{1,0:T(8,128)}', space=vmem, size = 0xd000, scoped, tag = 'scratch operand']
  %s0 = inlined_call_operand.vmem [shape: bf16[104,128], index: 0, kind: input, shape index: {}]
  %s1 = inlined_call_operand.vmem [shape: bf16[128,128], index: 1, kind: input, shape index: {}]
  %s2 = inlined_call_operand.vmem [shape: f32[1,128], index: 2, kind: input, shape index: {}]
  %s3 = inlined_call_operand.vmem [shape: f32[104,128], index: 3, kind: output, shape index: {}]
  %s4 = sld [smem:[#allocation0]]
  $region30: #{alexnet_forward.9} parent=0
    _
  %s6 = ssub.s32 1, %s4
  %s7 = scalar_select 0, %s6, %s4
  // Predicated region
  $region2: #{alexnet_forward.9} parent=0 // pred_check
    _
  $region3: #{alexnet_forward.9} parent=0 // pred_check_branch
    %9 = sbr.rel (0) target = $region5
  $region4: #{alexnet_forward.9} parent=0 // pred_region
    _
  $region5: #{alexnet_forward.9} parent=0 // pred_fallthru
    _
  // Predicated region
  $region6: #{alexnet_forward.9} parent=0 // pred_check
    _
  $region7: #{alexnet_forward.9} parent=0 // pred_check_branch
    %11 = sbr.rel (0) target = $region9
  $region8: #{alexnet_forward.9} parent=0 // pred_region
    _
  $region9: #{alexnet_forward.9} parent=0 // pred_fallthru
    _
  // Predicated region
  $region10: #{alexnet_forward.9} parent=0 // pred_check
    _
  $region11: #{alexnet_forward.9} parent=0 // pred_check_branch
    %13 = sbr.rel (0) target = $region13
  $region12: #{alexnet_forward.9} parent=0 // pred_region
    _
  $region13: #{alexnet_forward.9} parent=0 // pred_fallthru
    _
  %p15 = scmp.eq.s32.totalorder 0, 0
  // Predicated region
  $region14: #{alexnet_forward.9} parent=0 // pred_check
    %p16 = pneg %p15
  $region15: #{alexnet_forward.9} parent=0 // pred_check_branch
    %18 = sbr.rel (%p16) target = $region17
  $region16: #{alexnet_forward.9} parent=0 // pred_region
    %19 = vst [vmem:[#allocation2] sm:$0xff] 0.0
    %20 = vst [vmem:[#allocation2 + $0x8] sm:$0xff] 0.0
    %21 = vst [vmem:[#allocation2 + $0x10] sm:$0xff] 0.0
    %22 = vst [vmem:[#allocation2 + $0x18] sm:$0xff] 0.0
    %23 = vst [vmem:[#allocation2 + $0x20] sm:$0xff] 0.0
    %24 = vst [vmem:[#allocation2 + $0x28] sm:$0xff] 0.0
    %25 = vst [vmem:[#allocation2 + $0x30] sm:$0xff] 0.0
    %26 = vst [vmem:[#allocation2 + $0x38] sm:$0xff] 0.0
    %27 = vst [vmem:[#allocation2 + $0x40] sm:$0xff] 0.0
    %28 = vst [vmem:[#allocation2 + $0x48] sm:$0xff] 0.0
    %29 = vst [vmem:[#allocation2 + $0x50] sm:$0xff] 0.0
    %30 = vst [vmem:[#allocation2 + $0x58] sm:$0xff] 0.0
    %31 = vst [vmem:[#allocation2 + $0x60] sm:$0xff] 0.0
  $region17: #{alexnet_forward.9} parent=0 // pred_fallthru
    _
  %v32 = vld [vmem:[#allocation2] sm:$0xff]
  %v33 = vld [vmem:[#allocation2 + $0x8] sm:$0xff]
  %v34 = vld [vmem:[#allocation2 + $0x10] sm:$0xff]
  %v35 = vld [vmem:[#allocation2 + $0x18] sm:$0xff]
  %v36 = vld [vmem:[#allocation2 + $0x20] sm:$0xff]
  %v37 = vld [vmem:[#allocation2 + $0x28] sm:$0xff]
  %v38 = vld [vmem:[#allocation2 + $0x30] sm:$0xff]
  %v39 = vld [vmem:[#allocation2 + $0x38] sm:$0xff]
  %v40 = vld [vmem:[#allocation2 + $0x40] sm:$0xff]
  %v41 = vld [vmem:[#allocation2 + $0x48] sm:$0xff]
  %v42 = vld [vmem:[#allocation2 + $0x50] sm:$0xff]
  %v43 = vld [vmem:[#allocation2 + $0x58] sm:$0xff]
  %v44 = vld [vmem:[#allocation2 + $0x60] sm:$0xff]
  %v45 = vld [vmem:[%s0] sm:$0xf]
  %v46 = vld [vmem:[%s0 + $0x4] sm:$0xf]
  %v47 = vld [vmem:[%s0 + $0x8] sm:$0xf]
  %v48 = vld [vmem:[%s0 + $0xc] sm:$0xf]
  %v49 = vld [vmem:[%s0 + $0x10] sm:$0xf]
  %v50 = vld [vmem:[%s0 + $0x14] sm:$0xf]
  %v51 = vld [vmem:[%s0 + $0x18] sm:$0xf]
  %v52 = vld [vmem:[%s0 + $0x1c] sm:$0xf]
  %v53 = vld [vmem:[%s0 + $0x20] sm:$0xf]
  %v54 = vld [vmem:[%s0 + $0x24] sm:$0xf]
  %v55 = vld [vmem:[%s0 + $0x28] sm:$0xf]
  %v56 = vld [vmem:[%s0 + $0x2c] sm:$0xf]
  %v57 = vld [vmem:[%s0 + $0x30] sm:$0xf]
  %v58 = vld [vmem:[%s1] sm:$0xf]
  %v59 = vld [vmem:[%s1 + $0x4] sm:$0xf]
  %v60 = vld [vmem:[%s1 + $0x8] sm:$0xf]
  %v61 = vld [vmem:[%s1 + $0xc] sm:$0xf]
  %v62 = vld [vmem:[%s1 + $0x10] sm:$0xf]
  %v63 = vld [vmem:[%s1 + $0x14] sm:$0xf]
  %v64 = vld [vmem:[%s1 + $0x18] sm:$0xf]
  %v65 = vld [vmem:[%s1 + $0x1c] sm:$0xf]
  %v66 = vld [vmem:[%s1 + $0x20] sm:$0xf]
  %v67 = vld [vmem:[%s1 + $0x24] sm:$0xf]
  %v68 = vld [vmem:[%s1 + $0x28] sm:$0xf]
  %v69 = vld [vmem:[%s1 + $0x2c] sm:$0xf]
  %v70 = vld [vmem:[%s1 + $0x30] sm:$0xf]
  %v71 = vld [vmem:[%s1 + $0x34] sm:$0xf]
  %v72 = vld [vmem:[%s1 + $0x38] sm:$0xf]
  %v73 = vld [vmem:[%s1 + $0x3c] sm:$0xf]
  %v87 = vunpack.c.l.b16 %v45
  %v88 = vunpack.c.l.b16 %v46
  %v89 = vunpack.c.l.b16 %v47
  %v90 = vunpack.c.l.b16 %v48
  %v91 = vunpack.c.l.b16 %v49
  %v92 = vunpack.c.l.b16 %v50
  %v93 = vunpack.c.l.b16 %v51
  %v94 = vunpack.c.l.b16 %v52
  %v95 = vunpack.c.l.b16 %v53
  %v96 = vunpack.c.l.b16 %v54
  %v97 = vunpack.c.l.b16 %v55
  %v98 = vunpack.c.l.b16 %v56
  %v99 = vunpack.c.l.b16 %v57
  %v100 = vpack.c.b16 %v88, %v87
  %v101 = vpack.c.b16 %v90, %v89
  %v102 = vpack.c.b16 %v92, %v91
  %v103 = vpack.c.b16 %v94, %v93
  %v104 = vpack.c.b16 %v96, %v95
  %v105 = vpack.c.b16 %v98, %v97
  %v106 = vpack.c.b16 %v99, %v99
  %v130 = vunpack.c.l.b16 %v58
  %v131 = vunpack.c.l.b16 %v59
  %v132 = vunpack.c.l.b16 %v60
  %v133 = vunpack.c.l.b16 %v61
  %v134 = vunpack.c.l.b16 %v62
  %v135 = vunpack.c.l.b16 %v63
  %v136 = vunpack.c.l.b16 %v64
  %v137 = vunpack.c.l.b16 %v65
  %v138 = vunpack.c.l.b16 %v66
  %v139 = vunpack.c.l.b16 %v67
  %v140 = vunpack.c.l.b16 %v68
  %v141 = vunpack.c.l.b16 %v69
  %v142 = vunpack.c.l.b16 %v70
  %v143 = vunpack.c.l.b16 %v71
  %v144 = vunpack.c.l.b16 %v72
  %v145 = vunpack.c.l.b16 %v73
  %v146 = vpack.c.b16 %v131, %v130
  %v147 = vpack.c.b16 %v133, %v132
  %v148 = vpack.c.b16 %v135, %v134
  %v149 = vpack.c.b16 %v137, %v136
  %v150 = vpack.c.b16 %v139, %v138
  %v151 = vpack.c.b16 %v141, %v140
  %v152 = vpack.c.b16 %v143, %v142
  %v153 = vpack.c.b16 %v145, %v144
  %162 = vmatprep.subr.bf16.mxu0 0
  %163 = vmatpush1.bf16.msra.mxu0 %v146
  %164 = vmatprep.subr.bf16.mxu0 0
  %165 = vmatpush1.bf16.msra.mxu0 %v147
  %166 = vmatprep.subr.bf16.mxu0 0
  %167 = vmatpush1.bf16.msra.mxu0 %v148
  %168 = vmatprep.subr.bf16.mxu0 0
  %169 = vmatpush1.bf16.msra.mxu0 %v149
  %170 = vmatprep.subr.bf16.mxu0 0
  %171 = vmatpush1.bf16.msra.mxu0 %v150
  %172 = vmatprep.subr.bf16.mxu0 0
  %173 = vmatpush1.bf16.msra.mxu0 %v151
  %174 = vmatprep.subr.bf16.mxu0 0
  %175 = vmatpush1.bf16.msra.mxu0 %v152
  %176 = vmatprep.subr.bf16.mxu0 0
  %177 = vmatpush1.bf16.msra.mxu0 %v153
  %178 = vmatprep.subr.bf16.mxu0 0
  %179 = vmatpush1.bf16.msra.mxu0 0
  %180 = vmatprep.subr.bf16.mxu0 0
  %181 = vmatpush1.bf16.msra.mxu0 0
  %182 = vmatprep.subr.bf16.mxu0 0
  %183 = vmatpush1.bf16.msra.mxu0 0
  %184 = vmatprep.subr.bf16.mxu0 0
  %185 = vmatpush1.bf16.msra.mxu0 0
  %186 = vmatprep.subr.bf16.mxu0 0
  %187 = vmatpush1.bf16.msra.mxu0 0
  %188 = vmatprep.subr.bf16.mxu0 0
  %189 = vmatpush1.bf16.msra.mxu0 0
  %190 = vmatprep.subr.bf16.mxu0 0
  %191 = vmatpush1.bf16.msra.mxu0 0
  %192 = vmatprep.subr.bf16.mxu0 0
  %193 = vmatpush1.bf16.msra.mxu0 0
  %194 = vmatprep.mubr.bf16.mxu0 0
  %195 = vmatmul.mubr.bf16.gmra.mrb[0].mxu0 %v100
  %v196 = vpop.f32.mrb[0].mxu0
  %v197 = vadd.f32 0.0, %v196
  %v198 = vpop.f32.mrb[0].mxu0
  %v199 = vpop.f32.mrb[0].mxu0
  %v200 = vadd.f32 0.0, %v199
  %v201 = vpop.f32.mrb[0].mxu0
  %202 = vmatprep.mubr.bf16.mxu0 0
  %203 = vmatmul.mubr.bf16.gmra.mrb[0].mxu0 %v101
  %v204 = vpop.f32.mrb[0].mxu0
  %v205 = vadd.f32 0.0, %v204
  %v206 = vpop.f32.mrb[0].mxu0
  %v207 = vpop.f32.mrb[0].mxu0
  %v208 = vadd.f32 0.0, %v207
  %v209 = vpop.f32.mrb[0].mxu0
  %210 = vmatprep.mubr.bf16.mxu0 0
  %211 = vmatmul.mubr.bf16.gmra.mrb[0].mxu0 %v102
  %v212 = vpop.f32.mrb[0].mxu0
  %v213 = vadd.f32 0.0, %v212
  %v214 = vpop.f32.mrb[0].mxu0
  %v215 = vpop.f32.mrb[0].mxu0
  %v216 = vadd.f32 0.0, %v215
  %v217 = vpop.f32.mrb[0].mxu0
  %218 = vmatprep.mubr.bf16.mxu0 0
  %219 = vmatmul.mubr.bf16.gmra.mrb[0].mxu0 %v103
  %v220 = vpop.f32.mrb[0].mxu0
  %v221 = vadd.f32 0.0, %v220
  %v222 = vpop.f32.mrb[0].mxu0
  %v223 = vpop.f32.mrb[0].mxu0
  %v224 = vadd.f32 0.0, %v223
  %v225 = vpop.f32.mrb[0].mxu0
  %226 = vmatprep.mubr.bf16.mxu0 0
  %227 = vmatmul.mubr.bf16.gmra.mrb[0].mxu0 %v104
  %v228 = vpop.f32.mrb[0].mxu0
  %v229 = vadd.f32 0.0, %v228
  %v230 = vpop.f32.mrb[0].mxu0
  %v231 = vpop.f32.mrb[0].mxu0
  %v232 = vadd.f32 0.0, %v231
  %v233 = vpop.f32.mrb[0].mxu0
  %234 = vmatprep.mubr.bf16.mxu0 0
  %235 = vmatmul.mubr.bf16.gmra.mrb[0].mxu0 %v105
  %v236 = vpop.f32.mrb[0].mxu0
  %v237 = vadd.f32 0.0, %v236
  %v238 = vpop.f32.mrb[0].mxu0
  %v239 = vpop.f32.mrb[0].mxu0
  %v240 = vadd.f32 0.0, %v239
  %v241 = vpop.f32.mrb[0].mxu0
  %242 = vmatprep.mubr.bf16.mxu0 0
  %243 = vmatmul.mubr.bf16.gmra.mrb[0].mxu0 %v106
  %v244 = vpop.f32.mrb[0].mxu0
  %v245 = vadd.f32 0.0, %v244
  %v246 = vpop.f32.mrb[0].mxu0
  %v247 = vpop.f32.mrb[0].mxu0
  %v248 = vpop.f32.mrb[0].mxu0
  %249 = vdwg.mxu0
  %v250 = vadd.f32 %v32, %v197
  %v251 = vadd.f32 %v33, %v200
  %v252 = vadd.f32 %v34, %v205
  %v253 = vadd.f32 %v35, %v208
  %v254 = vadd.f32 %v36, %v213
  %v255 = vadd.f32 %v37, %v216
  %v256 = vadd.f32 %v38, %v221
  %v257 = vadd.f32 %v39, %v224
  %v258 = vadd.f32 %v40, %v229
  %v259 = vadd.f32 %v41, %v232
  %v260 = vadd.f32 %v42, %v237
  %v261 = vadd.f32 %v43, %v240
  %v262 = vadd.f32 %v44, %v245
  %263 = vst [vmem:[#allocation2] sm:$0xff] %v250
  %264 = vst [vmem:[#allocation2 + $0x8] sm:$0xff] %v251
  %265 = vst [vmem:[#allocation2 + $0x10] sm:$0xff] %v252
  %266 = vst [vmem:[#allocation2 + $0x18] sm:$0xff] %v253
  %267 = vst [vmem:[#allocation2 + $0x20] sm:$0xff] %v254
  %268 = vst [vmem:[#allocation2 + $0x28] sm:$0xff] %v255
  %269 = vst [vmem:[#allocation2 + $0x30] sm:$0xff] %v256
  %270 = vst [vmem:[#allocation2 + $0x38] sm:$0xff] %v257
  %271 = vst [vmem:[#allocation2 + $0x40] sm:$0xff] %v258
  %272 = vst [vmem:[#allocation2 + $0x48] sm:$0xff] %v259
  %273 = vst [vmem:[#allocation2 + $0x50] sm:$0xff] %v260
  %274 = vst [vmem:[#allocation2 + $0x58] sm:$0xff] %v261
  %275 = vst [vmem:[#allocation2 + $0x60] sm:$0xff] %v262
  // Predicated region
  $region18: #{alexnet_forward.9} parent=0 // pred_check
    %p276 = pneg %p15
  $region19: #{alexnet_forward.9} parent=0 // pred_check_branch
    %278 = sbr.rel (%p276) target = $region21
  $region20: #{alexnet_forward.9} parent=0 // pred_region
    %v279 = vld [vmem:[#allocation2] sm:$0xff]
    %v280 = vld [vmem:[#allocation2 + $0x8] sm:$0xff]
    %v281 = vld [vmem:[#allocation2 + $0x10] sm:$0xff]
    %v282 = vld [vmem:[#allocation2 + $0x18] sm:$0xff]
    %v283 = vld [vmem:[#allocation2 + $0x20] sm:$0xff]
    %v284 = vld [vmem:[#allocation2 + $0x28] sm:$0xff]
    %v285 = vld [vmem:[#allocation2 + $0x30] sm:$0xff]
    %v286 = vld [vmem:[#allocation2 + $0x38] sm:$0xff]
    %v287 = vld [vmem:[#allocation2 + $0x40] sm:$0xff]
    %v288 = vld [vmem:[#allocation2 + $0x48] sm:$0xff]
    %v289 = vld [vmem:[#allocation2 + $0x50] sm:$0xff]
    %v290 = vld [vmem:[#allocation2 + $0x58] sm:$0xff]
    %v291 = vld [vmem:[#allocation2 + $0x60] sm:$0xff]
    %v292 = vld [vmem:[%s2] sm:$0x1]
    %v294 = vlaneseq
    %v295 = vshrl.u32 %v294, 7
    %v296 = vsub.s32 0, %v295
    %v297 = vrot.slane %v292, %v296
    %v299 = vadd.f32 %v279, %v297
    %v300 = vadd.f32 %v280, %v297
    %v301 = vadd.f32 %v281, %v297
    %v302 = vadd.f32 %v282, %v297
    %v303 = vadd.f32 %v283, %v297
    %v304 = vadd.f32 %v284, %v297
    %v305 = vadd.f32 %v285, %v297
    %v306 = vadd.f32 %v286, %v297
    %v307 = vadd.f32 %v287, %v297
    %v308 = vadd.f32 %v288, %v297
    %v309 = vadd.f32 %v289, %v297
    %v310 = vadd.f32 %v290, %v297
    %v311 = vadd.f32 %v291, %v297
    %v312 = vmax.f32 %v299, 0.0
    %v313 = vmax.f32 %v300, 0.0
    %v314 = vmax.f32 %v301, 0.0
    %v315 = vmax.f32 %v302, 0.0
    %v316 = vmax.f32 %v303, 0.0
    %v317 = vmax.f32 %v304, 0.0
    %v318 = vmax.f32 %v305, 0.0
    %v319 = vmax.f32 %v306, 0.0
    %v320 = vmax.f32 %v307, 0.0
    %v321 = vmax.f32 %v308, 0.0
    %v322 = vmax.f32 %v309, 0.0
    %v323 = vmax.f32 %v310, 0.0
    %v324 = vmax.f32 %v311, 0.0
    %325 = vst [vmem:[%s3] sm:$0xff] %v312
    %326 = vst [vmem:[%s3 + $0x8] sm:$0xff] %v313
    %327 = vst [vmem:[%s3 + $0x10] sm:$0xff] %v314
    %328 = vst [vmem:[%s3 + $0x18] sm:$0xff] %v315
    %329 = vst [vmem:[%s3 + $0x20] sm:$0xff] %v316
    %330 = vst [vmem:[%s3 + $0x28] sm:$0xff] %v317
    %331 = vst [vmem:[%s3 + $0x30] sm:$0xff] %v318
    %332 = vst [vmem:[%s3 + $0x38] sm:$0xff] %v319
    %333 = vst [vmem:[%s3 + $0x40] sm:$0xff] %v320
    %334 = vst [vmem:[%s3 + $0x48] sm:$0xff] %v321
    %335 = vst [vmem:[%s3 + $0x50] sm:$0xff] %v322
    %336 = vst [vmem:[%s3 + $0x58] sm:$0xff] %v323
    %337 = vst [vmem:[%s3 + $0x60] sm:$0xff] %v324
  $region21: #{alexnet_forward.9} parent=0 // pred_fallthru
    _
  // Predicated region
  $region22: #{alexnet_forward.9} parent=0 // pred_check
    _
  $region23: #{alexnet_forward.9} parent=0 // pred_check_branch
    %339 = sbr.rel (0) target = $region25
  $region24: #{alexnet_forward.9} parent=0 // pred_region
    _
  $region25: #{alexnet_forward.9} parent=0 // pred_fallthru
    _
  // Predicated region
  $region26: #{alexnet_forward.9} parent=0 // pred_check
    _
  $region27: #{alexnet_forward.9} parent=0 // pred_check_branch
    %341 = sbr.rel (0) target = $region29
  $region28: #{alexnet_forward.9} parent=0 // pred_region
    _
  $region29: #{alexnet_forward.9} parent=0 // pred_fallthru
    _

// kernel: alexnet_forward.10
$region0: #{alexnet_forward.10}
  #allocation0 [shape = 'u32[]', space=smem, size = 0x4, offset = 0x4, fixed_abs, tag = 'smem constant byte address 0x4 - core index']
  #allocation1 [shape = 'u32[144,128]{1,0:T(1,128)}', space=vmem, size = 0x12000, scoped, tag = 'internal scratch']
  #allocation2 [shape = 'f32[16,128]{1,0:T(8,128)}', space=vmem, size = 0x2000, scoped, tag = 'scratch operand']
  %s0 = inlined_call_operand.vmem [shape: bf16[16,128], index: 0, kind: input, shape index: {}]
  %s1 = inlined_call_operand.vmem [shape: bf16[128,128], index: 1, kind: input, shape index: {}]
  %s2 = inlined_call_operand.vmem [shape: f32[1,128], index: 2, kind: input, shape index: {}]
  %s3 = inlined_call_operand.vmem [shape: f32[16,128], index: 3, kind: output, shape index: {}]
  %s4 = sld [smem:[#allocation0]]
  $region30: #{alexnet_forward.10} parent=0
    _
  %s6 = ssub.s32 1, %s4
  %s7 = scalar_select 0, %s6, %s4
  // Predicated region
  $region2: #{alexnet_forward.10} parent=0 // pred_check
    _
  $region3: #{alexnet_forward.10} parent=0 // pred_check_branch
    %9 = sbr.rel (0) target = $region5
  $region4: #{alexnet_forward.10} parent=0 // pred_region
    _
  $region5: #{alexnet_forward.10} parent=0 // pred_fallthru
    _
  // Predicated region
  $region6: #{alexnet_forward.10} parent=0 // pred_check
    _
  $region7: #{alexnet_forward.10} parent=0 // pred_check_branch
    %11 = sbr.rel (0) target = $region9
  $region8: #{alexnet_forward.10} parent=0 // pred_region
    _
  $region9: #{alexnet_forward.10} parent=0 // pred_fallthru
    _
  // Predicated region
  $region10: #{alexnet_forward.10} parent=0 // pred_check
    _
  $region11: #{alexnet_forward.10} parent=0 // pred_check_branch
    %13 = sbr.rel (0) target = $region13
  $region12: #{alexnet_forward.10} parent=0 // pred_region
    _
  $region13: #{alexnet_forward.10} parent=0 // pred_fallthru
    _
  %p15 = scmp.eq.s32.totalorder 0, 0
  // Predicated region
  $region14: #{alexnet_forward.10} parent=0 // pred_check
    %p16 = pneg %p15
  $region15: #{alexnet_forward.10} parent=0 // pred_check_branch
    %18 = sbr.rel (%p16) target = $region17
  $region16: #{alexnet_forward.10} parent=0 // pred_region
    %19 = vst [vmem:[#allocation2] sm:$0xff] 0.0
    %20 = vst [vmem:[#allocation2 + $0x8] sm:$0xff] 0.0
  $region17: #{alexnet_forward.10} parent=0 // pred_fallthru
    _
  %v21 = vld [vmem:[#allocation2] sm:$0xff]
  %v22 = vld [vmem:[#allocation2 + $0x8] sm:$0xff]
  %v23 = vld [vmem:[%s0] sm:$0xf]
  %v24 = vld [vmem:[%s0 + $0x4] sm:$0xf]
  %v25 = vld [vmem:[%s1] sm:$0xf]
  %v26 = vld [vmem:[%s1 + $0x4] sm:$0xf]
  %v27 = vld [vmem:[%s1 + $0x8] sm:$0xf]
  %v28 = vld [vmem:[%s1 + $0xc] sm:$0xf]
  %v29 = vld [vmem:[%s1 + $0x10] sm:$0xf]
  %v30 = vld [vmem:[%s1 + $0x14] sm:$0xf]
  %v31 = vld [vmem:[%s1 + $0x18] sm:$0xf]
  %v32 = vld [vmem:[%s1 + $0x1c] sm:$0xf]
  %v33 = vld [vmem:[%s1 + $0x20] sm:$0xf]
  %v34 = vld [vmem:[%s1 + $0x24] sm:$0xf]
  %v35 = vld [vmem:[%s1 + $0x28] sm:$0xf]
  %v36 = vld [vmem:[%s1 + $0x2c] sm:$0xf]
  %v37 = vld [vmem:[%s1 + $0x30] sm:$0xf]
  %v38 = vld [vmem:[%s1 + $0x34] sm:$0xf]
  %v39 = vld [vmem:[%s1 + $0x38] sm:$0xf]
  %v40 = vld [vmem:[%s1 + $0x3c] sm:$0xf]
  %v43 = vunpack.c.l.b16 %v23
  %v44 = vunpack.c.l.b16 %v24
  %v45 = vpack.c.b16 %v44, %v43
  %v63 = vunpack.c.l.b16 %v25
  %v64 = vunpack.c.l.b16 %v26
  %v65 = vunpack.c.l.b16 %v27
  %v66 = vunpack.c.l.b16 %v28
  %v67 = vunpack.c.l.b16 %v29
  %v68 = vunpack.c.l.b16 %v30
  %v69 = vunpack.c.l.b16 %v31
  %v70 = vunpack.c.l.b16 %v32
  %v71 = vunpack.c.l.b16 %v33
  %v72 = vunpack.c.l.b16 %v34
  %v73 = vunpack.c.l.b16 %v35
  %v74 = vunpack.c.l.b16 %v36
  %v75 = vunpack.c.l.b16 %v37
  %v76 = vunpack.c.l.b16 %v38
  %v77 = vunpack.c.l.b16 %v39
  %v78 = vunpack.c.l.b16 %v40
  %v79 = vpack.c.b16 %v64, %v63
  %v80 = vpack.c.b16 %v66, %v65
  %v81 = vpack.c.b16 %v68, %v67
  %v82 = vpack.c.b16 %v70, %v69
  %v83 = vpack.c.b16 %v72, %v71
  %v84 = vpack.c.b16 %v74, %v73
  %v85 = vpack.c.b16 %v76, %v75
  %v86 = vpack.c.b16 %v78, %v77
  %95 = vmatprep.subr.bf16.mxu0 0
  %96 = vmatpush1.bf16.msra.mxu0 %v79
  %97 = vmatprep.subr.bf16.mxu0 0
  %98 = vmatpush1.bf16.msra.mxu0 %v80
  %99 = vmatprep.subr.bf16.mxu0 0
  %100 = vmatpush1.bf16.msra.mxu0 %v81
  %101 = vmatprep.subr.bf16.mxu0 0
  %102 = vmatpush1.bf16.msra.mxu0 %v82
  %103 = vmatprep.subr.bf16.mxu0 0
  %104 = vmatpush1.bf16.msra.mxu0 %v83
  %105 = vmatprep.subr.bf16.mxu0 0
  %106 = vmatpush1.bf16.msra.mxu0 %v84
  %107 = vmatprep.subr.bf16.mxu0 0
  %108 = vmatpush1.bf16.msra.mxu0 %v85
  %109 = vmatprep.subr.bf16.mxu0 0
  %110 = vmatpush1.bf16.msra.mxu0 %v86
  %111 = vmatprep.subr.bf16.mxu0 0
  %112 = vmatpush1.bf16.msra.mxu0 0
  %113 = vmatprep.subr.bf16.mxu0 0
  %114 = vmatpush1.bf16.msra.mxu0 0
  %115 = vmatprep.subr.bf16.mxu0 0
  %116 = vmatpush1.bf16.msra.mxu0 0
  %117 = vmatprep.subr.bf16.mxu0 0
  %118 = vmatpush1.bf16.msra.mxu0 0
  %119 = vmatprep.subr.bf16.mxu0 0
  %120 = vmatpush1.bf16.msra.mxu0 0
  %121 = vmatprep.subr.bf16.mxu0 0
  %122 = vmatpush1.bf16.msra.mxu0 0
  %123 = vmatprep.subr.bf16.mxu0 0
  %124 = vmatpush1.bf16.msra.mxu0 0
  %125 = vmatprep.subr.bf16.mxu0 0
  %126 = vmatpush1.bf16.msra.mxu0 0
  %127 = vmatprep.mubr.bf16.mxu0 0
  %128 = vmatmul.mubr.bf16.gmra.mrb[0].mxu0 %v45
  %v129 = vpop.f32.mrb[0].mxu0
  %v130 = vadd.f32 0.0, %v129
  %v131 = vpop.f32.mrb[0].mxu0
  %v132 = vpop.f32.mrb[0].mxu0
  %v133 = vadd.f32 0.0, %v132
  %v134 = vpop.f32.mrb[0].mxu0
  %135 = vdwg.mxu0
  %v136 = vadd.f32 %v21, %v130
  %v137 = vadd.f32 %v22, %v133
  %138 = vst [vmem:[#allocation2] sm:$0xff] %v136
  %139 = vst [vmem:[#allocation2 + $0x8] sm:$0xff] %v137
  // Predicated region
  $region18: #{alexnet_forward.10} parent=0 // pred_check
    %p140 = pneg %p15
  $region19: #{alexnet_forward.10} parent=0 // pred_check_branch
    %142 = sbr.rel (%p140) target = $region21
  $region20: #{alexnet_forward.10} parent=0 // pred_region
    %v143 = vld [vmem:[#allocation2] sm:$0xff]
    %v144 = vld [vmem:[#allocation2 + $0x8] sm:$0xff]
    %v145 = vld [vmem:[%s2] sm:$0x1]
    %v147 = vlaneseq
    %v148 = vshrl.u32 %v147, 7
    %v149 = vsub.s32 0, %v148
    %v150 = vrot.slane %v145, %v149
    %v152 = vadd.f32 %v143, %v150
    %v153 = vadd.f32 %v144, %v150
    %154 = vst [vmem:[%s3] sm:$0xff] %v152
    %155 = vst [vmem:[%s3 + $0x8] sm:$0xff] %v153
  $region21: #{alexnet_forward.10} parent=0 // pred_fallthru
    _
  // Predicated region
  $region22: #{alexnet_forward.10} parent=0 // pred_check
    _
  $region23: #{alexnet_forward.10} parent=0 // pred_check_branch
    %157 = sbr.rel (0) target = $region25
  $region24: #{alexnet_forward.10} parent=0 // pred_region
    _
  $region25: #{alexnet_forward.10} parent=0 // pred_fallthru
    _
  // Predicated region
  $region26: #{alexnet_forward.10} parent=0 // pred_check
    _
  $region27: #{alexnet_forward.10} parent=0 // pred_check_branch
    %159 = sbr.rel (0) target = $region29
  $region28: #{alexnet_forward.10} parent=0 // pred_region
    _
  $region29: #{alexnet_forward.10} parent=0 // pred_fallthru
    _

// kernel: alexnet_forward.11
$region0: #{alexnet_forward.11}
  #allocation0 [shape = 'u32[]', space=smem, size = 0x4, offset = 0x4, fixed_abs, tag = 'smem constant byte address 0x4 - core index']
  #allocation1 [shape = 'u32[144,128]{1,0:T(1,128)}', space=vmem, size = 0x12000, scoped, tag = 'internal scratch']
  #allocation2 [shape = 'f32[8,256]{1,0:T(8,128)}', space=vmem, size = 0x2000, scoped, tag = 'scratch operand']
  %s0 = inlined_call_operand.vmem [shape: bf16[8,384], index: 0, kind: input, shape index: {}]
  %s1 = inlined_call_operand.vmem [shape: bf16[384,512], index: 1, kind: input, shape index: {}]
  %s2 = inlined_call_operand.vmem [shape: f32[1,512], index: 2, kind: input, shape index: {}]
  %s3 = inlined_call_operand.vmem [shape: f32[8,512], index: 3, kind: output, shape index: {}]
  %s4 = sld [smem:[#allocation0]]
  $region91: #{alexnet_forward.11} parent=0
    _
  %s6 = ssub.s32 1, %s4
  %s7 = scalar_select 0, %s6, %s4
  $region1: #{alexnet_forward.11} parent=0
    #allocation3 [shape = 'u8[393216]{0}', space=vmem, size = 0x60000, scoped, tag = 'input window, operand 1']
    loop: start=0, step=1, limit=4
    $region2: #{alexnet_forward.11} parent=1 // loop_pre_header
      _
    $region3: #{alexnet_forward.11} parent=1 // loop_header
      %s9 = sphi 0, %s13
      %p10 = scmp.ge.s32.totalorder %s9, 4
      %s16 = sphi 0, %s35
      %s17 = sphi 0, %s31
      %s18 = sphi 0, %s27
      %s19 = sphi 0, %s16
      %s20 = sphi 0, %s17
      %s21 = sphi 0, %s18
      %s22 = sphi 0, %s19
      %s23 = sphi 0, %s20
      %s24 = sphi 0, %s21
      %s40 = sphi 0, %s42
      %s43 = sphi 0, %s40
      %s44 = sphi 0, %s43
      %s60 = sphi 0, %s44
      %s68 = sphi 0, %s70
      %s71 = sphi 0, %s68
      %s72 = sphi 0, %s71
      %s88 = sphi 0, %s72
      %s94 = sphi 0, %s96
      %s97 = sphi 0, %s94
      %s98 = sphi 0, %s97
      %s114 = sphi 0, %s98
      %s122 = sphi 0, %s124
      %s125 = sphi 0, %s122
      %s126 = sphi 0, %s125
      %s142 = sphi 0, %s126
    $region4: #{alexnet_forward.11} parent=1 // loop_header_branch
      %12 = sbr.rel (%p10) target = $region8
    $region5: #{alexnet_forward.11} parent=1 // loop_body
      %s14 = ssub.s32 %s9, 1
      %s15 = ssub.s32 %s9, 2
      %s25 = sadd.s32 1, %s18
      %p26 = scmp.ge.s32.totalorder %s25, 1
      %s27 = scalar_select %p26, 0, %s25
      %s28 = sadd.s32 1, %s17
      %s29 = scalar_select %p26, %s28, %s17
      %p30 = scmp.ge.s32.totalorder %s29, 2
      %s31 = scalar_select %p30, 0, %s29
      %s32 = sadd.s32 1, %s16
      %s33 = scalar_select %p30, %s32, %s16
      %p34 = scmp.ge.s32.totalorder %s33, 1
      %s35 = scalar_select %p34, 0, %s33
      %s36 = ssub.s32 %s16, %s35
      %s37 = ssub.s32 %s18, %s27
      %s38 = sor.u32 %s36, %s37
      %p39 = scmp.eq.s32.totalorder %s38, 0
      %s41 = sadd.s32 %s40, 1
      %s42 = scalar_select %p39, %s40, %s41
      %p45 = pneg %p39
      %p46 = scmp.eq.s32.totalorder %s9, 1
      %p47 = por %p45, %p46
      %p48 = scmp.ne.s32.totalorder %s40, %s43
      %p49 = scmp.eq.s32.totalorder %s9, 0
      %p50 = por %p48, %p49
      %p51 = scmp.ne.s32.totalorder %s40, %s43
      %p52 = scmp.eq.s32.totalorder %s14, 1
      %p53 = por %p51, %p52
      %p54 = scmp.ne.s32.totalorder %s43, %s44
      %p55 = scmp.eq.s32.totalorder %s14, 0
      %p56 = por %p54, %p55
      %p57 = scmp.ne.s32.totalorder %s43, %s44
      %p58 = scmp.eq.s32.totalorder %s15, 1
      %p59 = por %p57, %p58
      %p61 = scmp.ne.s32.totalorder %s44, %s60
      %p62 = scmp.eq.s32.totalorder %s15, 0
      %p63 = por %p61, %p62
      %s64 = ssub.s32 %s18, %s27
      %s65 = ssub.s32 %s17, %s31
      %s66 = sor.u32 %s64, %s65
      %p67 = scmp.eq.s32.totalorder %s66, 0
      %s69 = sadd.s32 %s68, 1
      %s70 = scalar_select %p67, %s68, %s69
      %p73 = pneg %p67
      %p74 = scmp.eq.s32.totalorder %s9, 1
      %p75 = por %p73, %p74
      %p76 = scmp.ne.s32.totalorder %s68, %s71
      %p77 = scmp.eq.s32.totalorder %s9, 0
      %p78 = por %p76, %p77
      %p79 = scmp.ne.s32.totalorder %s68, %s71
      %p80 = scmp.eq.s32.totalorder %s14, 1
      %p81 = por %p79, %p80
      %p82 = scmp.ne.s32.totalorder %s71, %s72
      %p83 = scmp.eq.s32.totalorder %s14, 0
      %p84 = por %p82, %p83
      %p85 = scmp.ne.s32.totalorder %s71, %s72
      %p86 = scmp.eq.s32.totalorder %s15, 1
      %p87 = por %p85, %p86
      %p89 = scmp.ne.s32.totalorder %s72, %s88
      %p90 = scmp.eq.s32.totalorder %s15, 0
      %p91 = por %p89, %p90
      %s92 = ssub.s32 %s17, %s31
      %p93 = scmp.eq.s32.totalorder %s92, 0
      %s95 = sadd.s32 %s94, 1
      %s96 = scalar_select %p93, %s94, %s95
      %p99 = pneg %p93
      %p100 = scmp.eq.s32.totalorder %s9, 1
      %p101 = por %p99, %p100
      %p102 = scmp.ne.s32.totalorder %s94, %s97
      %p103 = scmp.eq.s32.totalorder %s9, 0
      %p104 = por %p102, %p103
      %p105 = scmp.ne.s32.totalorder %s94, %s97
      %p106 = scmp.eq.s32.totalorder %s14, 1
      %p107 = por %p105, %p106
      %p108 = scmp.ne.s32.totalorder %s97, %s98
      %p109 = scmp.eq.s32.totalorder %s14, 0
      %p110 = por %p108, %p109
      %p111 = scmp.ne.s32.totalorder %s97, %s98
      %p112 = scmp.eq.s32.totalorder %s15, 1
      %p113 = por %p111, %p112
      %p115 = scmp.ne.s32.totalorder %s98, %s114
      %p116 = scmp.eq.s32.totalorder %s15, 0
      %p117 = por %p115, %p116
      %s118 = ssub.s32 %s16, %s35
      %s119 = ssub.s32 %s17, %s31
      %s120 = sor.u32 %s118, %s119
      %p121 = scmp.eq.s32.totalorder %s120, 0
      %s123 = sadd.s32 %s122, 1
      %s124 = scalar_select %p121, %s122, %s123
      %p127 = pneg %p121
      %p128 = scmp.eq.s32.totalorder %s9, 1
      %p129 = por %p127, %p128
      %p130 = scmp.ne.s32.totalorder %s122, %s125
      %p131 = scmp.eq.s32.totalorder %s9, 0
      %p132 = por %p130, %p131
      %p133 = scmp.ne.s32.totalorder %s122, %s125
      %p134 = scmp.eq.s32.totalorder %s14, 1
      %p135 = por %p133, %p134
      %p136 = scmp.ne.s32.totalorder %s125, %s126
      %p137 = scmp.eq.s32.totalorder %s14, 0
      %p138 = por %p136, %p137
      %p139 = scmp.ne.s32.totalorder %s125, %s126
      %p140 = scmp.eq.s32.totalorder %s15, 1
      %p141 = por %p139, %p140
      %p143 = scmp.ne.s32.totalorder %s126, %s142
      %p144 = scmp.eq.s32.totalorder %s15, 0
      %p145 = por %p143, %p144
      %p146 = scmp.le.s32.totalorder 1, %s9
      %p147 = scmp.lt.s32.totalorder %s9, 3
      %p148 = pnand %p146, %p147
      %p149 = pneg %p148
      // Predicated region
      $region9: #{alexnet_forward.11} parent=5 // pred_check
        _
      $region10: #{alexnet_forward.11} parent=5 // pred_check_branch
        %151 = sbr.rel (%p148) target = $region12
      $region11: #{alexnet_forward.11} parent=5 // pred_region
        %s152 = ssub.s32 %s9, 1
        // Predicated region
        $region13: #{alexnet_forward.11} parent=11 // pred_check
          %p153 = pneg %p56
        $region14: #{alexnet_forward.11} parent=11 // pred_check_branch
          %155 = sbr.rel (%p153) target = $region16
        $region15: #{alexnet_forward.11} parent=11 // pred_region
          %s156 = smul.u32 3, %s21
          %p157 = scmp.lt.s32.totalorder %s19, 0
          %s158 = scalar_select %p157, %s19, 0
          %p159 = scmp.lt.s32.totalorder %s156, 2
          %s160 = scalar_select %p159, %s156, 2
          %s161 = smul.addr %s158, 3
          %s162 = sadd.s32 %s160, %s161
          %s163 = smul.addr %s162, 4
          %s164 = scalar_lea.vmem %s0, %s163
          %s165 = smul.u32 3, %s21
        $region16: #{alexnet_forward.11} parent=11 // pred_fallthru
          _
      $region12: #{alexnet_forward.11} parent=5 // pred_fallthru
        _
      %p166 = scmp.lt.s32.totalorder %s9, 2
      // Predicated region
      $region17: #{alexnet_forward.11} parent=5 // pred_check
        %p167 = pneg %p166
      $region18: #{alexnet_forward.11} parent=5 // pred_check_branch
        %169 = sbr.rel (%p167) target = $region20
      $region19: #{alexnet_forward.11} parent=5 // pred_region
        // Predicated region
        $region21: #{alexnet_forward.11} parent=19 // pred_check
          %p170 = pneg %p78
        $region22: #{alexnet_forward.11} parent=19 // pred_check_branch
          %172 = sbr.rel (%p170) target = $region24
        $region23: #{alexnet_forward.11} parent=19 // pred_region
          %s173 = sand.u32 %s68, 1
          %s174 = sand.u32 %s68, 1
          %s175 = smul.addr %s174, 384
          %s176 = scalar_lea.vmem [#allocation3], %s175
          %s177 = smul.u32 48, %s18
          %s178 = smul.u32 2, %s17
          %s179 = smul.addr %s177, 4
          %s180 = sadd.s32 %s178, %s179
          %s181 = smul.addr %s180, 4
          %s182 = scalar_lea.vmem %s1, %s181
          // Predicated region
          $region25: #{alexnet_forward.11} parent=23 // pred_check
            _
          $region26: #{alexnet_forward.11} parent=23 // pred_check_branch
            %184 = sbr.rel (0) target = $region28
          $region27: #{alexnet_forward.11} parent=23 // pred_region
            // Predicated region
            $region29: #{alexnet_forward.11} parent=27 // pred_check
              _
            $region30: #{alexnet_forward.11} parent=27 // pred_check_branch
              %186 = sbr.rel (0) target = $region32
            $region31: #{alexnet_forward.11} parent=27 // pred_region
              // Predicated region
              $region44: #{alexnet_forward.11} parent=31 // pred_check
                _
              $region45: #{alexnet_forward.11} parent=31 // pred_check_branch
                %295 = sbr.rel (0) target = $region47
              $region46: #{alexnet_forward.11} parent=31 // pred_region
                loop: start=0, step=1, limit=1
                $region48: #{alexnet_forward.11} parent=46 // loop_pre_header
                  _
                $region49: #{alexnet_forward.11} parent=46 // loop_header
                  %s297 = sphi 0, %s301
                  %p298 = scmp.ge.s32.totalorder %s297, 1
                  %s302 = sphi %s182, %s182
                  %s303 = sphi %s176, %s176
                $region50: #{alexnet_forward.11} parent=46 // loop_header_branch
                  %300 = sbr.rel (%p298) target = $region54
                $region51: #{alexnet_forward.11} parent=46 // loop_body
                  %v304 = vld [vmem:[%s302] sm:$0xff]
                  %305 = vst [vmem:[%s303] sm:$0xff] %v304
                  %v306 = vld [vmem:[%s302 + $0x10] sm:$0xff]
                  %307 = vst [vmem:[%s303 + $0x8] sm:$0xff] %v306
                  %v308 = vld [vmem:[%s302 + $0x20] sm:$0xff]
                  %309 = vst [vmem:[%s303 + $0x10] sm:$0xff] %v308
                  %v310 = vld [vmem:[%s302 + $0x30] sm:$0xff]
                  %311 = vst [vmem:[%s303 + $0x18] sm:$0xff] %v310
                  %v312 = vld [vmem:[%s302 + $0x40] sm:$0xff]
                  %313 = vst [vmem:[%s303 + $0x20] sm:$0xff] %v312
                  %v314 = vld [vmem:[%s302 + $0x50] sm:$0xff]
                  %315 = vst [vmem:[%s303 + $0x28] sm:$0xff] %v314
                  %v316 = vld [vmem:[%s302 + $0x60] sm:$0xff]
                  %317 = vst [vmem:[%s303 + $0x30] sm:$0xff] %v316
                  %v318 = vld [vmem:[%s302 + $0x70] sm:$0xff]
                  %319 = vst [vmem:[%s303 + $0x38] sm:$0xff] %v318
                  %v320 = vld [vmem:[%s302 + $0x80] sm:$0xff]
                  %321 = vst [vmem:[%s303 + $0x40] sm:$0xff] %v320
                  %v322 = vld [vmem:[%s302 + $0x90] sm:$0xff]
                  %323 = vst [vmem:[%s303 + $0x48] sm:$0xff] %v322
                  %v324 = vld [vmem:[%s302 + $0xa0] sm:$0xff]
                  %325 = vst [vmem:[%s303 + $0x50] sm:$0xff] %v324
                  %v326 = vld [vmem:[%s302 + $0xb0] sm:$0xff]
                  %327 = vst [vmem:[%s303 + $0x58] sm:$0xff] %v326
                  %v328 = vld [vmem:[%s302 + $0xc0] sm:$0xff]
                  %329 = vst [vmem:[%s303 + $0x60] sm:$0xff] %v328
                  %v330 = vld [vmem:[%s302 + $0xd0] sm:$0xff]
                  %331 = vst [vmem:[%s303 + $0x68] sm:$0xff] %v330
                  %v332 = vld [vmem:[%s302 + $0xe0] sm:$0xff]
                  %333 = vst [vmem:[%s303 + $0x70] sm:$0xff] %v332
                  %v334 = vld [vmem:[%s302 + $0xf0] sm:$0xff]
                  %335 = vst [vmem:[%s303 + $0x78] sm:$0xff] %v334
                  %v336 = vld [vmem:[%s302 + $0x100] sm:$0xff]
                  %337 = vst [vmem:[%s303 + $0x80] sm:$0xff] %v336
                  %v338 = vld [vmem:[%s302 + $0x110] sm:$0xff]
                  %339 = vst [vmem:[%s303 + $0x88] sm:$0xff] %v338
                  %v340 = vld [vmem:[%s302 + $0x120] sm:$0xff]
                  %341 = vst [vmem:[%s303 + $0x90] sm:$0xff] %v340
                  %v342 = vld [vmem:[%s302 + $0x130] sm:$0xff]
                  %343 = vst [vmem:[%s303 + $0x98] sm:$0xff] %v342
                  %v344 = vld [vmem:[%s302 + $0x140] sm:$0xff]
                  %345 = vst [vmem:[%s303 + $0xa0] sm:$0xff] %v344
                  %v346 = vld [vmem:[%s302 + $0x150] sm:$0xff]
                  %347 = vst [vmem:[%s303 + $0xa8] sm:$0xff] %v346
                  %v348 = vld [vmem:[%s302 + $0x160] sm:$0xff]
                  %349 = vst [vmem:[%s303 + $0xb0] sm:$0xff] %v348
                  %v350 = vld [vmem:[%s302 + $0x170] sm:$0xff]
                  %351 = vst [vmem:[%s303 + $0xb8] sm:$0xff] %v350
                  %v352 = vld [vmem:[%s302 + $0x180] sm:$0xff]
                  %353 = vst [vmem:[%s303 + $0xc0] sm:$0xff] %v352
                  %v354 = vld [vmem:[%s302 + $0x190] sm:$0xff]
                  %355 = vst [vmem:[%s303 + $0xc8] sm:$0xff] %v354
                  %v356 = vld [vmem:[%s302 + $0x1a0] sm:$0xff]
                  %357 = vst [vmem:[%s303 + $0xd0] sm:$0xff] %v356
                  %v358 = vld [vmem:[%s302 + $0x1b0] sm:$0xff]
                  %359 = vst [vmem:[%s303 + $0xd8] sm:$0xff] %v358
                  %v360 = vld [vmem:[%s302 + $0x1c0] sm:$0xff]
                  %361 = vst [vmem:[%s303 + $0xe0] sm:$0xff] %v360
                  %v362 = vld [vmem:[%s302 + $0x1d0] sm:$0xff]
                  %363 = vst [vmem:[%s303 + $0xe8] sm:$0xff] %v362
                  %v364 = vld [vmem:[%s302 + $0x1e0] sm:$0xff]
                  %365 = vst [vmem:[%s303 + $0xf0] sm:$0xff] %v364
                  %v366 = vld [vmem:[%s302 + $0x1f0] sm:$0xff]
                  %367 = vst [vmem:[%s303 + $0xf8] sm:$0xff] %v366
                  %v368 = vld [vmem:[%s302 + $0x200] sm:$0xff]
                  %369 = vst [vmem:[%s303 + $0x100] sm:$0xff] %v368
                  %v370 = vld [vmem:[%s302 + $0x210] sm:$0xff]
                  %371 = vst [vmem:[%s303 + $0x108] sm:$0xff] %v370
                  %v372 = vld [vmem:[%s302 + $0x220] sm:$0xff]
                  %373 = vst [vmem:[%s303 + $0x110] sm:$0xff] %v372
                  %v374 = vld [vmem:[%s302 + $0x230] sm:$0xff]
                  %375 = vst [vmem:[%s303 + $0x118] sm:$0xff] %v374
                  %v376 = vld [vmem:[%s302 + $0x240] sm:$0xff]
                  %377 = vst [vmem:[%s303 + $0x120] sm:$0xff] %v376
                  %v378 = vld [vmem:[%s302 + $0x250] sm:$0xff]
                  %379 = vst [vmem:[%s303 + $0x128] sm:$0xff] %v378
                  %v380 = vld [vmem:[%s302 + $0x260] sm:$0xff]
                  %381 = vst [vmem:[%s303 + $0x130] sm:$0xff] %v380
                  %v382 = vld [vmem:[%s302 + $0x270] sm:$0xff]
                  %383 = vst [vmem:[%s303 + $0x138] sm:$0xff] %v382
                  %v384 = vld [vmem:[%s302 + $0x280] sm:$0xff]
                  %385 = vst [vmem:[%s303 + $0x140] sm:$0xff] %v384
                  %v386 = vld [vmem:[%s302 + $0x290] sm:$0xff]
                  %387 = vst [vmem:[%s303 + $0x148] sm:$0xff] %v386
                  %v388 = vld [vmem:[%s302 + $0x2a0] sm:$0xff]
                  %389 = vst [vmem:[%s303 + $0x150] sm:$0xff] %v388
                  %v390 = vld [vmem:[%s302 + $0x2b0] sm:$0xff]
                  %391 = vst [vmem:[%s303 + $0x158] sm:$0xff] %v390
                  %v392 = vld [vmem:[%s302 + $0x2c0] sm:$0xff]
                  %393 = vst [vmem:[%s303 + $0x160] sm:$0xff] %v392
                  %v394 = vld [vmem:[%s302 + $0x2d0] sm:$0xff]
                  %395 = vst [vmem:[%s303 + $0x168] sm:$0xff] %v394
                  %v396 = vld [vmem:[%s302 + $0x2e0] sm:$0xff]
                  %397 = vst [vmem:[%s303 + $0x170] sm:$0xff] %v396
                  %v398 = vld [vmem:[%s302 + $0x2f0] sm:$0xff]
                  %399 = vst [vmem:[%s303 + $0x178] sm:$0xff] %v398
                $region52: #{alexnet_forward.11} parent=46 // loop_footer
                  %s301 = sadd.s32 1, %s297
                $region53: #{alexnet_forward.11} parent=46 // loop_footer_branch
                  %296 = sbr.rel target = $region49
                $region54: #{alexnet_forward.11} parent=46 // loop_exit
                  _
              $region47: #{alexnet_forward.11} parent=31 // pred_fallthru
                _
              // Predicated region
              $region55: #{alexnet_forward.11} parent=31 // pred_check
                _
              $region56: #{alexnet_forward.11} parent=31 // pred_check_branch
                %401 = sbr.rel target = $region58
              $region57: #{alexnet_forward.11} parent=31 // pred_region
                _
              $region58: #{alexnet_forward.11} parent=31 // pred_fallthru
                _
            $region32: #{alexnet_forward.11} parent=27 // pred_fallthru
              _
            // Predicated region
            $region33: #{alexnet_forward.11} parent=27 // pred_check
              _
            $region34: #{alexnet_forward.11} parent=27 // pred_check_branch
              %188 = sbr.rel target = $region36
            $region35: #{alexnet_forward.11} parent=27 // pred_region
              loop: start=0, step=1, limit=1
              $region37: #{alexnet_forward.11} parent=35 // loop_pre_header
                _
              $region38: #{alexnet_forward.11} parent=35 // loop_header
                %s191 = sphi 0, %s195
                %p192 = scmp.ge.s32.totalorder %s191, 1
                %s196 = sphi %s182, %s182
                %s197 = sphi %s176, %s176
              $region39: #{alexnet_forward.11} parent=35 // loop_header_branch
                %194 = sbr.rel (%p192) target = $region43
              $region40: #{alexnet_forward.11} parent=35 // loop_body
                %v198 = vld [vmem:[%s196] sm:$0xff]
                %199 = vst [vmem:[%s197] sm:$0xff] %v198
                %v200 = vld [vmem:[%s196 + $0x10] sm:$0xff]
                %201 = vst [vmem:[%s197 + $0x8] sm:$0xff] %v200
                %v202 = vld [vmem:[%s196 + $0x20] sm:$0xff]
                %203 = vst [vmem:[%s197 + $0x10] sm:$0xff] %v202
                %v204 = vld [vmem:[%s196 + $0x30] sm:$0xff]
                %205 = vst [vmem:[%s197 + $0x18] sm:$0xff] %v204
                %v206 = vld [vmem:[%s196 + $0x40] sm:$0xff]
                %207 = vst [vmem:[%s197 + $0x20] sm:$0xff] %v206
                %v208 = vld [vmem:[%s196 + $0x50] sm:$0xff]
                %209 = vst [vmem:[%s197 + $0x28] sm:$0xff] %v208
                %v210 = vld [vmem:[%s196 + $0x60] sm:$0xff]
                %211 = vst [vmem:[%s197 + $0x30] sm:$0xff] %v210
                %v212 = vld [vmem:[%s196 + $0x70] sm:$0xff]
                %213 = vst [vmem:[%s197 + $0x38] sm:$0xff] %v212
                %v214 = vld [vmem:[%s196 + $0x80] sm:$0xff]
                %215 = vst [vmem:[%s197 + $0x40] sm:$0xff] %v214
                %v216 = vld [vmem:[%s196 + $0x90] sm:$0xff]
                %217 = vst [vmem:[%s197 + $0x48] sm:$0xff] %v216
                %v218 = vld [vmem:[%s196 + $0xa0] sm:$0xff]
                %219 = vst [vmem:[%s197 + $0x50] sm:$0xff] %v218
                %v220 = vld [vmem:[%s196 + $0xb0] sm:$0xff]
                %221 = vst [vmem:[%s197 + $0x58] sm:$0xff] %v220
                %v222 = vld [vmem:[%s196 + $0xc0] sm:$0xff]
                %223 = vst [vmem:[%s197 + $0x60] sm:$0xff] %v222
                %v224 = vld [vmem:[%s196 + $0xd0] sm:$0xff]
                %225 = vst [vmem:[%s197 + $0x68] sm:$0xff] %v224
                %v226 = vld [vmem:[%s196 + $0xe0] sm:$0xff]
                %227 = vst [vmem:[%s197 + $0x70] sm:$0xff] %v226
                %v228 = vld [vmem:[%s196 + $0xf0] sm:$0xff]
                %229 = vst [vmem:[%s197 + $0x78] sm:$0xff] %v228
                %v230 = vld [vmem:[%s196 + $0x100] sm:$0xff]
                %231 = vst [vmem:[%s197 + $0x80] sm:$0xff] %v230
                %v232 = vld [vmem:[%s196 + $0x110] sm:$0xff]
                %233 = vst [vmem:[%s197 + $0x88] sm:$0xff] %v232
                %v234 = vld [vmem:[%s196 + $0x120] sm:$0xff]
                %235 = vst [vmem:[%s197 + $0x90] sm:$0xff] %v234
                %v236 = vld [vmem:[%s196 + $0x130] sm:$0xff]
                %237 = vst [vmem:[%s197 + $0x98] sm:$0xff] %v236
                %v238 = vld [vmem:[%s196 + $0x140] sm:$0xff]
                %239 = vst [vmem:[%s197 + $0xa0] sm:$0xff] %v238
                %v240 = vld [vmem:[%s196 + $0x150] sm:$0xff]
                %241 = vst [vmem:[%s197 + $0xa8] sm:$0xff] %v240
                %v242 = vld [vmem:[%s196 + $0x160] sm:$0xff]
                %243 = vst [vmem:[%s197 + $0xb0] sm:$0xff] %v242
                %v244 = vld [vmem:[%s196 + $0x170] sm:$0xff]
                %245 = vst [vmem:[%s197 + $0xb8] sm:$0xff] %v244
                %v246 = vld [vmem:[%s196 + $0x180] sm:$0xff]
                %247 = vst [vmem:[%s197 + $0xc0] sm:$0xff] %v246
                %v248 = vld [vmem:[%s196 + $0x190] sm:$0xff]
                %249 = vst [vmem:[%s197 + $0xc8] sm:$0xff] %v248
                %v250 = vld [vmem:[%s196 + $0x1a0] sm:$0xff]
                %251 = vst [vmem:[%s197 + $0xd0] sm:$0xff] %v250
                %v252 = vld [vmem:[%s196 + $0x1b0] sm:$0xff]
                %253 = vst [vmem:[%s197 + $0xd8] sm:$0xff] %v252
                %v254 = vld [vmem:[%s196 + $0x1c0] sm:$0xff]
                %255 = vst [vmem:[%s197 + $0xe0] sm:$0xff] %v254
                %v256 = vld [vmem:[%s196 + $0x1d0] sm:$0xff]
                %257 = vst [vmem:[%s197 + $0xe8] sm:$0xff] %v256
                %v258 = vld [vmem:[%s196 + $0x1e0] sm:$0xff]
                %259 = vst [vmem:[%s197 + $0xf0] sm:$0xff] %v258
                %v260 = vld [vmem:[%s196 + $0x1f0] sm:$0xff]
                %261 = vst [vmem:[%s197 + $0xf8] sm:$0xff] %v260
                %v262 = vld [vmem:[%s196 + $0x200] sm:$0xff]
                %263 = vst [vmem:[%s197 + $0x100] sm:$0xff] %v262
                %v264 = vld [vmem:[%s196 + $0x210] sm:$0xff]
                %265 = vst [vmem:[%s197 + $0x108] sm:$0xff] %v264
                %v266 = vld [vmem:[%s196 + $0x220] sm:$0xff]
                %267 = vst [vmem:[%s197 + $0x110] sm:$0xff] %v266
                %v268 = vld [vmem:[%s196 + $0x230] sm:$0xff]
                %269 = vst [vmem:[%s197 + $0x118] sm:$0xff] %v268
                %v270 = vld [vmem:[%s196 + $0x240] sm:$0xff]
                %271 = vst [vmem:[%s197 + $0x120] sm:$0xff] %v270
                %v272 = vld [vmem:[%s196 + $0x250] sm:$0xff]
                %273 = vst [vmem:[%s197 + $0x128] sm:$0xff] %v272
                %v274 = vld [vmem:[%s196 + $0x260] sm:$0xff]
                %275 = vst [vmem:[%s197 + $0x130] sm:$0xff] %v274
                %v276 = vld [vmem:[%s196 + $0x270] sm:$0xff]
                %277 = vst [vmem:[%s197 + $0x138] sm:$0xff] %v276
                %v278 = vld [vmem:[%s196 + $0x280] sm:$0xff]
                %279 = vst [vmem:[%s197 + $0x140] sm:$0xff] %v278
                %v280 = vld [vmem:[%s196 + $0x290] sm:$0xff]
                %281 = vst [vmem:[%s197 + $0x148] sm:$0xff] %v280
                %v282 = vld [vmem:[%s196 + $0x2a0] sm:$0xff]
                %283 = vst [vmem:[%s197 + $0x150] sm:$0xff] %v282
                %v284 = vld [vmem:[%s196 + $0x2b0] sm:$0xff]
                %285 = vst [vmem:[%s197 + $0x158] sm:$0xff] %v284
                %v286 = vld [vmem:[%s196 + $0x2c0] sm:$0xff]
                %287 = vst [vmem:[%s197 + $0x160] sm:$0xff] %v286
                %v288 = vld [vmem:[%s196 + $0x2d0] sm:$0xff]
                %289 = vst [vmem:[%s197 + $0x168] sm:$0xff] %v288
                %v290 = vld [vmem:[%s196 + $0x2e0] sm:$0xff]
                %291 = vst [vmem:[%s197 + $0x170] sm:$0xff] %v290
                %v292 = vld [vmem:[%s196 + $0x2f0] sm:$0xff]
                %293 = vst [vmem:[%s197 + $0x178] sm:$0xff] %v292
              $region41: #{alexnet_forward.11} parent=35 // loop_footer
                %s195 = sadd.s32 1, %s191
              $region42: #{alexnet_forward.11} parent=35 // loop_footer_branch
                %190 = sbr.rel target = $region38
              $region43: #{alexnet_forward.11} parent=35 // loop_exit
                _
            $region36: #{alexnet_forward.11} parent=27 // pred_fallthru
              _
          $region28: #{alexnet_forward.11} parent=23 // pred_fallthru
            _
          %402 = vnop
        $region24: #{alexnet_forward.11} parent=19 // pred_fallthru
          _
        // Predicated region
        $region59: #{alexnet_forward.11} parent=19 // pred_check
          %p403 = pneg %p104
        $region60: #{alexnet_forward.11} parent=19 // pred_check_branch
          %405 = sbr.rel (%p403) target = $region62
        $region61: #{alexnet_forward.11} parent=19 // pred_region
          %s406 = smul.u32 2, %s17
          %p407 = scmp.lt.s32.totalorder %s406, 3
          %s408 = scalar_select %p407, %s406, 3
          %s409 = scalar_lea.vmem %s2, %s408
          %s410 = smul.u32 2, %s17
        $region62: #{alexnet_forward.11} parent=19 // pred_fallthru
          _
      $region20: #{alexnet_forward.11} parent=5 // pred_fallthru
        _
      %p411 = scmp.le.s32.totalorder 1, %s9
      %p412 = scmp.lt.s32.totalorder %s9, 3
      %p413 = pnand %p411, %p412
      %p414 = pneg %p413
      // Predicated region
      $region63: #{alexnet_forward.11} parent=5 // pred_check
        _
      $region64: #{alexnet_forward.11} parent=5 // pred_check_branch
        %416 = sbr.rel (%p413) target = $region66
      $region65: #{alexnet_forward.11} parent=5 // pred_region
        %s417 = ssub.s32 %s9, 1
        %s418 = sand.u32 %s71, 1
        %s419 = sand.u32 %s71, 1
        %s420 = smul.addr %s419, 384
        %s421 = scalar_lea.vmem [#allocation3], %s420
        // Predicated region
        $region67: #{alexnet_forward.11} parent=65 // pred_check
          %p422 = pneg %p84
        $region68: #{alexnet_forward.11} parent=65 // pred_check_branch
          %424 = sbr.rel (%p422) target = $region70
        $region69: #{alexnet_forward.11} parent=65 // pred_region
          _
        $region70: #{alexnet_forward.11} parent=65 // pred_fallthru
          _
        %s425 = smul.u32 3, %s21
        %p426 = scmp.lt.s32.totalorder %s19, 0
        %s427 = scalar_select %p426, %s19, 0
        %p428 = scmp.lt.s32.totalorder %s425, 2
        %s429 = scalar_select %p428, %s425, 2
        %s430 = smul.addr %s427, 3
        %s431 = sadd.s32 %s429, %s430
        %s432 = smul.addr %s431, 4
        %s433 = scalar_lea.vmem %s0, %s432
        %p434 = pneg %p56
        %p435 = pneg %p53
        %s436 = sand.u32 %s71, 1
        %s437 = sand.u32 %s71, 1
        %s438 = smul.addr %s437, 384
        %s439 = scalar_lea.vmem [#allocation3], %s438
        %p440 = pneg %p84
        %p441 = pneg %p81
        %s442 = smul.u32 2, %s20
        %p443 = scmp.lt.s32.totalorder %s442, 3
        %s444 = scalar_select %p443, %s442, 3
        %s445 = scalar_lea.vmem %s2, %s444
        %p446 = pneg %p110
        %p447 = pneg %p107
        %p448 = pneg %p138
        %p449 = pneg %p135
        %s450 = smul.u32 2, %s20
        %p451 = scmp.lt.s32.totalorder %s19, 0
        %s452 = scalar_select %p451, %s19, 0
        %p453 = scmp.lt.s32.totalorder %s450, 3
        %s454 = scalar_select %p453, %s450, 3
        %s455 = smul.addr %s452, 4
        %s456 = sadd.s32 %s454, %s455
        %s457 = smul.addr %s456, 8
        %s458 = scalar_lea.vmem %s3, %s457
        %s459 = smul.u32 3, %s21
        %p460 = scmp.lt.s32.totalorder %s19, 0
        %s461 = scalar_select %p460, %s19, 0
        %p462 = scmp.lt.s32.totalorder %s459, 2
        %s463 = scalar_select %p462, %s459, 2
        %s464 = smul.addr %s461, 3
        %s465 = sadd.s32 %s463, %s464
        %s466 = smul.addr %s465, 4
        %s467 = scalar_lea.vmem %s0, %s466
        %s468 = smul.u32 3, %s21
        %s469 = smul.u32 48, %s21
        %s470 = smul.u32 2, %s20
        %s471 = smul.u32 2, %s20
        %p472 = scmp.lt.s32.totalorder %s471, 3
        %s473 = scalar_select %p472, %s471, 3
        %s474 = scalar_lea.vmem %s2, %s473
        %s475 = smul.u32 2, %s20
        %s476 = smul.u32 2, %s20
        %p477 = scmp.lt.s32.totalorder %s19, 0
        %s478 = scalar_select %p477, %s19, 0
        %p479 = scmp.lt.s32.totalorder %s476, 3
        %s480 = scalar_select %p479, %s476, 3
        %s481 = smul.addr %s478, 4
        %s482 = sadd.s32 %s480, %s481
        %s483 = smul.addr %s482, 8
        %s484 = scalar_lea.vmem %s3, %s483
        %s485 = smul.u32 2, %s20
        %p487 = scmp.eq.s32.totalorder %s21, 0
        // Predicated region
        $region71: #{alexnet_forward.11} parent=65 // pred_check
          %p488 = pneg %p487
        $region72: #{alexnet_forward.11} parent=65 // pred_check_branch
          %490 = sbr.rel (%p488) target = $region74
        $region73: #{alexnet_forward.11} parent=65 // pred_region
          %491 = vst [vmem:[#allocation2] sm:$0xff] 0.0
          %492 = vst [vmem:[#allocation2 + $0x8] sm:$0xff] 0.0
        $region74: #{alexnet_forward.11} parent=65 // pred_fallthru
          _
        %v493 = vld [vmem:[#allocation2] sm:$0xff]
        %v494 = vld [vmem:[#allocation2 + $0x8] sm:$0xff]
        %v495 = vld [vmem:[%s467] sm:$0xff]
        %v496 = vld [vmem:[%s467 + $0x8] sm:$0xf]
        %v497 = vld [vmem:[%s421] sm:$0xff]
        %v498 = vld [vmem:[%s421 + $0x8] sm:$0xff]
        %v499 = vld [vmem:[%s421 + $0x10] sm:$0xff]
        %v500 = vld [vmem:[%s421 + $0x18] sm:$0xff]
        %v501 = vld [vmem:[%s421 + $0x20] sm:$0xff]
        %v502 = vld [vmem:[%s421 + $0x28] sm:$0xff]
        %v503 = vld [vmem:[%s421 + $0x30] sm:$0xff]
        %v504 = vld [vmem:[%s421 + $0x38] sm:$0xff]
        %v505 = vld [vmem:[%s421 + $0x40] sm:$0xff]
        %v506 = vld [vmem:[%s421 + $0x48] sm:$0xff]
        %v507 = vld [vmem:[%s421 + $0x50] sm:$0xff]
        %v508 = vld [vmem:[%s421 + $0x58] sm:$0xff]
        %v509 = vld [vmem:[%s421 + $0x60] sm:$0xff]
        %v510 = vld [vmem:[%s421 + $0x68] sm:$0xff]
        %v511 = vld [vmem:[%s421 + $0x70] sm:$0xff]
        %v512 = vld [vmem:[%s421 + $0x78] sm:$0xff]
        %v513 = vld [vmem:[%s421 + $0x80] sm:$0xff]
        %v514 = vld [vmem:[%s421 + $0x88] sm:$0xff]
        %v515 = vld [vmem:[%s421 + $0x90] sm:$0xff]
        %v516 = vld [vmem:[%s421 + $0x98] sm:$0xff]
        %v517 = vld [vmem:[%s421 + $0xa0] sm:$0xff]
        %v518 = vld [vmem:[%s421 + $0xa8] sm:$0xff]
        %v519 = vld [vmem:[%s421 + $0xb0] sm:$0xff]
        %v520 = vld [vmem:[%s421 + $0xb8] sm:$0xff]
        %v521 = vld [vmem:[%s421 + $0xc0] sm:$0xff]
        %v522 = vld [vmem:[%s421 + $0xc8] sm:$0xff]
        %v523 = vld [vmem:[%s421 + $0xd0] sm:$0xff]
        %v524 = vld [vmem:[%s421 + $0xd8] sm:$0xff]
        %v525 = vld [vmem:[%s421 + $0xe0] sm:$0xff]
        %v526 = vld [vmem:[%s421 + $0xe8] sm:$0xff]
        %v527 = vld [vmem:[%s421 + $0xf0] sm:$0xff]
        %v528 = vld [vmem:[%s421 + $0xf8] sm:$0xff]
        %v529 = vld [vmem:[%s421 + $0x100] sm:$0xff]
        %v530 = vld [vmem:[%s421 + $0x108] sm:$0xff]
        %v531 = vld [vmem:[%s421 + $0x110] sm:$0xff]
        %v532 = vld [vmem:[%s421 + $0x118] sm:$0xff]
        %v533 = vld [vmem:[%s421 + $0x120] sm:$0xff]
        %v534 = vld [vmem:[%s421 + $0x128] sm:$0xff]
        %v535 = vld [vmem:[%s421 + $0x130] sm:$0xff]
        %v536 = vld [vmem:[%s421 + $0x138] sm:$0xff]
        %v537 = vld [vmem:[%s421 + $0x140] sm:$0xff]
        %v538 = vld [vmem:[%s421 + $0x148] sm:$0xff]
        %v539 = vld [vmem:[%s421 + $0x150] sm:$0xff]
        %v540 = vld [vmem:[%s421 + $0x158] sm:$0xff]
        %v541 = vld [vmem:[%s421 + $0x160] sm:$0xff]
        %v542 = vld [vmem:[%s421 + $0x168] sm:$0xff]
        %v543 = vld [vmem:[%s421 + $0x170] sm:$0xff]
        %v544 = vld [vmem:[%s421 + $0x178] sm:$0xff]
        %v547 = vunpack.c.l.b16 %v495
        %v548 = vunpack.c.h.b16 %v495
        %v549 = vunpack.c.l.b16 %v496
        %v550 = vpack.c.b16 %v547, %v547
        %v551 = vpack.c.b16 %v548, %v548
        %v552 = vpack.c.b16 %v549, %v549
        %v604 = vunpack.c.l.b16 %v497
        %v605 = vunpack.c.h.b16 %v497
        %v606 = vunpack.c.l.b16 %v498
        %v607 = vunpack.c.h.b16 %v498
        %v608 = vunpack.c.l.b16 %v499
        %v609 = vunpack.c.h.b16 %v499
        %v610 = vunpack.c.l.b16 %v500
        %v611 = vunpack.c.h.b16 %v500
        %v612 = vunpack.c.l.b16 %v501
        %v613 = vunpack.c.h.b16 %v501
        %v614 = vunpack.c.l.b16 %v502
        %v615 = vunpack.c.h.b16 %v502
        %v616 = vunpack.c.l.b16 %v503
        %v617 = vunpack.c.h.b16 %v503
        %v618 = vunpack.c.l.b16 %v504
        %v619 = vunpack.c.h.b16 %v504
        %v620 = vunpack.c.l.b16 %v505
        %v621 = vunpack.c.h.b16 %v505
        %v622 = vunpack.c.l.b16 %v506
        %v623 = vunpack.c.h.b16 %v506
        %v624 = vunpack.c.l.b16 %v507
        %v625 = vunpack.c.h.b16 %v507
        %v626 = vunpack.c.l.b16 %v508
        %v627 = vunpack.c.h.b16 %v508
        %v628 = vunpack.c.l.b16 %v509
        %v629 = vunpack.c.h.b16 %v509
        %v630 = vunpack.c.l.b16 %v510
        %v631 = vunpack.c.h.b16 %v510
        %v632 = vunpack.c.l.b16 %v511
        %v633 = vunpack.c.h.b16 %v511
        %v634 = vunpack.c.l.b16 %v512
        %v635 = vunpack.c.h.b16 %v512
        %v636 = vunpack.c.l.b16 %v513
        %v637 = vunpack.c.h.b16 %v513
        %v638 = vunpack.c.l.b16 %v514
        %v639 = vunpack.c.h.b16 %v514
        %v640 = vunpack.c.l.b16 %v515
        %v641 = vunpack.c.h.b16 %v515
        %v642 = vunpack.c.l.b16 %v516
        %v643 = vunpack.c.h.b16 %v516
        %v644 = vunpack.c.l.b16 %v517
        %v645 = vunpack.c.h.b16 %v517
        %v646 = vunpack.c.l.b16 %v518
        %v647 = vunpack.c.h.b16 %v518
        %v648 = vunpack.c.l.b16 %v519
        %v649 = vunpack.c.h.b16 %v519
        %v650 = vunpack.c.l.b16 %v520
        %v651 = vunpack.c.h.b16 %v520
        %v652 = vunpack.c.l.b16 %v521
        %v653 = vunpack.c.h.b16 %v521
        %v654 = vunpack.c.l.b16 %v522
        %v655 = vunpack.c.h.b16 %v522
        %v656 = vunpack.c.l.b16 %v523
        %v657 = vunpack.c.h.b16 %v523
        %v658 = vunpack.c.l.b16 %v524
        %v659 = vunpack.c.h.b16 %v524
        %v660 = vunpack.c.l.b16 %v525
        %v661 = vunpack.c.h.b16 %v525
        %v662 = vunpack.c.l.b16 %v526
        %v663 = vunpack.c.h.b16 %v526
        %v664 = vunpack.c.l.b16 %v527
        %v665 = vunpack.c.h.b16 %v527
        %v666 = vunpack.c.l.b16 %v528
        %v667 = vunpack.c.h.b16 %v528
        %v668 = vunpack.c.l.b16 %v529
        %v669 = vunpack.c.h.b16 %v529
        %v670 = vunpack.c.l.b16 %v530
        %v671 = vunpack.c.h.b16 %v530
        %v672 = vunpack.c.l.b16 %v531
        %v673 = vunpack.c.h.b16 %v531
        %v674 = vunpack.c.l.b16 %v532
        %v675 = vunpack.c.h.b16 %v532
        %v676 = vunpack.c.l.b16 %v533
        %v677 = vunpack.c.h.b16 %v533
        %v678 = vunpack.c.l.b16 %v534
        %v679 = vunpack.c.h.b16 %v534
        %v680 = vunpack.c.l.b16 %v535
        %v681 = vunpack.c.h.b16 %v535
        %v682 = vunpack.c.l.b16 %v536
        %v683 = vunpack.c.h.b16 %v536
        %v684 = vunpack.c.l.b16 %v537
        %v685 = vunpack.c.h.b16 %v537
        %v686 = vunpack.c.l.b16 %v538
        %v687 = vunpack.c.h.b16 %v538
        %v688 = vunpack.c.l.b16 %v539
        %v689 = vunpack.c.h.b16 %v539
        %v690 = vunpack.c.l.b16 %v540
        %v691 = vunpack.c.h.b16 %v540
        %v692 = vunpack.c.l.b16 %v541
        %v693 = vunpack.c.h.b16 %v541
        %v694 = vunpack.c.l.b16 %v542
        %v695 = vunpack.c.h.b16 %v542
        %v696 = vunpack.c.l.b16 %v543
        %v697 = vunpack.c.h.b16 %v543
        %v698 = vunpack.c.l.b16 %v544
        %v699 = vunpack.c.h.b16 %v544
        %v700 = vpack.c.b16 %v606, %v604
        %v701 = vpack.c.b16 %v607, %v605
        %v702 = vpack.c.b16 %v610, %v608
        %v703 = vpack.c.b16 %v611, %v609
        %v704 = vpack.c.b16 %v614, %v612
        %v705 = vpack.c.b16 %v615, %v613
        %v706 = vpack.c.b16 %v618, %v616
        %v707 = vpack.c.b16 %v619, %v617
        %v708 = vpack.c.b16 %v622, %v620
        %v709 = vpack.c.b16 %v623, %v621
        %v710 = vpack.c.b16 %v626, %v624
        %v711 = vpack.c.b16 %v627, %v625
        %v712 = vpack.c.b16 %v630, %v628
        %v713 = vpack.c.b16 %v631, %v629
        %v714 = vpack.c.b16 %v634, %v632
        %v715 = vpack.c.b16 %v635, %v633
        %v716 = vpack.c.b16 %v638, %v636
        %v717 = vpack.c.b16 %v639, %v637
        %v718 = vpack.c.b16 %v642, %v640
        %v719 = vpack.c.b16 %v643, %v641
        %v720 = vpack.c.b16 %v646, %v644
        %v721 = vpack.c.b16 %v647, %v645
        %v722 = vpack.c.b16 %v650, %v648
        %v723 = vpack.c.b16 %v651, %v649
        %v724 = vpack.c.b16 %v654, %v652
        %v725 = vpack.c.b16 %v655, %v653
        %v726 = vpack.c.b16 %v658, %v656
        %v727 = vpack.c.b16 %v659, %v657
        %v728 = vpack.c.b16 %v662, %v660
        %v729 = vpack.c.b16 %v663, %v661
        %v730 = vpack.c.b16 %v666, %v664
        %v731 = vpack.c.b16 %v667, %v665
        %v732 = vpack.c.b16 %v670, %v668
        %v733 = vpack.c.b16 %v671, %v669
        %v734 = vpack.c.b16 %v674, %v672
        %v735 = vpack.c.b16 %v675, %v673
        %v736 = vpack.c.b16 %v678, %v676
        %v737 = vpack.c.b16 %v679, %v677
        %v738 = vpack.c.b16 %v682, %v680
        %v739 = vpack.c.b16 %v683, %v681
        %v740 = vpack.c.b16 %v686, %v684
        %v741 = vpack.c.b16 %v687, %v685
        %v742 = vpack.c.b16 %v690, %v688
        %v743 = vpack.c.b16 %v691, %v689
        %v744 = vpack.c.b16 %v694, %v692
        %v745 = vpack.c.b16 %v695, %v693
        %v746 = vpack.c.b16 %v698, %v696
        %v747 = vpack.c.b16 %v699, %v697
        %796 = vmatprep.subr.bf16.mxu0 %v701
        %797 = vmatpush1.bf16.msra.mxu0 %v700
        %798 = vmatprep.subr.bf16.mxu0 %v703
        %799 = vmatpush1.bf16.msra.mxu0 %v702
        %800 = vmatprep.subr.bf16.mxu0 %v705
        %801 = vmatpush1.bf16.msra.mxu0 %v704
        %802 = vmatprep.subr.bf16.mxu0 %v707
        %803 = vmatpush1.bf16.msra.mxu0 %v706
        %804 = vmatprep.subr.bf16.mxu0 %v709
        %805 = vmatpush1.bf16.msra.mxu0 %v708
        %806 = vmatprep.subr.bf16.mxu0 %v711
        %807 = vmatpush1.bf16.msra.mxu0 %v710
        %808 = vmatprep.subr.bf16.mxu0 %v713
        %809 = vmatpush1.bf16.msra.mxu0 %v712
        %810 = vmatprep.subr.bf16.mxu0 %v715
        %811 = vmatpush1.bf16.msra.mxu0 %v714
        %812 = vmatprep.subr.bf16.mxu0 %v717
        %813 = vmatpush1.bf16.msra.mxu0 %v716
        %814 = vmatprep.subr.bf16.mxu0 %v719
        %815 = vmatpush1.bf16.msra.mxu0 %v718
        %816 = vmatprep.subr.bf16.mxu0 %v721
        %817 = vmatpush1.bf16.msra.mxu0 %v720
        %818 = vmatprep.subr.bf16.mxu0 %v723
        %819 = vmatpush1.bf16.msra.mxu0 %v722
        %820 = vmatprep.subr.bf16.mxu0 %v725
        %821 = vmatpush1.bf16.msra.mxu0 %v724
        %822 = vmatprep.subr.bf16.mxu0 %v727
        %823 = vmatpush1.bf16.msra.mxu0 %v726
        %824 = vmatprep.subr.bf16.mxu0 %v729
        %825 = vmatpush1.bf16.msra.mxu0 %v728
        %826 = vmatprep.subr.bf16.mxu0 %v731
        %827 = vmatpush1.bf16.msra.mxu0 %v730
        %828 = vmatprep.mubr.bf16.mxu0 %v551
        %829 = vmatmul.mubr.bf16.gmra.mrb[0].mxu0 %v550
        %v830 = vpop.f32.mrb[0].mxu0
        %v831 = vadd.f32 0.0, %v830
        %v832 = vpop.f32.mrb[0].mxu0
        %v833 = vadd.f32 0.0, %v832
        %v834 = vpop.f32.mrb[0].mxu0
        %v835 = vpop.f32.mrb[0].mxu0
        %836 = vdwg.mxu0
        %837 = vmatprep.subr.bf16.mxu0 %v733
        %838 = vmatpush1.bf16.msra.mxu0 %v732
        %839 = vmatprep.subr.bf16.mxu0 %v735
        %840 = vmatpush1.bf16.msra.mxu0 %v734
        %841 = vmatprep.subr.bf16.mxu0 %v737
        %842 = vmatpush1.bf16.msra.mxu0 %v736
        %843 = vmatprep.subr.bf16.mxu0 %v739
        %844 = vmatpush1.bf16.msra.mxu0 %v738
        %845 = vmatprep.subr.bf16.mxu0 %v741
        %846 = vmatpush1.bf16.msra.mxu0 %v740
        %847 = vmatprep.subr.bf16.mxu0 %v743
        %848 = vmatpush1.bf16.msra.mxu0 %v742
        %849 = vmatprep.subr.bf16.mxu0 %v745
        %850 = vmatpush1.bf16.msra.mxu0 %v744
        %851 = vmatprep.subr.bf16.mxu0 %v747
        %852 = vmatpush1.bf16.msra.mxu0 %v746
        %853 = vmatprep.subr.bf16.mxu0 0
        %854 = vmatpush1.bf16.msra.mxu0 0
        %855 = vmatprep.subr.bf16.mxu0 0
        %856 = vmatpush1.bf16.msra.mxu0 0
        %857 = vmatprep.subr.bf16.mxu0 0
        %858 = vmatpush1.bf16.msra.mxu0 0
        %859 = vmatprep.subr.bf16.mxu0 0
        %860 = vmatpush1.bf16.msra.mxu0 0
        %861 = vmatprep.subr.bf16.mxu0 0
        %862 = vmatpush1.bf16.msra.mxu0 0
        %863 = vmatprep.subr.bf16.mxu0 0
        %864 = vmatpush1.bf16.msra.mxu0 0
        %865 = vmatprep.subr.bf16.mxu0 0
        %866 = vmatpush1.bf16.msra.mxu0 0
        %867 = vmatprep.subr.bf16.mxu0 0
        %868 = vmatpush1.bf16.msra.mxu0 0
        %869 = vmatprep.mubr.bf16.mxu0 0
        %870 = vmatmul.mubr.bf16.gmra.mrb[0].mxu0 %v552
        %v871 = vpop.f32.mrb[0].mxu0
        %v872 = vadd.f32 %v831, %v871
        %v873 = vpop.f32.mrb[0].mxu0
        %v874 = vadd.f32 %v833, %v873
        %v875 = vpop.f32.mrb[0].mxu0
        %v876 = vpop.f32.mrb[0].mxu0
        %877 = vdwg.mxu0
        %v878 = vadd.f32 %v493, %v872
        %v879 = vadd.f32 %v494, %v874
        %880 = vst [vmem:[#allocation2] sm:$0xff] %v878
        %881 = vst [vmem:[#allocation2 + $0x8] sm:$0xff] %v879
        // Predicated region
        $region75: #{alexnet_forward.11} parent=65 // pred_check
          %p882 = pneg %p487
        $region76: #{alexnet_forward.11} parent=65 // pred_check_branch
          %884 = sbr.rel (%p882) target = $region78
        $region77: #{alexnet_forward.11} parent=65 // pred_region
          %v885 = vld [vmem:[#allocation2] sm:$0xff]
          %v886 = vld [vmem:[#allocation2 + $0x8] sm:$0xff]
          %v887 = vld [vmem:[%s474] sm:$0x3]
          %v889 = vlaneseq
          %v890 = vshrl.u32 %v889, 7
          %v891 = vsub.s32 0, %v890
          %v892 = vrot.slane %v887, %v891
          %v893 = vlaneseq
          %v894 = vshrl.u32 %v893, 7
          %v895 = vsub.s32 1, %v894
          %v896 = vrot.slane %v887, %v895
          %v899 = vadd.f32 %v885, %v892
          %v900 = vadd.f32 %v886, %v896
          %v901 = vmax.f32 %v899, 0.0
          %v902 = vmax.f32 %v900, 0.0
          %903 = vst [vmem:[%s484] sm:$0xff] %v901
          %904 = vst [vmem:[%s484 + $0x8] sm:$0xff] %v902
        $region78: #{alexnet_forward.11} parent=65 // pred_fallthru
          _
        %s905 = smul.u32 2, %s20
        %p906 = scmp.lt.s32.totalorder %s19, 0
        %s907 = scalar_select %p906, %s19, 0
        %p908 = scmp.lt.s32.totalorder %s905, 3
        %s909 = scalar_select %p908, %s905, 3
        %s910 = smul.addr %s907, 4
        %s911 = sadd.s32 %s909, %s910
        %s912 = smul.addr %s911, 8
        %s913 = scalar_lea.vmem %s3, %s912
        // Predicated region
        $region79: #{alexnet_forward.11} parent=65 // pred_check
          %p914 = pneg %p135
        $region80: #{alexnet_forward.11} parent=65 // pred_check_branch
          %916 = sbr.rel (%p914) target = $region82
        $region81: #{alexnet_forward.11} parent=65 // pred_region
          %s917 = smul.u32 2, %s20
        $region82: #{alexnet_forward.11} parent=65 // pred_fallthru
          _
      $region66: #{alexnet_forward.11} parent=5 // pred_fallthru
        _
      %p918 = scmp.le.s32.totalorder 2, %s9
      // Predicated region
      $region83: #{alexnet_forward.11} parent=5 // pred_check
        %p919 = pneg %p918
      $region84: #{alexnet_forward.11} parent=5 // pred_check_branch
        %921 = sbr.rel (%p919) target = $region86
      $region85: #{alexnet_forward.11} parent=5 // pred_region
        %s922 = ssub.s32 %s9, 2
        // Predicated region
        $region87: #{alexnet_forward.11} parent=85 // pred_check
          %p923 = pneg %p141
        $region88: #{alexnet_forward.11} parent=85 // pred_check_branch
          %925 = sbr.rel (%p923) target = $region90
        $region89: #{alexnet_forward.11} parent=85 // pred_region
          %s926 = smul.u32 2, %s23
          %p927 = scmp.lt.s32.totalorder %s22, 0
          %s928 = scalar_select %p927, %s22, 0
          %p929 = scmp.lt.s32.totalorder %s926, 3
          %s930 = scalar_select %p929, %s926, 3
          %s931 = smul.addr %s928, 4
          %s932 = sadd.s32 %s930, %s931
          %s933 = smul.addr %s932, 8
          %s934 = scalar_lea.vmem %s3, %s933
        $region90: #{alexnet_forward.11} parent=85 // pred_fallthru
          _
      $region86: #{alexnet_forward.11} parent=5 // pred_fallthru
        _
    $region6: #{alexnet_forward.11} parent=1 // loop_footer
      %s13 = sadd.s32 1, %s9
    $region7: #{alexnet_forward.11} parent=1 // loop_footer_branch
      %8 = sbr.rel target = $region3
    $region8: #{alexnet_forward.11} parent=1 // loop_exit
      _

// kernel: alexnet_forward.12
$region0: #{alexnet_forward.12}
  #allocation0 [shape = 'u32[]', space=smem, size = 0x4, offset = 0x4, fixed_abs, tag = 'smem constant byte address 0x4 - core index']
  #allocation1 [shape = 'u32[144,128]{1,0:T(1,128)}', space=vmem, size = 0x12000, scoped, tag = 'internal scratch']
  #allocation2 [shape = 'f32[8,128]{1,0:T(8,128)}', space=vmem, size = 0x1000, scoped, tag = 'scratch operand']
  %s0 = inlined_call_operand.vmem [shape: bf16[8,384], index: 0, kind: input, shape index: {}]
  %s1 = inlined_call_operand.vmem [shape: bf16[384,128], index: 1, kind: input, shape index: {}]
  %s2 = inlined_call_operand.vmem [shape: f32[1,128], index: 2, kind: input, shape index: {}]
  %s3 = inlined_call_operand.vmem [shape: f32[8,128], index: 3, kind: output, shape index: {}]
  %s4 = sld [smem:[#allocation0]]
  $region30: #{alexnet_forward.12} parent=0
    _
  %s6 = ssub.s32 1, %s4
  %s7 = scalar_select 0, %s6, %s4
  // Predicated region
  $region2: #{alexnet_forward.12} parent=0 // pred_check
    _
  $region3: #{alexnet_forward.12} parent=0 // pred_check_branch
    %9 = sbr.rel (0) target = $region5
  $region4: #{alexnet_forward.12} parent=0 // pred_region
    _
  $region5: #{alexnet_forward.12} parent=0 // pred_fallthru
    _
  // Predicated region
  $region6: #{alexnet_forward.12} parent=0 // pred_check
    _
  $region7: #{alexnet_forward.12} parent=0 // pred_check_branch
    %11 = sbr.rel (0) target = $region9
  $region8: #{alexnet_forward.12} parent=0 // pred_region
    _
  $region9: #{alexnet_forward.12} parent=0 // pred_fallthru
    _
  // Predicated region
  $region10: #{alexnet_forward.12} parent=0 // pred_check
    _
  $region11: #{alexnet_forward.12} parent=0 // pred_check_branch
    %13 = sbr.rel (0) target = $region13
  $region12: #{alexnet_forward.12} parent=0 // pred_region
    _
  $region13: #{alexnet_forward.12} parent=0 // pred_fallthru
    _
  %p15 = scmp.eq.s32.totalorder 0, 0
  // Predicated region
  $region14: #{alexnet_forward.12} parent=0 // pred_check
    %p16 = pneg %p15
  $region15: #{alexnet_forward.12} parent=0 // pred_check_branch
    %18 = sbr.rel (%p16) target = $region17
  $region16: #{alexnet_forward.12} parent=0 // pred_region
    %19 = vst [vmem:[#allocation2] sm:$0xff] 0.0
  $region17: #{alexnet_forward.12} parent=0 // pred_fallthru
    _
  %v20 = vld [vmem:[#allocation2] sm:$0xff]
  %v21 = vld [vmem:[%s0] sm:$0xff]
  %v22 = vld [vmem:[%s0 + $0x8] sm:$0xf]
  %v23 = vld [vmem:[%s1] sm:$0xf]
  %v24 = vld [vmem:[%s1 + $0x4] sm:$0xf]
  %v25 = vld [vmem:[%s1 + $0x8] sm:$0xf]
  %v26 = vld [vmem:[%s1 + $0xc] sm:$0xf]
  %v27 = vld [vmem:[%s1 + $0x10] sm:$0xf]
  %v28 = vld [vmem:[%s1 + $0x14] sm:$0xf]
  %v29 = vld [vmem:[%s1 + $0x18] sm:$0xf]
  %v30 = vld [vmem:[%s1 + $0x1c] sm:$0xf]
  %v31 = vld [vmem:[%s1 + $0x20] sm:$0xf]
  %v32 = vld [vmem:[%s1 + $0x24] sm:$0xf]
  %v33 = vld [vmem:[%s1 + $0x28] sm:$0xf]
  %v34 = vld [vmem:[%s1 + $0x2c] sm:$0xf]
  %v35 = vld [vmem:[%s1 + $0x30] sm:$0xf]
  %v36 = vld [vmem:[%s1 + $0x34] sm:$0xf]
  %v37 = vld [vmem:[%s1 + $0x38] sm:$0xf]
  %v38 = vld [vmem:[%s1 + $0x3c] sm:$0xf]
  %v39 = vld [vmem:[%s1 + $0x40] sm:$0xf]
  %v40 = vld [vmem:[%s1 + $0x44] sm:$0xf]
  %v41 = vld [vmem:[%s1 + $0x48] sm:$0xf]
  %v42 = vld [vmem:[%s1 + $0x4c] sm:$0xf]
  %v43 = vld [vmem:[%s1 + $0x50] sm:$0xf]
  %v44 = vld [vmem:[%s1 + $0x54] sm:$0xf]
  %v45 = vld [vmem:[%s1 + $0x58] sm:$0xf]
  %v46 = vld [vmem:[%s1 + $0x5c] sm:$0xf]
  %v47 = vld [vmem:[%s1 + $0x60] sm:$0xf]
  %v48 = vld [vmem:[%s1 + $0x64] sm:$0xf]
  %v49 = vld [vmem:[%s1 + $0x68] sm:$0xf]
  %v50 = vld [vmem:[%s1 + $0x6c] sm:$0xf]
  %v51 = vld [vmem:[%s1 + $0x70] sm:$0xf]
  %v52 = vld [vmem:[%s1 + $0x74] sm:$0xf]
  %v53 = vld [vmem:[%s1 + $0x78] sm:$0xf]
  %v54 = vld [vmem:[%s1 + $0x7c] sm:$0xf]
  %v55 = vld [vmem:[%s1 + $0x80] sm:$0xf]
  %v56 = vld [vmem:[%s1 + $0x84] sm:$0xf]
  %v57 = vld [vmem:[%s1 + $0x88] sm:$0xf]
  %v58 = vld [vmem:[%s1 + $0x8c] sm:$0xf]
  %v59 = vld [vmem:[%s1 + $0x90] sm:$0xf]
  %v60 = vld [vmem:[%s1 + $0x94] sm:$0xf]
  %v61 = vld [vmem:[%s1 + $0x98] sm:$0xf]
  %v62 = vld [vmem:[%s1 + $0x9c] sm:$0xf]
  %v63 = vld [vmem:[%s1 + $0xa0] sm:$0xf]
  %v64 = vld [vmem:[%s1 + $0xa4] sm:$0xf]
  %v65 = vld [vmem:[%s1 + $0xa8] sm:$0xf]
  %v66 = vld [vmem:[%s1 + $0xac] sm:$0xf]
  %v67 = vld [vmem:[%s1 + $0xb0] sm:$0xf]
  %v68 = vld [vmem:[%s1 + $0xb4] sm:$0xf]
  %v69 = vld [vmem:[%s1 + $0xb8] sm:$0xf]
  %v70 = vld [vmem:[%s1 + $0xbc] sm:$0xf]
  %v73 = vunpack.c.l.b16 %v21
  %v74 = vunpack.c.h.b16 %v21
  %v75 = vunpack.c.l.b16 %v22
  %v76 = vpack.c.b16 %v73, %v73
  %v77 = vpack.c.b16 %v74, %v74
  %v78 = vpack.c.b16 %v75, %v75
  %v130 = vunpack.c.l.b16 %v23
  %v131 = vunpack.c.l.b16 %v24
  %v132 = vunpack.c.l.b16 %v25
  %v133 = vunpack.c.l.b16 %v26
  %v134 = vunpack.c.l.b16 %v27
  %v135 = vunpack.c.l.b16 %v28
  %v136 = vunpack.c.l.b16 %v29
  %v137 = vunpack.c.l.b16 %v30
  %v138 = vunpack.c.l.b16 %v31
  %v139 = vunpack.c.l.b16 %v32
  %v140 = vunpack.c.l.b16 %v33
  %v141 = vunpack.c.l.b16 %v34
  %v142 = vunpack.c.l.b16 %v35
  %v143 = vunpack.c.l.b16 %v36
  %v144 = vunpack.c.l.b16 %v37
  %v145 = vunpack.c.l.b16 %v38
  %v146 = vunpack.c.l.b16 %v39
  %v147 = vunpack.c.l.b16 %v40
  %v148 = vunpack.c.l.b16 %v41
  %v149 = vunpack.c.l.b16 %v42
  %v150 = vunpack.c.l.b16 %v43
  %v151 = vunpack.c.l.b16 %v44
  %v152 = vunpack.c.l.b16 %v45
  %v153 = vunpack.c.l.b16 %v46
  %v154 = vunpack.c.l.b16 %v47
  %v155 = vunpack.c.l.b16 %v48
  %v156 = vunpack.c.l.b16 %v49
  %v157 = vunpack.c.l.b16 %v50
  %v158 = vunpack.c.l.b16 %v51
  %v159 = vunpack.c.l.b16 %v52
  %v160 = vunpack.c.l.b16 %v53
  %v161 = vunpack.c.l.b16 %v54
  %v162 = vunpack.c.l.b16 %v55
  %v163 = vunpack.c.l.b16 %v56
  %v164 = vunpack.c.l.b16 %v57
  %v165 = vunpack.c.l.b16 %v58
  %v166 = vunpack.c.l.b16 %v59
  %v167 = vunpack.c.l.b16 %v60
  %v168 = vunpack.c.l.b16 %v61
  %v169 = vunpack.c.l.b16 %v62
  %v170 = vunpack.c.l.b16 %v63
  %v171 = vunpack.c.l.b16 %v64
  %v172 = vunpack.c.l.b16 %v65
  %v173 = vunpack.c.l.b16 %v66
  %v174 = vunpack.c.l.b16 %v67
  %v175 = vunpack.c.l.b16 %v68
  %v176 = vunpack.c.l.b16 %v69
  %v177 = vunpack.c.l.b16 %v70
  %v178 = vpack.c.b16 %v131, %v130
  %v179 = vpack.c.b16 %v133, %v132
  %v180 = vpack.c.b16 %v135, %v134
  %v181 = vpack.c.b16 %v137, %v136
  %v182 = vpack.c.b16 %v139, %v138
  %v183 = vpack.c.b16 %v141, %v140
  %v184 = vpack.c.b16 %v143, %v142
  %v185 = vpack.c.b16 %v145, %v144
  %v186 = vpack.c.b16 %v147, %v146
  %v187 = vpack.c.b16 %v149, %v148
  %v188 = vpack.c.b16 %v151, %v150
  %v189 = vpack.c.b16 %v153, %v152
  %v190 = vpack.c.b16 %v155, %v154
  %v191 = vpack.c.b16 %v157, %v156
  %v192 = vpack.c.b16 %v159, %v158
  %v193 = vpack.c.b16 %v161, %v160
  %v194 = vpack.c.b16 %v163, %v162
  %v195 = vpack.c.b16 %v165, %v164
  %v196 = vpack.c.b16 %v167, %v166
  %v197 = vpack.c.b16 %v169, %v168
  %v198 = vpack.c.b16 %v171, %v170
  %v199 = vpack.c.b16 %v173, %v172
  %v200 = vpack.c.b16 %v175, %v174
  %v201 = vpack.c.b16 %v177, %v176
  %226 = vmatprep.subr.bf16.mxu0 0
  %227 = vmatpush1.bf16.msra.mxu0 %v178
  %228 = vmatprep.subr.bf16.mxu0 0
  %229 = vmatpush1.bf16.msra.mxu0 %v179
  %230 = vmatprep.subr.bf16.mxu0 0
  %231 = vmatpush1.bf16.msra.mxu0 %v180
  %232 = vmatprep.subr.bf16.mxu0 0
  %233 = vmatpush1.bf16.msra.mxu0 %v181
  %234 = vmatprep.subr.bf16.mxu0 0
  %235 = vmatpush1.bf16.msra.mxu0 %v182
  %236 = vmatprep.subr.bf16.mxu0 0
  %237 = vmatpush1.bf16.msra.mxu0 %v183
  %238 = vmatprep.subr.bf16.mxu0 0
  %239 = vmatpush1.bf16.msra.mxu0 %v184
  %240 = vmatprep.subr.bf16.mxu0 0
  %241 = vmatpush1.bf16.msra.mxu0 %v185
  %242 = vmatprep.subr.bf16.mxu0 0
  %243 = vmatpush1.bf16.msra.mxu0 %v186
  %244 = vmatprep.subr.bf16.mxu0 0
  %245 = vmatpush1.bf16.msra.mxu0 %v187
  %246 = vmatprep.subr.bf16.mxu0 0
  %247 = vmatpush1.bf16.msra.mxu0 %v188
  %248 = vmatprep.subr.bf16.mxu0 0
  %249 = vmatpush1.bf16.msra.mxu0 %v189
  %250 = vmatprep.subr.bf16.mxu0 0
  %251 = vmatpush1.bf16.msra.mxu0 %v190
  %252 = vmatprep.subr.bf16.mxu0 0
  %253 = vmatpush1.bf16.msra.mxu0 %v191
  %254 = vmatprep.subr.bf16.mxu0 0
  %255 = vmatpush1.bf16.msra.mxu0 %v192
  %256 = vmatprep.subr.bf16.mxu0 0
  %257 = vmatpush1.bf16.msra.mxu0 %v193
  %258 = vmatprep.mubr.bf16.mxu0 %v77
  %259 = vmatmul.mubr.bf16.gmra.mrb[0].mxu0 %v76
  %v260 = vpop.f32.mrb[0].mxu0
  %v261 = vadd.f32 0.0, %v260
  %v262 = vpop.f32.mrb[0].mxu0
  %v263 = vpop.f32.mrb[0].mxu0
  %v264 = vpop.f32.mrb[0].mxu0
  %265 = vdwg.mxu0
  %266 = vmatprep.subr.bf16.mxu0 0
  %267 = vmatpush1.bf16.msra.mxu0 %v194
  %268 = vmatprep.subr.bf16.mxu0 0
  %269 = vmatpush1.bf16.msra.mxu0 %v195
  %270 = vmatprep.subr.bf16.mxu0 0
  %271 = vmatpush1.bf16.msra.mxu0 %v196
  %272 = vmatprep.subr.bf16.mxu0 0
  %273 = vmatpush1.bf16.msra.mxu0 %v197
  %274 = vmatprep.subr.bf16.mxu0 0
  %275 = vmatpush1.bf16.msra.mxu0 %v198
  %276 = vmatprep.subr.bf16.mxu0 0
  %277 = vmatpush1.bf16.msra.mxu0 %v199
  %278 = vmatprep.subr.bf16.mxu0 0
  %279 = vmatpush1.bf16.msra.mxu0 %v200
  %280 = vmatprep.subr.bf16.mxu0 0
  %281 = vmatpush1.bf16.msra.mxu0 %v201
  %282 = vmatprep.subr.bf16.mxu0 0
  %283 = vmatpush1.bf16.msra.mxu0 0
  %284 = vmatprep.subr.bf16.mxu0 0
  %285 = vmatpush1.bf16.msra.mxu0 0
  %286 = vmatprep.subr.bf16.mxu0 0
  %287 = vmatpush1.bf16.msra.mxu0 0
  %288 = vmatprep.subr.bf16.mxu0 0
  %289 = vmatpush1.bf16.msra.mxu0 0
  %290 = vmatprep.subr.bf16.mxu0 0
  %291 = vmatpush1.bf16.msra.mxu0 0
  %292 = vmatprep.subr.bf16.mxu0 0
  %293 = vmatpush1.bf16.msra.mxu0 0
  %294 = vmatprep.subr.bf16.mxu0 0
  %295 = vmatpush1.bf16.msra.mxu0 0
  %296 = vmatprep.subr.bf16.mxu0 0
  %297 = vmatpush1.bf16.msra.mxu0 0
  %298 = vmatprep.mubr.bf16.mxu0 0
  %299 = vmatmul.mubr.bf16.gmra.mrb[0].mxu0 %v78
  %v300 = vpop.f32.mrb[0].mxu0
  %v301 = vadd.f32 %v261, %v300
  %v302 = vpop.f32.mrb[0].mxu0
  %v303 = vpop.f32.mrb[0].mxu0
  %v304 = vpop.f32.mrb[0].mxu0
  %305 = vdwg.mxu0
  %v306 = vadd.f32 %v20, %v301
  %307 = vst [vmem:[#allocation2] sm:$0xff] %v306
  // Predicated region
  $region18: #{alexnet_forward.12} parent=0 // pred_check
    %p308 = pneg %p15
  $region19: #{alexnet_forward.12} parent=0 // pred_check_branch
    %310 = sbr.rel (%p308) target = $region21
  $region20: #{alexnet_forward.12} parent=0 // pred_region
    %v311 = vld [vmem:[#allocation2] sm:$0xff]
    %v312 = vld [vmem:[%s2] sm:$0x1]
    %v314 = vlaneseq
    %v315 = vshrl.u32 %v314, 7
    %v316 = vsub.s32 0, %v315
    %v317 = vrot.slane %v312, %v316
    %v319 = vadd.f32 %v311, %v317
    %v320 = vmax.f32 %v319, 0.0
    %321 = vst [vmem:[%s3] sm:$0xff] %v320
  $region21: #{alexnet_forward.12} parent=0 // pred_fallthru
    _
  // Predicated region
  $region22: #{alexnet_forward.12} parent=0 // pred_check
    _
  $region23: #{alexnet_forward.12} parent=0 // pred_check_branch
    %323 = sbr.rel (0) target = $region25
  $region24: #{alexnet_forward.12} parent=0 // pred_region
    _
  $region25: #{alexnet_forward.12} parent=0 // pred_fallthru
    _
  // Predicated region
  $region26: #{alexnet_forward.12} parent=0 // pred_check
    _
  $region27: #{alexnet_forward.12} parent=0 // pred_check_branch
    %325 = sbr.rel (0) target = $region29
  $region28: #{alexnet_forward.12} parent=0 // pred_region
    _
  $region29: #{alexnet_forward.12} parent=0 // pred_fallthru
    _

// kernel: alexnet_forward.13
$region0: #{alexnet_forward.13}
  #allocation0 [shape = 'u32[]', space=smem, size = 0x4, offset = 0x4, fixed_abs, tag = 'smem constant byte address 0x4 - core index']
  #allocation1 [shape = 'u32[144,128]{1,0:T(1,128)}', space=vmem, size = 0x12000, scoped, tag = 'internal scratch']
  #allocation2 [shape = 'f32[8,128]{1,0:T(8,128)}', space=vmem, size = 0x1000, scoped, tag = 'scratch operand']
  %s0 = inlined_call_operand.vmem [shape: bf16[8,128], index: 0, kind: input, shape index: {}]
  %s1 = inlined_call_operand.vmem [shape: bf16[128,128], index: 1, kind: input, shape index: {}]
  %s2 = inlined_call_operand.vmem [shape: f32[1,128], index: 2, kind: input, shape index: {}]
  %s3 = inlined_call_operand.vmem [shape: f32[8,128], index: 3, kind: output, shape index: {}]
  %s4 = sld [smem:[#allocation0]]
  $region30: #{alexnet_forward.13} parent=0
    _
  %s6 = ssub.s32 1, %s4
  %s7 = scalar_select 0, %s6, %s4
  // Predicated region
  $region2: #{alexnet_forward.13} parent=0 // pred_check
    _
  $region3: #{alexnet_forward.13} parent=0 // pred_check_branch
    %9 = sbr.rel (0) target = $region5
  $region4: #{alexnet_forward.13} parent=0 // pred_region
    _
  $region5: #{alexnet_forward.13} parent=0 // pred_fallthru
    _
  // Predicated region
  $region6: #{alexnet_forward.13} parent=0 // pred_check
    _
  $region7: #{alexnet_forward.13} parent=0 // pred_check_branch
    %11 = sbr.rel (0) target = $region9
  $region8: #{alexnet_forward.13} parent=0 // pred_region
    _
  $region9: #{alexnet_forward.13} parent=0 // pred_fallthru
    _
  // Predicated region
  $region10: #{alexnet_forward.13} parent=0 // pred_check
    _
  $region11: #{alexnet_forward.13} parent=0 // pred_check_branch
    %13 = sbr.rel (0) target = $region13
  $region12: #{alexnet_forward.13} parent=0 // pred_region
    _
  $region13: #{alexnet_forward.13} parent=0 // pred_fallthru
    _
  %p15 = scmp.eq.s32.totalorder 0, 0
  // Predicated region
  $region14: #{alexnet_forward.13} parent=0 // pred_check
    %p16 = pneg %p15
  $region15: #{alexnet_forward.13} parent=0 // pred_check_branch
    %18 = sbr.rel (%p16) target = $region17
  $region16: #{alexnet_forward.13} parent=0 // pred_region
    %19 = vst [vmem:[#allocation2] sm:$0xff] 0.0
  $region17: #{alexnet_forward.13} parent=0 // pred_fallthru
    _
  %v20 = vld [vmem:[#allocation2] sm:$0xff]
  %v21 = vld [vmem:[%s0] sm:$0xf]
  %v22 = vld [vmem:[%s1] sm:$0xf]
  %v23 = vld [vmem:[%s1 + $0x4] sm:$0xf]
  %v24 = vld [vmem:[%s1 + $0x8] sm:$0xf]
  %v25 = vld [vmem:[%s1 + $0xc] sm:$0xf]
  %v26 = vld [vmem:[%s1 + $0x10] sm:$0xf]
  %v27 = vld [vmem:[%s1 + $0x14] sm:$0xf]
  %v28 = vld [vmem:[%s1 + $0x18] sm:$0xf]
  %v29 = vld [vmem:[%s1 + $0x1c] sm:$0xf]
  %v30 = vld [vmem:[%s1 + $0x20] sm:$0xf]
  %v31 = vld [vmem:[%s1 + $0x24] sm:$0xf]
  %v32 = vld [vmem:[%s1 + $0x28] sm:$0xf]
  %v33 = vld [vmem:[%s1 + $0x2c] sm:$0xf]
  %v34 = vld [vmem:[%s1 + $0x30] sm:$0xf]
  %v35 = vld [vmem:[%s1 + $0x34] sm:$0xf]
  %v36 = vld [vmem:[%s1 + $0x38] sm:$0xf]
  %v37 = vld [vmem:[%s1 + $0x3c] sm:$0xf]
  %v54 = vunpack.c.l.b16 %v22
  %v55 = vunpack.c.l.b16 %v23
  %v56 = vunpack.c.l.b16 %v24
  %v57 = vunpack.c.l.b16 %v25
  %v58 = vunpack.c.l.b16 %v26
  %v59 = vunpack.c.l.b16 %v27
  %v60 = vunpack.c.l.b16 %v28
  %v61 = vunpack.c.l.b16 %v29
  %v62 = vunpack.c.l.b16 %v30
  %v63 = vunpack.c.l.b16 %v31
  %v64 = vunpack.c.l.b16 %v32
  %v65 = vunpack.c.l.b16 %v33
  %v66 = vunpack.c.l.b16 %v34
  %v67 = vunpack.c.l.b16 %v35
  %v68 = vunpack.c.l.b16 %v36
  %v69 = vunpack.c.l.b16 %v37
  %v70 = vpack.c.b16 %v55, %v54
  %v71 = vpack.c.b16 %v57, %v56
  %v72 = vpack.c.b16 %v59, %v58
  %v73 = vpack.c.b16 %v61, %v60
  %v74 = vpack.c.b16 %v63, %v62
  %v75 = vpack.c.b16 %v65, %v64
  %v76 = vpack.c.b16 %v67, %v66
  %v77 = vpack.c.b16 %v69, %v68
  %86 = vmatprep.subr.bf16.mxu0 0
  %87 = vmatpush1.bf16.msra.mxu0 %v70
  %88 = vmatprep.subr.bf16.mxu0 0
  %89 = vmatpush1.bf16.msra.mxu0 %v71
  %90 = vmatprep.subr.bf16.mxu0 0
  %91 = vmatpush1.bf16.msra.mxu0 %v72
  %92 = vmatprep.subr.bf16.mxu0 0
  %93 = vmatpush1.bf16.msra.mxu0 %v73
  %94 = vmatprep.subr.bf16.mxu0 0
  %95 = vmatpush1.bf16.msra.mxu0 %v74
  %96 = vmatprep.subr.bf16.mxu0 0
  %97 = vmatpush1.bf16.msra.mxu0 %v75
  %98 = vmatprep.subr.bf16.mxu0 0
  %99 = vmatpush1.bf16.msra.mxu0 %v76
  %100 = vmatprep.subr.bf16.mxu0 0
  %101 = vmatpush1.bf16.msra.mxu0 %v77
  %102 = vmatprep.subr.bf16.mxu0 0
  %103 = vmatpush1.bf16.msra.mxu0 0
  %104 = vmatprep.subr.bf16.mxu0 0
  %105 = vmatpush1.bf16.msra.mxu0 0
  %106 = vmatprep.subr.bf16.mxu0 0
  %107 = vmatpush1.bf16.msra.mxu0 0
  %108 = vmatprep.subr.bf16.mxu0 0
  %109 = vmatpush1.bf16.msra.mxu0 0
  %110 = vmatprep.subr.bf16.mxu0 0
  %111 = vmatpush1.bf16.msra.mxu0 0
  %112 = vmatprep.subr.bf16.mxu0 0
  %113 = vmatpush1.bf16.msra.mxu0 0
  %114 = vmatprep.subr.bf16.mxu0 0
  %115 = vmatpush1.bf16.msra.mxu0 0
  %116 = vmatprep.subr.bf16.mxu0 0
  %117 = vmatpush1.bf16.msra.mxu0 0
  %118 = vmatprep.mubr.bf16.mxu0 0
  %119 = vmatmul.mubr.bf16.gmra.mrb[0].mxu0 %v21
  %v120 = vpop.f32.mrb[0].mxu0
  %v121 = vadd.f32 0.0, %v120
  %v122 = vpop.f32.mrb[0].mxu0
  %v123 = vpop.f32.mrb[0].mxu0
  %v124 = vpop.f32.mrb[0].mxu0
  %125 = vdwg.mxu0
  %v126 = vadd.f32 %v20, %v121
  %127 = vst [vmem:[#allocation2] sm:$0xff] %v126
  // Predicated region
  $region18: #{alexnet_forward.13} parent=0 // pred_check
    %p128 = pneg %p15
  $region19: #{alexnet_forward.13} parent=0 // pred_check_branch
    %130 = sbr.rel (%p128) target = $region21
  $region20: #{alexnet_forward.13} parent=0 // pred_region
    %v131 = vld [vmem:[#allocation2] sm:$0xff]
    %v132 = vld [vmem:[%s2] sm:$0x1]
    %v134 = vlaneseq
    %v135 = vshrl.u32 %v134, 7
    %v136 = vsub.s32 0, %v135
    %v137 = vrot.slane %v132, %v136
    %v139 = vadd.f32 %v131, %v137
    %140 = vst [vmem:[%s3] sm:$0xff] %v139
  $region21: #{alexnet_forward.13} parent=0 // pred_fallthru
    _
  // Predicated region
  $region22: #{alexnet_forward.13} parent=0 // pred_check
    _
  $region23: #{alexnet_forward.13} parent=0 // pred_check_branch
    %142 = sbr.rel (0) target = $region25
  $region24: #{alexnet_forward.13} parent=0 // pred_region
    _
  $region25: #{alexnet_forward.13} parent=0 // pred_fallthru
    _
  // Predicated region
  $region26: #{alexnet_forward.13} parent=0 // pred_check
    _
  $region27: #{alexnet_forward.13} parent=0 // pred_check_branch
    %144 = sbr.rel (0) target = $region29
  $region28: #{alexnet_forward.13} parent=0 // pred_region
    _
  $region29: #{alexnet_forward.13} parent=0 // pred_fallthru
    _

</llo_original>
